<compile_context>
chip_gen: v5e
topology: v5e:2x2
jax: 0.10.0
libtpu: 0.0.40
codegen_flags: <defaults>
</compile_context>

<pallas_src>
import jax
import jax.numpy as jnp
from jax.experimental import pallas as pl
from jax.experimental.pallas import tpu as pltpu

# ---------------- small synthetic BERT config ----------------
VOCAB = 128
TYPE_VOCAB = 2
MAX_POS = 16
HIDDEN = 32
HEADS = 4
HEAD_DIM = HIDDEN // HEADS
INTER = 64
LAYERS = 2
EMB_SIZE = 16          # output_emb_size of BertBase.lin
NUM_CLASSES = 4        # BertClassfication.fc
LN_EPS = 1e-12
L2_EPS = 1e-12         # F.normalize eps
ATT_SCALE = 1.0 / (HEAD_DIM ** 0.5)


# ---------------- fused Pallas kernel (one grid step == one batch element) ----------------
def _bert_fused_kernel(
        h_ref, mask_ref,
        embg_ref, embb_ref,
        wq_ref, bq_ref, wk_ref, bk_ref, wv_ref, bv_ref,
        wo_ref, bo_ref, ln1g_ref, ln1b_ref,
        w1_ref, b1_ref, w2_ref, b2_ref, ln2g_ref, ln2b_ref,
        linw_ref, linb_ref, fcw_ref, fcb_ref,
        o_ref):

    def layer_norm(x, g, b):
        mu = jnp.mean(x, axis=-1, keepdims=True)
        var = jnp.mean(jnp.square(x - mu), axis=-1, keepdims=True)
        return (x - mu) * jax.lax.rsqrt(var + LN_EPS) * g + b

    h = layer_norm(h_ref[0], embg_ref[...], embb_ref[...])     # (S, HIDDEN)
    mask = mask_ref[0]                                         # (1, S) additive key mask

    for L in range(LAYERS):
        # ---- self attention: all heads inside the kernel, per-head packed weights ----
        attn = jnp.zeros(h.shape, jnp.float32)
        for hh in range(HEADS):
            idx = L * HEADS + hh
            q = jnp.dot(h, wq_ref[idx], preferred_element_type=jnp.float32) + bq_ref[idx]
            k = jnp.dot(h, wk_ref[idx], preferred_element_type=jnp.float32) + bk_ref[idx]
            v = jnp.dot(h, wv_ref[idx], preferred_element_type=jnp.float32) + bv_ref[idx]
            # q @ k^T via dot_general contraction (no materialized transpose)
            s = jax.lax.dot_general(q, k, (((1,), (1,)), ((), ())),
                                    preferred_element_type=jnp.float32) * ATT_SCALE + mask
            s = s - jnp.max(s, axis=-1, keepdims=True)
            p = jnp.exp(s)
            p = p * pl.reciprocal(jnp.sum(p, axis=-1, keepdims=True), approx=True)
            ctx = jnp.dot(p, v, preferred_element_type=jnp.float32)          # (S, HEAD_DIM)
            # fold the output projection per head -> no head concat needed
            attn = attn + jnp.dot(ctx, wo_ref[idx], preferred_element_type=jnp.float32)
        attn = attn + bo_ref[L]
        h = layer_norm(h + attn, ln1g_ref[L], ln1b_ref[L])

        # ---- feed forward ----
        f = jnp.dot(h, w1_ref[L], preferred_element_type=jnp.float32) + b1_ref[L]
        # TODO(synk): torch nn.GELU default is the exact erf form; tanh approximation used here.
        f = jax.nn.gelu(f, approximate=True)
        f = jnp.dot(f, w2_ref[L], preferred_element_type=jnp.float32) + b2_ref[L]
        h = layer_norm(h + f, ln2g_ref[L], ln2b_ref[L])

    # ---- 'cls' pooling -> lin -> dropout(identity at inference) -> L2 normalize -> fc ----
    cls = h[0:1, :]                                                          # (1, HIDDEN)
    e = jnp.dot(cls, linw_ref[...], preferred_element_type=jnp.float32) + linb_ref[...]
    nrm = jnp.sqrt(jnp.sum(e * e, axis=-1, keepdims=True))
    e = e * pl.reciprocal(jnp.maximum(nrm, L2_EPS), approx=True)
    o_ref[0] = jnp.dot(e, fcw_ref[...], preferred_element_type=jnp.float32) + fcb_ref[...]


# ---------------- parameter init (deterministic, synthetic) ----------------
def init_params(key):
    def nrm(k, shape, scale=0.02):
        return (scale * jax.random.normal(k, shape)).astype(jnp.float32)

    keys = iter(jax.random.split(key, 200))
    params = {
        "word_emb": nrm(next(keys), (VOCAB, HIDDEN)),
        "pos_emb": nrm(next(keys), (MAX_POS, HIDDEN)),
        "type_emb": nrm(next(keys), (TYPE_VOCAB, HIDDEN)),
        "emb_ln_g": jnp.ones((HIDDEN,), jnp.float32),
        "emb_ln_b": jnp.zeros((HIDDEN,), jnp.float32),
        "layers": [],
        "lin_w": nrm(next(keys), (HIDDEN, EMB_SIZE)),
        "lin_b": jnp.zeros((EMB_SIZE,), jnp.float32),
        "fc_w": nrm(next(keys), (EMB_SIZE, NUM_CLASSES)),
        "fc_b": jnp.zeros((NUM_CLASSES,), jnp.float32),
    }
    for _ in range(LAYERS):
        params["layers"].append({
            "wq": nrm(next(keys), (HIDDEN, HIDDEN)), "bq": jnp.zeros((HIDDEN,), jnp.float32),
            "wk": nrm(next(keys), (HIDDEN, HIDDEN)), "bk": jnp.zeros((HIDDEN,), jnp.float32),
            "wv": nrm(next(keys), (HIDDEN, HIDDEN)), "bv": jnp.zeros((HIDDEN,), jnp.float32),
            "wo": nrm(next(keys), (HIDDEN, HIDDEN)), "bo": jnp.zeros((HIDDEN,), jnp.float32),
            "ln1_g": jnp.ones((HIDDEN,), jnp.float32), "ln1_b": jnp.zeros((HIDDEN,), jnp.float32),
            "w1": nrm(next(keys), (HIDDEN, INTER)), "b1": jnp.zeros((INTER,), jnp.float32),
            "w2": nrm(next(keys), (INTER, HIDDEN)), "b2": jnp.zeros((HIDDEN,), jnp.float32),
            "ln2_g": jnp.ones((HIDDEN,), jnp.float32), "ln2_b": jnp.zeros((HIDDEN,), jnp.float32),
        })
    return params


# ---------------- one-time host-side weight packing (per-head layout, layer-stacked) ----------------
def pack_params(p):
    Ls = p["layers"]

    def per_head_w(name):   # (HIDDEN, HIDDEN) -> (LAYERS*HEADS, HIDDEN, HEAD_DIM)
        return jnp.concatenate(
            [l[name].reshape(HIDDEN, HEADS, HEAD_DIM).transpose(1, 0, 2) for l in Ls], axis=0)

    def per_head_b(name):   # (HIDDEN,) -> (LAYERS*HEADS, 1, HEAD_DIM)
        return jnp.concatenate([l[name].reshape(HEADS, 1, HEAD_DIM) for l in Ls], axis=0)

    def per_layer(name, shape2d):
        return jnp.stack([l[name].reshape(shape2d) for l in Ls], axis=0)

    return {
        "word_emb": p["word_emb"], "pos_emb": p["pos_emb"], "type_emb": p["type_emb"],
        "emb_ln_g": p["emb_ln_g"].reshape(1, HIDDEN),
        "emb_ln_b": p["emb_ln_b"].reshape(1, HIDDEN),
        "wq": per_head_w("wq"), "bq": per_head_b("bq"),
        "wk": per_head_w("wk"), "bk": per_head_b("bk"),
        "wv": per_head_w("wv"), "bv": per_head_b("bv"),
        # wo rows for head hh are wo[hh*D:(hh+1)*D, :]
        "wo": jnp.concatenate([l["wo"].reshape(HEADS, HEAD_DIM, HIDDEN) for l in Ls], axis=0),
        "bo": per_layer("bo", (1, HIDDEN)),
        "ln1_g": per_layer("ln1_g", (1, HIDDEN)), "ln1_b": per_layer("ln1_b", (1, HIDDEN)),
        "w1": per_layer("w1", (HIDDEN, INTER)), "b1": per_layer("b1", (1, INTER)),
        "w2": per_layer("w2", (INTER, HIDDEN)), "b2": per_layer("b2", (1, HIDDEN)),
        "ln2_g": per_layer("ln2_g", (1, HIDDEN)), "ln2_b": per_layer("ln2_b", (1, HIDDEN)),
        "lin_w": p["lin_w"], "lin_b": p["lin_b"].reshape(1, EMB_SIZE),
        "fc_w": p["fc_w"], "fc_b": p["fc_b"].reshape(1, NUM_CLASSES),
    }


_WEIGHT_KEYS = ("emb_ln_g", "emb_ln_b", "wq", "bq", "wk", "bk", "wv", "bv",
                "wo", "bo", "ln1_g", "ln1_b", "w1", "b1", "w2", "b2",
                "ln2_g", "ln2_b", "lin_w", "lin_b", "fc_w", "fc_b")


# ---------------- forward: embeddings (gather) in glue, everything else in ONE pallas_call ----------------
def bert_classification_forward(packed, input_ids, token_type_ids, attention_mask):
    B, S = input_ids.shape

    # Embedding table gathers kept as plain XLA gathers (no clean small-Pallas equivalent).
    h = (packed["word_emb"][input_ids]
         + packed["pos_emb"][jnp.arange(S)][None, :, :]
         + packed["type_emb"][token_type_ids]).astype(jnp.float32)              # (B, S, HIDDEN)

    mask_add = ((1.0 - attention_mask.astype(jnp.float32)) * -1e4)[:, None, :]  # (B, 1, S)

    weights = [packed[k] for k in _WEIGHT_KEYS]

    def rep_spec(a):
        nd = a.ndim
        return pl.BlockSpec(a.shape, lambda b, nd=nd: (0,) * nd)

    logits = pl.pallas_call(
        _bert_fused_kernel,
        out_shape=jax.ShapeDtypeStruct((B, 1, NUM_CLASSES), jnp.float32),
        grid=(B,),
        in_specs=[pl.BlockSpec((1, S, HIDDEN), lambda b: (b, 0, 0)),
                  pl.BlockSpec((1, 1, S), lambda b: (b, 0, 0))]
                 + [rep_spec(a) for a in weights],
        out_specs=pl.BlockSpec((1, 1, NUM_CLASSES), lambda b: (b, 0, 0)),
        compiler_params=pltpu.CompilerParams(dimension_semantics=("parallel",)),
    )(h, mask_add, *weights)

    return logits.reshape(B, NUM_CLASSES)


if __name__ == "__main__":
    key = jax.random.PRNGKey(0)
    k_param, k_ids = jax.random.split(key)

    B, S = 2, 8
    params = init_params(k_param)
    packed = pack_params(params)          # one-time host-side packing (outside jit)

    input_ids = jax.random.randint(k_ids, (B, S), 0, VOCAB, dtype=jnp.int32)
    token_type_ids = jnp.zeros((B, S), dtype=jnp.int32)
    attention_mask = jnp.array([[1, 1, 1, 1, 1, 1, 1, 1],
                                [1, 1, 1, 1, 1, 1, 0, 0]], dtype=jnp.int32)

    fwd = jax.jit(bert_classification_forward)
    out = fwd(packed, input_ids, token_type_ids, attention_mask)
    out = jax.block_until_ready(out)
    assert out.shape == (B, NUM_CLASSES) and out.dtype == jnp.float32
    print("KERNEL_OK")
</pallas_src>

<mosaic_0001>
module attributes {stable_mosaic.version = 11 : i64} {
  func.func @_bert_fused_kernel(%arg0: i32, %arg1: memref<1x8x32xf32, #tpu.memory_space<vmem>>, %arg2: memref<1x1x8xf32, #tpu.memory_space<vmem>>, %arg3: memref<1x32xf32, #tpu.memory_space<vmem>>, %arg4: memref<1x32xf32, #tpu.memory_space<vmem>>, %arg5: memref<8x32x8xf32, #tpu.memory_space<vmem>>, %arg6: memref<8x1x8xf32, #tpu.memory_space<vmem>>, %arg7: memref<8x32x8xf32, #tpu.memory_space<vmem>>, %arg8: memref<8x1x8xf32, #tpu.memory_space<vmem>>, %arg9: memref<8x32x8xf32, #tpu.memory_space<vmem>>, %arg10: memref<8x1x8xf32, #tpu.memory_space<vmem>>, %arg11: memref<8x8x32xf32, #tpu.memory_space<vmem>>, %arg12: memref<2x1x32xf32, #tpu.memory_space<vmem>>, %arg13: memref<2x1x32xf32, #tpu.memory_space<vmem>>, %arg14: memref<2x1x32xf32, #tpu.memory_space<vmem>>, %arg15: memref<2x32x64xf32, #tpu.memory_space<vmem>>, %arg16: memref<2x1x64xf32, #tpu.memory_space<vmem>>, %arg17: memref<2x64x32xf32, #tpu.memory_space<vmem>>, %arg18: memref<2x1x32xf32, #tpu.memory_space<vmem>>, %arg19: memref<2x1x32xf32, #tpu.memory_space<vmem>>, %arg20: memref<2x1x32xf32, #tpu.memory_space<vmem>>, %arg21: memref<32x16xf32, #tpu.memory_space<vmem>>, %arg22: memref<1x16xf32, #tpu.memory_space<vmem>>, %arg23: memref<16x4xf32, #tpu.memory_space<vmem>>, %arg24: memref<1x4xf32, #tpu.memory_space<vmem>>, %arg25: memref<1x1x4xf32, #tpu.memory_space<vmem>>) attributes {dimension_semantics = [#tpu.dimension_semantics<parallel>], iteration_bounds = array<i64: 2>, scalar_prefetch = 0 : i64, scratch_operands = 0 : i64, tpu.core_type = #tpu.core_type<tc>, window_params = [{transform_indices = @transform_0, window_bounds = array<i64: 1, 8, 32>}, {transform_indices = @transform_1, window_bounds = array<i64: 1, 1, 8>}, {pipeline_mode = #tpu.pipeline_mode<synchronous>, transform_indices = @transform_2, window_bounds = array<i64: 1, 32>}, {pipeline_mode = #tpu.pipeline_mode<synchronous>, transform_indices = @transform_3, window_bounds = array<i64: 1, 32>}, {pipeline_mode = #tpu.pipeline_mode<synchronous>, transform_indices = @transform_4, window_bounds = array<i64: 8, 32, 8>}, {pipeline_mode = #tpu.pipeline_mode<synchronous>, transform_indices = @transform_5, window_bounds = array<i64: 8, 1, 8>}, {pipeline_mode = #tpu.pipeline_mode<synchronous>, transform_indices = @transform_6, window_bounds = array<i64: 8, 32, 8>}, {pipeline_mode = #tpu.pipeline_mode<synchronous>, transform_indices = @transform_7, window_bounds = array<i64: 8, 1, 8>}, {pipeline_mode = #tpu.pipeline_mode<synchronous>, transform_indices = @transform_8, window_bounds = array<i64: 8, 32, 8>}, {pipeline_mode = #tpu.pipeline_mode<synchronous>, transform_indices = @transform_9, window_bounds = array<i64: 8, 1, 8>}, {pipeline_mode = #tpu.pipeline_mode<synchronous>, transform_indices = @transform_10, window_bounds = array<i64: 8, 8, 32>}, {pipeline_mode = #tpu.pipeline_mode<synchronous>, transform_indices = @transform_11, window_bounds = array<i64: 2, 1, 32>}, {pipeline_mode = #tpu.pipeline_mode<synchronous>, transform_indices = @transform_12, window_bounds = array<i64: 2, 1, 32>}, {pipeline_mode = #tpu.pipeline_mode<synchronous>, transform_indices = @transform_13, window_bounds = array<i64: 2, 1, 32>}, {pipeline_mode = #tpu.pipeline_mode<synchronous>, transform_indices = @transform_14, window_bounds = array<i64: 2, 32, 64>}, {pipeline_mode = #tpu.pipeline_mode<synchronous>, transform_indices = @transform_15, window_bounds = array<i64: 2, 1, 64>}, {pipeline_mode = #tpu.pipeline_mode<synchronous>, transform_indices = @transform_16, window_bounds = array<i64: 2, 64, 32>}, {pipeline_mode = #tpu.pipeline_mode<synchronous>, transform_indices = @transform_17, window_bounds = array<i64: 2, 1, 32>}, {pipeline_mode = #tpu.pipeline_mode<synchronous>, transform_indices = @transform_18, window_bounds = array<i64: 2, 1, 32>}, {pipeline_mode = #tpu.pipeline_mode<synchronous>, transform_indices = @transform_19, window_bounds = array<i64: 2, 1, 32>}, {pipeline_mode = #tpu.pipeline_mode<synchronous>, transform_indices = @transform_20, window_bounds = array<i64: 32, 16>}, {pipeline_mode = #tpu.pipeline_mode<synchronous>, transform_indices = @transform_21, window_bounds = array<i64: 1, 16>}, {pipeline_mode = #tpu.pipeline_mode<synchronous>, transform_indices = @transform_22, window_bounds = array<i64: 16, 4>}, {pipeline_mode = #tpu.pipeline_mode<synchronous>, transform_indices = @transform_23, window_bounds = array<i64: 1, 4>}, {transform_indices = @transform_24, window_bounds = array<i64: 1, 1, 4>}]} {
    %c0 = arith.constant 0 : index
    %c0_0 = arith.constant 0 : index
    %c0_1 = arith.constant 0 : index
    %0 = vector.load %arg1[%c0, %c0_0, %c0_1] : memref<1x8x32xf32, #tpu.memory_space<vmem>>, vector<1x8x32xf32>
    %1 = vector.shape_cast %0 : vector<1x8x32xf32> to vector<8x32xf32>
    %c0_2 = arith.constant 0 : index
    %c0_3 = arith.constant 0 : index
    %2 = vector.load %arg3[%c0_2, %c0_3] : memref<1x32xf32, #tpu.memory_space<vmem>>, vector<1x32xf32>
    %c0_4 = arith.constant 0 : index
    %c0_5 = arith.constant 0 : index
    %3 = vector.load %arg4[%c0_4, %c0_5] : memref<1x32xf32, #tpu.memory_space<vmem>>, vector<1x32xf32>
    %cst = arith.constant dense<0.000000e+00> : vector<8xf32>
    %4 = vector.multi_reduction <add>, %1, %cst [1] : vector<8x32xf32> to vector<8xf32>
    %5 = vector.shape_cast %4 : vector<8xf32> to vector<8x1xf32>
    %cst_6 = arith.constant 3.200000e+01 : f32
    %6 = vector.broadcast %cst_6 : f32 to vector<8x1xf32>
    %7 = arith.divf %5, %6 : vector<8x1xf32>
    %8 = vector.broadcast %7 : vector<8x1xf32> to vector<8x32xf32>
    %9 = arith.subf %1, %8 : vector<8x32xf32>
    %10 = arith.mulf %9, %9 : vector<8x32xf32>
    %cst_7 = arith.constant dense<0.000000e+00> : vector<8xf32>
    %11 = vector.multi_reduction <add>, %10, %cst_7 [1] : vector<8x32xf32> to vector<8xf32>
    %12 = vector.shape_cast %11 : vector<8xf32> to vector<8x1xf32>
    %cst_8 = arith.constant 3.200000e+01 : f32
    %13 = vector.broadcast %cst_8 : f32 to vector<8x1xf32>
    %14 = arith.divf %12, %13 : vector<8x1xf32>
    %15 = vector.broadcast %7 : vector<8x1xf32> to vector<8x32xf32>
    %16 = arith.subf %1, %15 : vector<8x32xf32>
    %cst_9 = arith.constant 9.99999996E-13 : f32
    %17 = vector.broadcast %cst_9 : f32 to vector<8x1xf32>
    %18 = arith.addf %14, %17 : vector<8x1xf32>
    %19 = math.rsqrt %18 : vector<8x1xf32>
    %20 = vector.broadcast %19 : vector<8x1xf32> to vector<8x32xf32>
    %21 = arith.mulf %16, %20 : vector<8x32xf32>
    %22 = vector.broadcast %2 : vector<1x32xf32> to vector<8x32xf32>
    %23 = arith.mulf %21, %22 : vector<8x32xf32>
    %24 = vector.broadcast %3 : vector<1x32xf32> to vector<8x32xf32>
    %25 = arith.addf %23, %24 : vector<8x32xf32>
    %c0_10 = arith.constant 0 : index
    %c0_11 = arith.constant 0 : index
    %c0_12 = arith.constant 0 : index
    %26 = vector.load %arg2[%c0_10, %c0_11, %c0_12] : memref<1x1x8xf32, #tpu.memory_space<vmem>>, vector<1x1x8xf32>
    %27 = vector.shape_cast %26 : vector<1x1x8xf32> to vector<1x8xf32>
    %cst_13 = arith.constant 0.000000e+00 : f32
    %28 = vector.broadcast %cst_13 : f32 to vector<8x32xf32>
    %c0_14 = arith.constant 0 : index
    %c0_15 = arith.constant 0 : index
    %c0_16 = arith.constant 0 : index
    %29 = vector.load %arg5[%c0_14, %c0_15, %c0_16] : memref<8x32x8xf32, #tpu.memory_space<vmem>>, vector<1x32x8xf32>
    %30 = vector.shape_cast %29 : vector<1x32x8xf32> to vector<32x8xf32>
    %cst_17 = arith.constant dense<0.000000e+00> : vector<8x8xf32>
    %31 = tpu.matmul %25, %30, %cst_17 {dimension_numbers = #tpu.dot_dimension_numbers<[1], [0], [0], [1], [0, 0, 1, 1], [], []>} : vector<8x32xf32>, vector<32x8xf32>, vector<8x8xf32> -> vector<8x8xf32>
    %c0_18 = arith.constant 0 : index
    %c0_19 = arith.constant 0 : index
    %c0_20 = arith.constant 0 : index
    %32 = vector.load %arg6[%c0_18, %c0_19, %c0_20] : memref<8x1x8xf32, #tpu.memory_space<vmem>>, vector<1x1x8xf32>
    %33 = vector.shape_cast %32 : vector<1x1x8xf32> to vector<1x8xf32>
    %34 = vector.broadcast %33 : vector<1x8xf32> to vector<8x8xf32>
    %35 = arith.addf %31, %34 : vector<8x8xf32>
    %c0_21 = arith.constant 0 : index
    %c0_22 = arith.constant 0 : index
    %c0_23 = arith.constant 0 : index
    %36 = vector.load %arg7[%c0_21, %c0_22, %c0_23] : memref<8x32x8xf32, #tpu.memory_space<vmem>>, vector<1x32x8xf32>
    %37 = vector.shape_cast %36 : vector<1x32x8xf32> to vector<32x8xf32>
    %cst_24 = arith.constant dense<0.000000e+00> : vector<8x8xf32>
    %38 = tpu.matmul %25, %37, %cst_24 {dimension_numbers = #tpu.dot_dimension_numbers<[1], [0], [0], [1], [0, 0, 1, 1], [], []>} : vector<8x32xf32>, vector<32x8xf32>, vector<8x8xf32> -> vector<8x8xf32>
    %c0_25 = arith.constant 0 : index
    %c0_26 = arith.constant 0 : index
    %c0_27 = arith.constant 0 : index
    %39 = vector.load %arg8[%c0_25, %c0_26, %c0_27] : memref<8x1x8xf32, #tpu.memory_space<vmem>>, vector<1x1x8xf32>
    %40 = vector.shape_cast %39 : vector<1x1x8xf32> to vector<1x8xf32>
    %41 = vector.broadcast %40 : vector<1x8xf32> to vector<8x8xf32>
    %42 = arith.addf %38, %41 : vector<8x8xf32>
    %c0_28 = arith.constant 0 : index
    %c0_29 = arith.constant 0 : index
    %c0_30 = arith.constant 0 : index
    %43 = vector.load %arg9[%c0_28, %c0_29, %c0_30] : memref<8x32x8xf32, #tpu.memory_space<vmem>>, vector<1x32x8xf32>
    %44 = vector.shape_cast %43 : vector<1x32x8xf32> to vector<32x8xf32>
    %cst_31 = arith.constant dense<0.000000e+00> : vector<8x8xf32>
    %45 = tpu.matmul %25, %44, %cst_31 {dimension_numbers = #tpu.dot_dimension_numbers<[1], [0], [0], [1], [0, 0, 1, 1], [], []>} : vector<8x32xf32>, vector<32x8xf32>, vector<8x8xf32> -> vector<8x8xf32>
    %c0_32 = arith.constant 0 : index
    %c0_33 = arith.constant 0 : index
    %c0_34 = arith.constant 0 : index
    %46 = vector.load %arg10[%c0_32, %c0_33, %c0_34] : memref<8x1x8xf32, #tpu.memory_space<vmem>>, vector<1x1x8xf32>
    %47 = vector.shape_cast %46 : vector<1x1x8xf32> to vector<1x8xf32>
    %48 = vector.broadcast %47 : vector<1x8xf32> to vector<8x8xf32>
    %49 = arith.addf %45, %48 : vector<8x8xf32>
    %cst_35 = arith.constant dense<0.000000e+00> : vector<8x8xf32>
    %50 = tpu.matmul %35, %42, %cst_35 {dimension_numbers = #tpu.dot_dimension_numbers<[1], [1], [0], [0], [0, 0, 1, 0], [], []>} : vector<8x8xf32>, vector<8x8xf32>, vector<8x8xf32> -> vector<8x8xf32>
    %cst_36 = arith.constant 0.353553385 : f32
    %51 = vector.broadcast %cst_36 : f32 to vector<8x8xf32>
    %52 = arith.mulf %50, %51 : vector<8x8xf32>
    %53 = vector.broadcast %27 : vector<1x8xf32> to vector<8x8xf32>
    %54 = arith.addf %52, %53 : vector<8x8xf32>
    %cst_37 = arith.constant dense<0xFF800000> : vector<8xf32>
    %55 = vector.multi_reduction <maximumf>, %54, %cst_37 [1] : vector<8x8xf32> to vector<8xf32>
    %56 = vector.shape_cast %55 : vector<8xf32> to vector<8x1xf32>
    %57 = vector.broadcast %56 : vector<8x1xf32> to vector<8x8xf32>
    %58 = arith.subf %54, %57 : vector<8x8xf32>
    %59 = math.exp %58 : vector<8x8xf32>
    %cst_38 = arith.constant dense<0.000000e+00> : vector<8xf32>
    %60 = vector.multi_reduction <add>, %59, %cst_38 [1] : vector<8x8xf32> to vector<8xf32>
    %61 = vector.shape_cast %60 : vector<8xf32> to vector<8x1xf32>
    %62 = tpu.reciprocal %61 {approx = true} : vector<8x1xf32> -> vector<8x1xf32>
    %63 = vector.broadcast %62 : vector<8x1xf32> to vector<8x8xf32>
    %64 = arith.mulf %59, %63 : vector<8x8xf32>
    %cst_39 = arith.constant dense<0.000000e+00> : vector<8x8xf32>
    %65 = tpu.matmul %64, %49, %cst_39 {dimension_numbers = #tpu.dot_dimension_numbers<[1], [0], [0], [1], [0, 0, 1, 1], [], []>} : vector<8x8xf32>, vector<8x8xf32>, vector<8x8xf32> -> vector<8x8xf32>
    %c0_40 = arith.constant 0 : index
    %c0_41 = arith.constant 0 : index
    %c0_42 = arith.constant 0 : index
    %66 = vector.load %arg11[%c0_40, %c0_41, %c0_42] : memref<8x8x32xf32, #tpu.memory_space<vmem>>, vector<1x8x32xf32>
    %67 = vector.shape_cast %66 : vector<1x8x32xf32> to vector<8x32xf32>
    %cst_43 = arith.constant dense<0.000000e+00> : vector<8x32xf32>
    %68 = tpu.matmul %65, %67, %cst_43 {dimension_numbers = #tpu.dot_dimension_numbers<[1], [0], [0], [1], [0, 0, 1, 1], [], []>} : vector<8x8xf32>, vector<8x32xf32>, vector<8x32xf32> -> vector<8x32xf32>
    %69 = arith.addf %28, %68 : vector<8x32xf32>
    %c1 = arith.constant 1 : index
    %c0_44 = arith.constant 0 : index
    %c0_45 = arith.constant 0 : index
    %70 = vector.load %arg5[%c1, %c0_44, %c0_45] : memref<8x32x8xf32, #tpu.memory_space<vmem>>, vector<1x32x8xf32>
    %71 = vector.shape_cast %70 : vector<1x32x8xf32> to vector<32x8xf32>
    %cst_46 = arith.constant dense<0.000000e+00> : vector<8x8xf32>
    %72 = tpu.matmul %25, %71, %cst_46 {dimension_numbers = #tpu.dot_dimension_numbers<[1], [0], [0], [1], [0, 0, 1, 1], [], []>} : vector<8x32xf32>, vector<32x8xf32>, vector<8x8xf32> -> vector<8x8xf32>
    %c1_47 = arith.constant 1 : index
    %c0_48 = arith.constant 0 : index
    %c0_49 = arith.constant 0 : index
    %73 = vector.load %arg6[%c1_47, %c0_48, %c0_49] : memref<8x1x8xf32, #tpu.memory_space<vmem>>, vector<1x1x8xf32>
    %74 = vector.shape_cast %73 : vector<1x1x8xf32> to vector<1x8xf32>
    %75 = vector.broadcast %74 : vector<1x8xf32> to vector<8x8xf32>
    %76 = arith.addf %72, %75 : vector<8x8xf32>
    %c1_50 = arith.constant 1 : index
    %c0_51 = arith.constant 0 : index
    %c0_52 = arith.constant 0 : index
    %77 = vector.load %arg7[%c1_50, %c0_51, %c0_52] : memref<8x32x8xf32, #tpu.memory_space<vmem>>, vector<1x32x8xf32>
    %78 = vector.shape_cast %77 : vector<1x32x8xf32> to vector<32x8xf32>
    %cst_53 = arith.constant dense<0.000000e+00> : vector<8x8xf32>
    %79 = tpu.matmul %25, %78, %cst_53 {dimension_numbers = #tpu.dot_dimension_numbers<[1], [0], [0], [1], [0, 0, 1, 1], [], []>} : vector<8x32xf32>, vector<32x8xf32>, vector<8x8xf32> -> vector<8x8xf32>
    %c1_54 = arith.constant 1 : index
    %c0_55 = arith.constant 0 : index
    %c0_56 = arith.constant 0 : index
    %80 = vector.load %arg8[%c1_54, %c0_55, %c0_56] : memref<8x1x8xf32, #tpu.memory_space<vmem>>, vector<1x1x8xf32>
    %81 = vector.shape_cast %80 : vector<1x1x8xf32> to vector<1x8xf32>
    %82 = vector.broadcast %81 : vector<1x8xf32> to vector<8x8xf32>
    %83 = arith.addf %79, %82 : vector<8x8xf32>
    %c1_57 = arith.constant 1 : index
    %c0_58 = arith.constant 0 : index
    %c0_59 = arith.constant 0 : index
    %84 = vector.load %arg9[%c1_57, %c0_58, %c0_59] : memref<8x32x8xf32, #tpu.memory_space<vmem>>, vector<1x32x8xf32>
    %85 = vector.shape_cast %84 : vector<1x32x8xf32> to vector<32x8xf32>
    %cst_60 = arith.constant dense<0.000000e+00> : vector<8x8xf32>
    %86 = tpu.matmul %25, %85, %cst_60 {dimension_numbers = #tpu.dot_dimension_numbers<[1], [0], [0], [1], [0, 0, 1, 1], [], []>} : vector<8x32xf32>, vector<32x8xf32>, vector<8x8xf32> -> vector<8x8xf32>
    %c1_61 = arith.constant 1 : index
    %c0_62 = arith.constant 0 : index
    %c0_63 = arith.constant 0 : index
    %87 = vector.load %arg10[%c1_61, %c0_62, %c0_63] : memref<8x1x8xf32, #tpu.memory_space<vmem>>, vector<1x1x8xf32>
    %88 = vector.shape_cast %87 : vector<1x1x8xf32> to vector<1x8xf32>
    %89 = vector.broadcast %88 : vector<1x8xf32> to vector<8x8xf32>
    %90 = arith.addf %86, %89 : vector<8x8xf32>
    %cst_64 = arith.constant dense<0.000000e+00> : vector<8x8xf32>
    %91 = tpu.matmul %76, %83, %cst_64 {dimension_numbers = #tpu.dot_dimension_numbers<[1], [1], [0], [0], [0, 0, 1, 0], [], []>} : vector<8x8xf32>, vector<8x8xf32>, vector<8x8xf32> -> vector<8x8xf32>
    %cst_65 = arith.constant 0.353553385 : f32
    %92 = vector.broadcast %cst_65 : f32 to vector<8x8xf32>
    %93 = arith.mulf %91, %92 : vector<8x8xf32>
    %94 = vector.broadcast %27 : vector<1x8xf32> to vector<8x8xf32>
    %95 = arith.addf %93, %94 : vector<8x8xf32>
    %cst_66 = arith.constant dense<0xFF800000> : vector<8xf32>
    %96 = vector.multi_reduction <maximumf>, %95, %cst_66 [1] : vector<8x8xf32> to vector<8xf32>
    %97 = vector.shape_cast %96 : vector<8xf32> to vector<8x1xf32>
    %98 = vector.broadcast %97 : vector<8x1xf32> to vector<8x8xf32>
    %99 = arith.subf %95, %98 : vector<8x8xf32>
    %100 = math.exp %99 : vector<8x8xf32>
    %cst_67 = arith.constant dense<0.000000e+00> : vector<8xf32>
    %101 = vector.multi_reduction <add>, %100, %cst_67 [1] : vector<8x8xf32> to vector<8xf32>
    %102 = vector.shape_cast %101 : vector<8xf32> to vector<8x1xf32>
    %103 = tpu.reciprocal %102 {approx = true} : vector<8x1xf32> -> vector<8x1xf32>
    %104 = vector.broadcast %103 : vector<8x1xf32> to vector<8x8xf32>
    %105 = arith.mulf %100, %104 : vector<8x8xf32>
    %cst_68 = arith.constant dense<0.000000e+00> : vector<8x8xf32>
    %106 = tpu.matmul %105, %90, %cst_68 {dimension_numbers = #tpu.dot_dimension_numbers<[1], [0], [0], [1], [0, 0, 1, 1], [], []>} : vector<8x8xf32>, vector<8x8xf32>, vector<8x8xf32> -> vector<8x8xf32>
    %c1_69 = arith.constant 1 : index
    %c0_70 = arith.constant 0 : index
    %c0_71 = arith.constant 0 : index
    %107 = vector.load %arg11[%c1_69, %c0_70, %c0_71] : memref<8x8x32xf32, #tpu.memory_space<vmem>>, vector<1x8x32xf32>
    %108 = vector.shape_cast %107 : vector<1x8x32xf32> to vector<8x32xf32>
    %cst_72 = arith.constant dense<0.000000e+00> : vector<8x32xf32>
    %109 = tpu.matmul %106, %108, %cst_72 {dimension_numbers = #tpu.dot_dimension_numbers<[1], [0], [0], [1], [0, 0, 1, 1], [], []>} : vector<8x8xf32>, vector<8x32xf32>, vector<8x32xf32> -> vector<8x32xf32>
    %110 = arith.addf %69, %109 : vector<8x32xf32>
    %c2 = arith.constant 2 : index
    %c0_73 = arith.constant 0 : index
    %c0_74 = arith.constant 0 : index
    %111 = vector.load %arg5[%c2, %c0_73, %c0_74] : memref<8x32x8xf32, #tpu.memory_space<vmem>>, vector<1x32x8xf32>
    %112 = vector.shape_cast %111 : vector<1x32x8xf32> to vector<32x8xf32>
    %cst_75 = arith.constant dense<0.000000e+00> : vector<8x8xf32>
    %113 = tpu.matmul %25, %112, %cst_75 {dimension_numbers = #tpu.dot_dimension_numbers<[1], [0], [0], [1], [0, 0, 1, 1], [], []>} : vector<8x32xf32>, vector<32x8xf32>, vector<8x8xf32> -> vector<8x8xf32>
    %c2_76 = arith.constant 2 : index
    %c0_77 = arith.constant 0 : index
    %c0_78 = arith.constant 0 : index
    %114 = vector.load %arg6[%c2_76, %c0_77, %c0_78] : memref<8x1x8xf32, #tpu.memory_space<vmem>>, vector<1x1x8xf32>
    %115 = vector.shape_cast %114 : vector<1x1x8xf32> to vector<1x8xf32>
    %116 = vector.broadcast %115 : vector<1x8xf32> to vector<8x8xf32>
    %117 = arith.addf %113, %116 : vector<8x8xf32>
    %c2_79 = arith.constant 2 : index
    %c0_80 = arith.constant 0 : index
    %c0_81 = arith.constant 0 : index
    %118 = vector.load %arg7[%c2_79, %c0_80, %c0_81] : memref<8x32x8xf32, #tpu.memory_space<vmem>>, vector<1x32x8xf32>
    %119 = vector.shape_cast %118 : vector<1x32x8xf32> to vector<32x8xf32>
    %cst_82 = arith.constant dense<0.000000e+00> : vector<8x8xf32>
    %120 = tpu.matmul %25, %119, %cst_82 {dimension_numbers = #tpu.dot_dimension_numbers<[1], [0], [0], [1], [0, 0, 1, 1], [], []>} : vector<8x32xf32>, vector<32x8xf32>, vector<8x8xf32> -> vector<8x8xf32>
    %c2_83 = arith.constant 2 : index
    %c0_84 = arith.constant 0 : index
    %c0_85 = arith.constant 0 : index
    %121 = vector.load %arg8[%c2_83, %c0_84, %c0_85] : memref<8x1x8xf32, #tpu.memory_space<vmem>>, vector<1x1x8xf32>
    %122 = vector.shape_cast %121 : vector<1x1x8xf32> to vector<1x8xf32>
    %123 = vector.broadcast %122 : vector<1x8xf32> to vector<8x8xf32>
    %124 = arith.addf %120, %123 : vector<8x8xf32>
    %c2_86 = arith.constant 2 : index
    %c0_87 = arith.constant 0 : index
    %c0_88 = arith.constant 0 : index
    %125 = vector.load %arg9[%c2_86, %c0_87, %c0_88] : memref<8x32x8xf32, #tpu.memory_space<vmem>>, vector<1x32x8xf32>
    %126 = vector.shape_cast %125 : vector<1x32x8xf32> to vector<32x8xf32>
    %cst_89 = arith.constant dense<0.000000e+00> : vector<8x8xf32>
    %127 = tpu.matmul %25, %126, %cst_89 {dimension_numbers = #tpu.dot_dimension_numbers<[1], [0], [0], [1], [0, 0, 1, 1], [], []>} : vector<8x32xf32>, vector<32x8xf32>, vector<8x8xf32> -> vector<8x8xf32>
    %c2_90 = arith.constant 2 : index
    %c0_91 = arith.constant 0 : index
    %c0_92 = arith.constant 0 : index
    %128 = vector.load %arg10[%c2_90, %c0_91, %c0_92] : memref<8x1x8xf32, #tpu.memory_space<vmem>>, vector<1x1x8xf32>
    %129 = vector.shape_cast %128 : vector<1x1x8xf32> to vector<1x8xf32>
    %130 = vector.broadcast %129 : vector<1x8xf32> to vector<8x8xf32>
    %131 = arith.addf %127, %130 : vector<8x8xf32>
    %cst_93 = arith.constant dense<0.000000e+00> : vector<8x8xf32>
    %132 = tpu.matmul %117, %124, %cst_93 {dimension_numbers = #tpu.dot_dimension_numbers<[1], [1], [0], [0], [0, 0, 1, 0], [], []>} : vector<8x8xf32>, vector<8x8xf32>, vector<8x8xf32> -> vector<8x8xf32>
    %cst_94 = arith.constant 0.353553385 : f32
    %133 = vector.broadcast %cst_94 : f32 to vector<8x8xf32>
    %134 = arith.mulf %132, %133 : vector<8x8xf32>
    %135 = vector.broadcast %27 : vector<1x8xf32> to vector<8x8xf32>
    %136 = arith.addf %134, %135 : vector<8x8xf32>
    %cst_95 = arith.constant dense<0xFF800000> : vector<8xf32>
    %137 = vector.multi_reduction <maximumf>, %136, %cst_95 [1] : vector<8x8xf32> to vector<8xf32>
    %138 = vector.shape_cast %137 : vector<8xf32> to vector<8x1xf32>
    %139 = vector.broadcast %138 : vector<8x1xf32> to vector<8x8xf32>
    %140 = arith.subf %136, %139 : vector<8x8xf32>
    %141 = math.exp %140 : vector<8x8xf32>
    %cst_96 = arith.constant dense<0.000000e+00> : vector<8xf32>
    %142 = vector.multi_reduction <add>, %141, %cst_96 [1] : vector<8x8xf32> to vector<8xf32>
    %143 = vector.shape_cast %142 : vector<8xf32> to vector<8x1xf32>
    %144 = tpu.reciprocal %143 {approx = true} : vector<8x1xf32> -> vector<8x1xf32>
    %145 = vector.broadcast %144 : vector<8x1xf32> to vector<8x8xf32>
    %146 = arith.mulf %141, %145 : vector<8x8xf32>
    %cst_97 = arith.constant dense<0.000000e+00> : vector<8x8xf32>
    %147 = tpu.matmul %146, %131, %cst_97 {dimension_numbers = #tpu.dot_dimension_numbers<[1], [0], [0], [1], [0, 0, 1, 1], [], []>} : vector<8x8xf32>, vector<8x8xf32>, vector<8x8xf32> -> vector<8x8xf32>
    %c2_98 = arith.constant 2 : index
    %c0_99 = arith.constant 0 : index
    %c0_100 = arith.constant 0 : index
    %148 = vector.load %arg11[%c2_98, %c0_99, %c0_100] : memref<8x8x32xf32, #tpu.memory_space<vmem>>, vector<1x8x32xf32>
    %149 = vector.shape_cast %148 : vector<1x8x32xf32> to vector<8x32xf32>
    %cst_101 = arith.constant dense<0.000000e+00> : vector<8x32xf32>
    %150 = tpu.matmul %147, %149, %cst_101 {dimension_numbers = #tpu.dot_dimension_numbers<[1], [0], [0], [1], [0, 0, 1, 1], [], []>} : vector<8x8xf32>, vector<8x32xf32>, vector<8x32xf32> -> vector<8x32xf32>
    %151 = arith.addf %110, %150 : vector<8x32xf32>
    %c3 = arith.constant 3 : index
    %c0_102 = arith.constant 0 : index
    %c0_103 = arith.constant 0 : index
    %152 = vector.load %arg5[%c3, %c0_102, %c0_103] : memref<8x32x8xf32, #tpu.memory_space<vmem>>, vector<1x32x8xf32>
    %153 = vector.shape_cast %152 : vector<1x32x8xf32> to vector<32x8xf32>
    %cst_104 = arith.constant dense<0.000000e+00> : vector<8x8xf32>
    %154 = tpu.matmul %25, %153, %cst_104 {dimension_numbers = #tpu.dot_dimension_numbers<[1], [0], [0], [1], [0, 0, 1, 1], [], []>} : vector<8x32xf32>, vector<32x8xf32>, vector<8x8xf32> -> vector<8x8xf32>
    %c3_105 = arith.constant 3 : index
    %c0_106 = arith.constant 0 : index
    %c0_107 = arith.constant 0 : index
    %155 = vector.load %arg6[%c3_105, %c0_106, %c0_107] : memref<8x1x8xf32, #tpu.memory_space<vmem>>, vector<1x1x8xf32>
    %156 = vector.shape_cast %155 : vector<1x1x8xf32> to vector<1x8xf32>
    %157 = vector.broadcast %156 : vector<1x8xf32> to vector<8x8xf32>
    %158 = arith.addf %154, %157 : vector<8x8xf32>
    %c3_108 = arith.constant 3 : index
    %c0_109 = arith.constant 0 : index
    %c0_110 = arith.constant 0 : index
    %159 = vector.load %arg7[%c3_108, %c0_109, %c0_110] : memref<8x32x8xf32, #tpu.memory_space<vmem>>, vector<1x32x8xf32>
    %160 = vector.shape_cast %159 : vector<1x32x8xf32> to vector<32x8xf32>
    %cst_111 = arith.constant dense<0.000000e+00> : vector<8x8xf32>
    %161 = tpu.matmul %25, %160, %cst_111 {dimension_numbers = #tpu.dot_dimension_numbers<[1], [0], [0], [1], [0, 0, 1, 1], [], []>} : vector<8x32xf32>, vector<32x8xf32>, vector<8x8xf32> -> vector<8x8xf32>
    %c3_112 = arith.constant 3 : index
    %c0_113 = arith.constant 0 : index
    %c0_114 = arith.constant 0 : index
    %162 = vector.load %arg8[%c3_112, %c0_113, %c0_114] : memref<8x1x8xf32, #tpu.memory_space<vmem>>, vector<1x1x8xf32>
    %163 = vector.shape_cast %162 : vector<1x1x8xf32> to vector<1x8xf32>
    %164 = vector.broadcast %163 : vector<1x8xf32> to vector<8x8xf32>
    %165 = arith.addf %161, %164 : vector<8x8xf32>
    %c3_115 = arith.constant 3 : index
    %c0_116 = arith.constant 0 : index
    %c0_117 = arith.constant 0 : index
    %166 = vector.load %arg9[%c3_115, %c0_116, %c0_117] : memref<8x32x8xf32, #tpu.memory_space<vmem>>, vector<1x32x8xf32>
    %167 = vector.shape_cast %166 : vector<1x32x8xf32> to vector<32x8xf32>
    %cst_118 = arith.constant dense<0.000000e+00> : vector<8x8xf32>
    %168 = tpu.matmul %25, %167, %cst_118 {dimension_numbers = #tpu.dot_dimension_numbers<[1], [0], [0], [1], [0, 0, 1, 1], [], []>} : vector<8x32xf32>, vector<32x8xf32>, vector<8x8xf32> -> vector<8x8xf32>
    %c3_119 = arith.constant 3 : index
    %c0_120 = arith.constant 0 : index
    %c0_121 = arith.constant 0 : index
    %169 = vector.load %arg10[%c3_119, %c0_120, %c0_121] : memref<8x1x8xf32, #tpu.memory_space<vmem>>, vector<1x1x8xf32>
    %170 = vector.shape_cast %169 : vector<1x1x8xf32> to vector<1x8xf32>
    %171 = vector.broadcast %170 : vector<1x8xf32> to vector<8x8xf32>
    %172 = arith.addf %168, %171 : vector<8x8xf32>
    %cst_122 = arith.constant dense<0.000000e+00> : vector<8x8xf32>
    %173 = tpu.matmul %158, %165, %cst_122 {dimension_numbers = #tpu.dot_dimension_numbers<[1], [1], [0], [0], [0, 0, 1, 0], [], []>} : vector<8x8xf32>, vector<8x8xf32>, vector<8x8xf32> -> vector<8x8xf32>
    %cst_123 = arith.constant 0.353553385 : f32
    %174 = vector.broadcast %cst_123 : f32 to vector<8x8xf32>
    %175 = arith.mulf %173, %174 : vector<8x8xf32>
    %176 = vector.broadcast %27 : vector<1x8xf32> to vector<8x8xf32>
    %177 = arith.addf %175, %176 : vector<8x8xf32>
    %cst_124 = arith.constant dense<0xFF800000> : vector<8xf32>
    %178 = vector.multi_reduction <maximumf>, %177, %cst_124 [1] : vector<8x8xf32> to vector<8xf32>
    %179 = vector.shape_cast %178 : vector<8xf32> to vector<8x1xf32>
    %180 = vector.broadcast %179 : vector<8x1xf32> to vector<8x8xf32>
    %181 = arith.subf %177, %180 : vector<8x8xf32>
    %182 = math.exp %181 : vector<8x8xf32>
    %cst_125 = arith.constant dense<0.000000e+00> : vector<8xf32>
    %183 = vector.multi_reduction <add>, %182, %cst_125 [1] : vector<8x8xf32> to vector<8xf32>
    %184 = vector.shape_cast %183 : vector<8xf32> to vector<8x1xf32>
    %185 = tpu.reciprocal %184 {approx = true} : vector<8x1xf32> -> vector<8x1xf32>
    %186 = vector.broadcast %185 : vector<8x1xf32> to vector<8x8xf32>
    %187 = arith.mulf %182, %186 : vector<8x8xf32>
    %cst_126 = arith.constant dense<0.000000e+00> : vector<8x8xf32>
    %188 = tpu.matmul %187, %172, %cst_126 {dimension_numbers = #tpu.dot_dimension_numbers<[1], [0], [0], [1], [0, 0, 1, 1], [], []>} : vector<8x8xf32>, vector<8x8xf32>, vector<8x8xf32> -> vector<8x8xf32>
    %c3_127 = arith.constant 3 : index
    %c0_128 = arith.constant 0 : index
    %c0_129 = arith.constant 0 : index
    %189 = vector.load %arg11[%c3_127, %c0_128, %c0_129] : memref<8x8x32xf32, #tpu.memory_space<vmem>>, vector<1x8x32xf32>
    %190 = vector.shape_cast %189 : vector<1x8x32xf32> to vector<8x32xf32>
    %cst_130 = arith.constant dense<0.000000e+00> : vector<8x32xf32>
    %191 = tpu.matmul %188, %190, %cst_130 {dimension_numbers = #tpu.dot_dimension_numbers<[1], [0], [0], [1], [0, 0, 1, 1], [], []>} : vector<8x8xf32>, vector<8x32xf32>, vector<8x32xf32> -> vector<8x32xf32>
    %192 = arith.addf %151, %191 : vector<8x32xf32>
    %c0_131 = arith.constant 0 : index
    %c0_132 = arith.constant 0 : index
    %c0_133 = arith.constant 0 : index
    %193 = vector.load %arg12[%c0_131, %c0_132, %c0_133] : memref<2x1x32xf32, #tpu.memory_space<vmem>>, vector<1x1x32xf32>
    %194 = vector.shape_cast %193 : vector<1x1x32xf32> to vector<1x32xf32>
    %195 = vector.broadcast %194 : vector<1x32xf32> to vector<8x32xf32>
    %196 = arith.addf %192, %195 : vector<8x32xf32>
    %197 = arith.addf %25, %196 : vector<8x32xf32>
    %c0_134 = arith.constant 0 : index
    %c0_135 = arith.constant 0 : index
    %c0_136 = arith.constant 0 : index
    %198 = vector.load %arg13[%c0_134, %c0_135, %c0_136] : memref<2x1x32xf32, #tpu.memory_space<vmem>>, vector<1x1x32xf32>
    %199 = vector.shape_cast %198 : vector<1x1x32xf32> to vector<1x32xf32>
    %c0_137 = arith.constant 0 : index
    %c0_138 = arith.constant 0 : index
    %c0_139 = arith.constant 0 : index
    %200 = vector.load %arg14[%c0_137, %c0_138, %c0_139] : memref<2x1x32xf32, #tpu.memory_space<vmem>>, vector<1x1x32xf32>
    %201 = vector.shape_cast %200 : vector<1x1x32xf32> to vector<1x32xf32>
    %cst_140 = arith.constant dense<0.000000e+00> : vector<8xf32>
    %202 = vector.multi_reduction <add>, %197, %cst_140 [1] : vector<8x32xf32> to vector<8xf32>
    %203 = vector.shape_cast %202 : vector<8xf32> to vector<8x1xf32>
    %cst_141 = arith.constant 3.200000e+01 : f32
    %204 = vector.broadcast %cst_141 : f32 to vector<8x1xf32>
    %205 = arith.divf %203, %204 : vector<8x1xf32>
    %206 = vector.broadcast %205 : vector<8x1xf32> to vector<8x32xf32>
    %207 = arith.subf %197, %206 : vector<8x32xf32>
    %208 = arith.mulf %207, %207 : vector<8x32xf32>
    %cst_142 = arith.constant dense<0.000000e+00> : vector<8xf32>
    %209 = vector.multi_reduction <add>, %208, %cst_142 [1] : vector<8x32xf32> to vector<8xf32>
    %210 = vector.shape_cast %209 : vector<8xf32> to vector<8x1xf32>
    %cst_143 = arith.constant 3.200000e+01 : f32
    %211 = vector.broadcast %cst_143 : f32 to vector<8x1xf32>
    %212 = arith.divf %210, %211 : vector<8x1xf32>
    %213 = vector.broadcast %205 : vector<8x1xf32> to vector<8x32xf32>
    %214 = arith.subf %197, %213 : vector<8x32xf32>
    %cst_144 = arith.constant 9.99999996E-13 : f32
    %215 = vector.broadcast %cst_144 : f32 to vector<8x1xf32>
    %216 = arith.addf %212, %215 : vector<8x1xf32>
    %217 = math.rsqrt %216 : vector<8x1xf32>
    %218 = vector.broadcast %217 : vector<8x1xf32> to vector<8x32xf32>
    %219 = arith.mulf %214, %218 : vector<8x32xf32>
    %220 = vector.broadcast %199 : vector<1x32xf32> to vector<8x32xf32>
    %221 = arith.mulf %219, %220 : vector<8x32xf32>
    %222 = vector.broadcast %201 : vector<1x32xf32> to vector<8x32xf32>
    %223 = arith.addf %221, %222 : vector<8x32xf32>
    %c0_145 = arith.constant 0 : index
    %c0_146 = arith.constant 0 : index
    %c0_147 = arith.constant 0 : index
    %224 = vector.load %arg15[%c0_145, %c0_146, %c0_147] : memref<2x32x64xf32, #tpu.memory_space<vmem>>, vector<1x32x64xf32>
    %225 = vector.shape_cast %224 : vector<1x32x64xf32> to vector<32x64xf32>
    %cst_148 = arith.constant dense<0.000000e+00> : vector<8x64xf32>
    %226 = tpu.matmul %223, %225, %cst_148 {dimension_numbers = #tpu.dot_dimension_numbers<[1], [0], [0], [1], [0, 0, 1, 1], [], []>} : vector<8x32xf32>, vector<32x64xf32>, vector<8x64xf32> -> vector<8x64xf32>
    %c0_149 = arith.constant 0 : index
    %c0_150 = arith.constant 0 : index
    %c0_151 = arith.constant 0 : index
    %227 = vector.load %arg16[%c0_149, %c0_150, %c0_151] : memref<2x1x64xf32, #tpu.memory_space<vmem>>, vector<1x1x64xf32>
    %228 = vector.shape_cast %227 : vector<1x1x64xf32> to vector<1x64xf32>
    %229 = vector.broadcast %228 : vector<1x64xf32> to vector<8x64xf32>
    %230 = arith.addf %226, %229 : vector<8x64xf32>
    %231 = arith.mulf %230, %230 : vector<8x64xf32>
    %232 = arith.mulf %230, %231 : vector<8x64xf32>
    %cst_152 = arith.constant 4.471500e-02 : f32
    %233 = vector.broadcast %cst_152 : f32 to vector<8x64xf32>
    %234 = arith.mulf %233, %232 : vector<8x64xf32>
    %235 = arith.addf %230, %234 : vector<8x64xf32>
    %cst_153 = arith.constant 0.797884583 : f32
    %236 = vector.broadcast %cst_153 : f32 to vector<8x64xf32>
    %237 = arith.mulf %236, %235 : vector<8x64xf32>
    %238 = math.tanh %237 : vector<8x64xf32>
    %cst_154 = arith.constant 1.000000e+00 : f32
    %239 = vector.broadcast %cst_154 : f32 to vector<8x64xf32>
    %240 = arith.addf %239, %238 : vector<8x64xf32>
    %cst_155 = arith.constant 5.000000e-01 : f32
    %241 = vector.broadcast %cst_155 : f32 to vector<8x64xf32>
    %242 = arith.mulf %241, %240 : vector<8x64xf32>
    %243 = arith.mulf %230, %242 : vector<8x64xf32>
    %c0_156 = arith.constant 0 : index
    %c0_157 = arith.constant 0 : index
    %c0_158 = arith.constant 0 : index
    %244 = vector.load %arg17[%c0_156, %c0_157, %c0_158] : memref<2x64x32xf32, #tpu.memory_space<vmem>>, vector<1x64x32xf32>
    %245 = vector.shape_cast %244 : vector<1x64x32xf32> to vector<64x32xf32>
    %cst_159 = arith.constant dense<0.000000e+00> : vector<8x32xf32>
    %246 = tpu.matmul %243, %245, %cst_159 {dimension_numbers = #tpu.dot_dimension_numbers<[1], [0], [0], [1], [0, 0, 1, 1], [], []>} : vector<8x64xf32>, vector<64x32xf32>, vector<8x32xf32> -> vector<8x32xf32>
    %c0_160 = arith.constant 0 : index
    %c0_161 = arith.constant 0 : index
    %c0_162 = arith.constant 0 : index
    %247 = vector.load %arg18[%c0_160, %c0_161, %c0_162] : memref<2x1x32xf32, #tpu.memory_space<vmem>>, vector<1x1x32xf32>
    %248 = vector.shape_cast %247 : vector<1x1x32xf32> to vector<1x32xf32>
    %249 = vector.broadcast %248 : vector<1x32xf32> to vector<8x32xf32>
    %250 = arith.addf %246, %249 : vector<8x32xf32>
    %251 = arith.addf %223, %250 : vector<8x32xf32>
    %c0_163 = arith.constant 0 : index
    %c0_164 = arith.constant 0 : index
    %c0_165 = arith.constant 0 : index
    %252 = vector.load %arg19[%c0_163, %c0_164, %c0_165] : memref<2x1x32xf32, #tpu.memory_space<vmem>>, vector<1x1x32xf32>
    %253 = vector.shape_cast %252 : vector<1x1x32xf32> to vector<1x32xf32>
    %c0_166 = arith.constant 0 : index
    %c0_167 = arith.constant 0 : index
    %c0_168 = arith.constant 0 : index
    %254 = vector.load %arg20[%c0_166, %c0_167, %c0_168] : memref<2x1x32xf32, #tpu.memory_space<vmem>>, vector<1x1x32xf32>
    %255 = vector.shape_cast %254 : vector<1x1x32xf32> to vector<1x32xf32>
    %cst_169 = arith.constant dense<0.000000e+00> : vector<8xf32>
    %256 = vector.multi_reduction <add>, %251, %cst_169 [1] : vector<8x32xf32> to vector<8xf32>
    %257 = vector.shape_cast %256 : vector<8xf32> to vector<8x1xf32>
    %cst_170 = arith.constant 3.200000e+01 : f32
    %258 = vector.broadcast %cst_170 : f32 to vector<8x1xf32>
    %259 = arith.divf %257, %258 : vector<8x1xf32>
    %260 = vector.broadcast %259 : vector<8x1xf32> to vector<8x32xf32>
    %261 = arith.subf %251, %260 : vector<8x32xf32>
    %262 = arith.mulf %261, %261 : vector<8x32xf32>
    %cst_171 = arith.constant dense<0.000000e+00> : vector<8xf32>
    %263 = vector.multi_reduction <add>, %262, %cst_171 [1] : vector<8x32xf32> to vector<8xf32>
    %264 = vector.shape_cast %263 : vector<8xf32> to vector<8x1xf32>
    %cst_172 = arith.constant 3.200000e+01 : f32
    %265 = vector.broadcast %cst_172 : f32 to vector<8x1xf32>
    %266 = arith.divf %264, %265 : vector<8x1xf32>
    %267 = vector.broadcast %259 : vector<8x1xf32> to vector<8x32xf32>
    %268 = arith.subf %251, %267 : vector<8x32xf32>
    %cst_173 = arith.constant 9.99999996E-13 : f32
    %269 = vector.broadcast %cst_173 : f32 to vector<8x1xf32>
    %270 = arith.addf %266, %269 : vector<8x1xf32>
    %271 = math.rsqrt %270 : vector<8x1xf32>
    %272 = vector.broadcast %271 : vector<8x1xf32> to vector<8x32xf32>
    %273 = arith.mulf %268, %272 : vector<8x32xf32>
    %274 = vector.broadcast %253 : vector<1x32xf32> to vector<8x32xf32>
    %275 = arith.mulf %273, %274 : vector<8x32xf32>
    %276 = vector.broadcast %255 : vector<1x32xf32> to vector<8x32xf32>
    %277 = arith.addf %275, %276 : vector<8x32xf32>
    %cst_174 = arith.constant 0.000000e+00 : f32
    %278 = vector.broadcast %cst_174 : f32 to vector<8x32xf32>
    %c4 = arith.constant 4 : index
    %c0_175 = arith.constant 0 : index
    %c0_176 = arith.constant 0 : index
    %279 = vector.load %arg5[%c4, %c0_175, %c0_176] : memref<8x32x8xf32, #tpu.memory_space<vmem>>, vector<1x32x8xf32>
    %280 = vector.shape_cast %279 : vector<1x32x8xf32> to vector<32x8xf32>
    %cst_177 = arith.constant dense<0.000000e+00> : vector<8x8xf32>
    %281 = tpu.matmul %277, %280, %cst_177 {dimension_numbers = #tpu.dot_dimension_numbers<[1], [0], [0], [1], [0, 0, 1, 1], [], []>} : vector<8x32xf32>, vector<32x8xf32>, vector<8x8xf32> -> vector<8x8xf32>
    %c4_178 = arith.constant 4 : index
    %c0_179 = arith.constant 0 : index
    %c0_180 = arith.constant 0 : index
    %282 = vector.load %arg6[%c4_178, %c0_179, %c0_180] : memref<8x1x8xf32, #tpu.memory_space<vmem>>, vector<1x1x8xf32>
    %283 = vector.shape_cast %282 : vector<1x1x8xf32> to vector<1x8xf32>
    %284 = vector.broadcast %283 : vector<1x8xf32> to vector<8x8xf32>
    %285 = arith.addf %281, %284 : vector<8x8xf32>
    %c4_181 = arith.constant 4 : index
    %c0_182 = arith.constant 0 : index
    %c0_183 = arith.constant 0 : index
    %286 = vector.load %arg7[%c4_181, %c0_182, %c0_183] : memref<8x32x8xf32, #tpu.memory_space<vmem>>, vector<1x32x8xf32>
    %287 = vector.shape_cast %286 : vector<1x32x8xf32> to vector<32x8xf32>
    %cst_184 = arith.constant dense<0.000000e+00> : vector<8x8xf32>
    %288 = tpu.matmul %277, %287, %cst_184 {dimension_numbers = #tpu.dot_dimension_numbers<[1], [0], [0], [1], [0, 0, 1, 1], [], []>} : vector<8x32xf32>, vector<32x8xf32>, vector<8x8xf32> -> vector<8x8xf32>
    %c4_185 = arith.constant 4 : index
    %c0_186 = arith.constant 0 : index
    %c0_187 = arith.constant 0 : index
    %289 = vector.load %arg8[%c4_185, %c0_186, %c0_187] : memref<8x1x8xf32, #tpu.memory_space<vmem>>, vector<1x1x8xf32>
    %290 = vector.shape_cast %289 : vector<1x1x8xf32> to vector<1x8xf32>
    %291 = vector.broadcast %290 : vector<1x8xf32> to vector<8x8xf32>
    %292 = arith.addf %288, %291 : vector<8x8xf32>
    %c4_188 = arith.constant 4 : index
    %c0_189 = arith.constant 0 : index
    %c0_190 = arith.constant 0 : index
    %293 = vector.load %arg9[%c4_188, %c0_189, %c0_190] : memref<8x32x8xf32, #tpu.memory_space<vmem>>, vector<1x32x8xf32>
    %294 = vector.shape_cast %293 : vector<1x32x8xf32> to vector<32x8xf32>
    %cst_191 = arith.constant dense<0.000000e+00> : vector<8x8xf32>
    %295 = tpu.matmul %277, %294, %cst_191 {dimension_numbers = #tpu.dot_dimension_numbers<[1], [0], [0], [1], [0, 0, 1, 1], [], []>} : vector<8x32xf32>, vector<32x8xf32>, vector<8x8xf32> -> vector<8x8xf32>
    %c4_192 = arith.constant 4 : index
    %c0_193 = arith.constant 0 : index
    %c0_194 = arith.constant 0 : index
    %296 = vector.load %arg10[%c4_192, %c0_193, %c0_194] : memref<8x1x8xf32, #tpu.memory_space<vmem>>, vector<1x1x8xf32>
    %297 = vector.shape_cast %296 : vector<1x1x8xf32> to vector<1x8xf32>
    %298 = vector.broadcast %297 : vector<1x8xf32> to vector<8x8xf32>
    %299 = arith.addf %295, %298 : vector<8x8xf32>
    %cst_195 = arith.constant dense<0.000000e+00> : vector<8x8xf32>
    %300 = tpu.matmul %285, %292, %cst_195 {dimension_numbers = #tpu.dot_dimension_numbers<[1], [1], [0], [0], [0, 0, 1, 0], [], []>} : vector<8x8xf32>, vector<8x8xf32>, vector<8x8xf32> -> vector<8x8xf32>
    %cst_196 = arith.constant 0.353553385 : f32
    %301 = vector.broadcast %cst_196 : f32 to vector<8x8xf32>
    %302 = arith.mulf %300, %301 : vector<8x8xf32>
    %303 = vector.broadcast %27 : vector<1x8xf32> to vector<8x8xf32>
    %304 = arith.addf %302, %303 : vector<8x8xf32>
    %cst_197 = arith.constant dense<0xFF800000> : vector<8xf32>
    %305 = vector.multi_reduction <maximumf>, %304, %cst_197 [1] : vector<8x8xf32> to vector<8xf32>
    %306 = vector.shape_cast %305 : vector<8xf32> to vector<8x1xf32>
    %307 = vector.broadcast %306 : vector<8x1xf32> to vector<8x8xf32>
    %308 = arith.subf %304, %307 : vector<8x8xf32>
    %309 = math.exp %308 : vector<8x8xf32>
    %cst_198 = arith.constant dense<0.000000e+00> : vector<8xf32>
    %310 = vector.multi_reduction <add>, %309, %cst_198 [1] : vector<8x8xf32> to vector<8xf32>
    %311 = vector.shape_cast %310 : vector<8xf32> to vector<8x1xf32>
    %312 = tpu.reciprocal %311 {approx = true} : vector<8x1xf32> -> vector<8x1xf32>
    %313 = vector.broadcast %312 : vector<8x1xf32> to vector<8x8xf32>
    %314 = arith.mulf %309, %313 : vector<8x8xf32>
    %cst_199 = arith.constant dense<0.000000e+00> : vector<8x8xf32>
    %315 = tpu.matmul %314, %299, %cst_199 {dimension_numbers = #tpu.dot_dimension_numbers<[1], [0], [0], [1], [0, 0, 1, 1], [], []>} : vector<8x8xf32>, vector<8x8xf32>, vector<8x8xf32> -> vector<8x8xf32>
    %c4_200 = arith.constant 4 : index
    %c0_201 = arith.constant 0 : index
    %c0_202 = arith.constant 0 : index
    %316 = vector.load %arg11[%c4_200, %c0_201, %c0_202] : memref<8x8x32xf32, #tpu.memory_space<vmem>>, vector<1x8x32xf32>
    %317 = vector.shape_cast %316 : vector<1x8x32xf32> to vector<8x32xf32>
    %cst_203 = arith.constant dense<0.000000e+00> : vector<8x32xf32>
    %318 = tpu.matmul %315, %317, %cst_203 {dimension_numbers = #tpu.dot_dimension_numbers<[1], [0], [0], [1], [0, 0, 1, 1], [], []>} : vector<8x8xf32>, vector<8x32xf32>, vector<8x32xf32> -> vector<8x32xf32>
    %319 = arith.addf %278, %318 : vector<8x32xf32>
    %c5 = arith.constant 5 : index
    %c0_204 = arith.constant 0 : index
    %c0_205 = arith.constant 0 : index
    %320 = vector.load %arg5[%c5, %c0_204, %c0_205] : memref<8x32x8xf32, #tpu.memory_space<vmem>>, vector<1x32x8xf32>
    %321 = vector.shape_cast %320 : vector<1x32x8xf32> to vector<32x8xf32>
    %cst_206 = arith.constant dense<0.000000e+00> : vector<8x8xf32>
    %322 = tpu.matmul %277, %321, %cst_206 {dimension_numbers = #tpu.dot_dimension_numbers<[1], [0], [0], [1], [0, 0, 1, 1], [], []>} : vector<8x32xf32>, vector<32x8xf32>, vector<8x8xf32> -> vector<8x8xf32>
    %c5_207 = arith.constant 5 : index
    %c0_208 = arith.constant 0 : index
    %c0_209 = arith.constant 0 : index
    %323 = vector.load %arg6[%c5_207, %c0_208, %c0_209] : memref<8x1x8xf32, #tpu.memory_space<vmem>>, vector<1x1x8xf32>
    %324 = vector.shape_cast %323 : vector<1x1x8xf32> to vector<1x8xf32>
    %325 = vector.broadcast %324 : vector<1x8xf32> to vector<8x8xf32>
    %326 = arith.addf %322, %325 : vector<8x8xf32>
    %c5_210 = arith.constant 5 : index
    %c0_211 = arith.constant 0 : index
    %c0_212 = arith.constant 0 : index
    %327 = vector.load %arg7[%c5_210, %c0_211, %c0_212] : memref<8x32x8xf32, #tpu.memory_space<vmem>>, vector<1x32x8xf32>
    %328 = vector.shape_cast %327 : vector<1x32x8xf32> to vector<32x8xf32>
    %cst_213 = arith.constant dense<0.000000e+00> : vector<8x8xf32>
    %329 = tpu.matmul %277, %328, %cst_213 {dimension_numbers = #tpu.dot_dimension_numbers<[1], [0], [0], [1], [0, 0, 1, 1], [], []>} : vector<8x32xf32>, vector<32x8xf32>, vector<8x8xf32> -> vector<8x8xf32>
    %c5_214 = arith.constant 5 : index
    %c0_215 = arith.constant 0 : index
    %c0_216 = arith.constant 0 : index
    %330 = vector.load %arg8[%c5_214, %c0_215, %c0_216] : memref<8x1x8xf32, #tpu.memory_space<vmem>>, vector<1x1x8xf32>
    %331 = vector.shape_cast %330 : vector<1x1x8xf32> to vector<1x8xf32>
    %332 = vector.broadcast %331 : vector<1x8xf32> to vector<8x8xf32>
    %333 = arith.addf %329, %332 : vector<8x8xf32>
    %c5_217 = arith.constant 5 : index
    %c0_218 = arith.constant 0 : index
    %c0_219 = arith.constant 0 : index
    %334 = vector.load %arg9[%c5_217, %c0_218, %c0_219] : memref<8x32x8xf32, #tpu.memory_space<vmem>>, vector<1x32x8xf32>
    %335 = vector.shape_cast %334 : vector<1x32x8xf32> to vector<32x8xf32>
    %cst_220 = arith.constant dense<0.000000e+00> : vector<8x8xf32>
    %336 = tpu.matmul %277, %335, %cst_220 {dimension_numbers = #tpu.dot_dimension_numbers<[1], [0], [0], [1], [0, 0, 1, 1], [], []>} : vector<8x32xf32>, vector<32x8xf32>, vector<8x8xf32> -> vector<8x8xf32>
    %c5_221 = arith.constant 5 : index
    %c0_222 = arith.constant 0 : index
    %c0_223 = arith.constant 0 : index
    %337 = vector.load %arg10[%c5_221, %c0_222, %c0_223] : memref<8x1x8xf32, #tpu.memory_space<vmem>>, vector<1x1x8xf32>
    %338 = vector.shape_cast %337 : vector<1x1x8xf32> to vector<1x8xf32>
    %339 = vector.broadcast %338 : vector<1x8xf32> to vector<8x8xf32>
    %340 = arith.addf %336, %339 : vector<8x8xf32>
    %cst_224 = arith.constant dense<0.000000e+00> : vector<8x8xf32>
    %341 = tpu.matmul %326, %333, %cst_224 {dimension_numbers = #tpu.dot_dimension_numbers<[1], [1], [0], [0], [0, 0, 1, 0], [], []>} : vector<8x8xf32>, vector<8x8xf32>, vector<8x8xf32> -> vector<8x8xf32>
    %cst_225 = arith.constant 0.353553385 : f32
    %342 = vector.broadcast %cst_225 : f32 to vector<8x8xf32>
    %343 = arith.mulf %341, %342 : vector<8x8xf32>
    %344 = vector.broadcast %27 : vector<1x8xf32> to vector<8x8xf32>
    %345 = arith.addf %343, %344 : vector<8x8xf32>
    %cst_226 = arith.constant dense<0xFF800000> : vector<8xf32>
    %346 = vector.multi_reduction <maximumf>, %345, %cst_226 [1] : vector<8x8xf32> to vector<8xf32>
    %347 = vector.shape_cast %346 : vector<8xf32> to vector<8x1xf32>
    %348 = vector.broadcast %347 : vector<8x1xf32> to vector<8x8xf32>
    %349 = arith.subf %345, %348 : vector<8x8xf32>
    %350 = math.exp %349 : vector<8x8xf32>
    %cst_227 = arith.constant dense<0.000000e+00> : vector<8xf32>
    %351 = vector.multi_reduction <add>, %350, %cst_227 [1] : vector<8x8xf32> to vector<8xf32>
    %352 = vector.shape_cast %351 : vector<8xf32> to vector<8x1xf32>
    %353 = tpu.reciprocal %352 {approx = true} : vector<8x1xf32> -> vector<8x1xf32>
    %354 = vector.broadcast %353 : vector<8x1xf32> to vector<8x8xf32>
    %355 = arith.mulf %350, %354 : vector<8x8xf32>
    %cst_228 = arith.constant dense<0.000000e+00> : vector<8x8xf32>
    %356 = tpu.matmul %355, %340, %cst_228 {dimension_numbers = #tpu.dot_dimension_numbers<[1], [0], [0], [1], [0, 0, 1, 1], [], []>} : vector<8x8xf32>, vector<8x8xf32>, vector<8x8xf32> -> vector<8x8xf32>
    %c5_229 = arith.constant 5 : index
    %c0_230 = arith.constant 0 : index
    %c0_231 = arith.constant 0 : index
    %357 = vector.load %arg11[%c5_229, %c0_230, %c0_231] : memref<8x8x32xf32, #tpu.memory_space<vmem>>, vector<1x8x32xf32>
    %358 = vector.shape_cast %357 : vector<1x8x32xf32> to vector<8x32xf32>
    %cst_232 = arith.constant dense<0.000000e+00> : vector<8x32xf32>
    %359 = tpu.matmul %356, %358, %cst_232 {dimension_numbers = #tpu.dot_dimension_numbers<[1], [0], [0], [1], [0, 0, 1, 1], [], []>} : vector<8x8xf32>, vector<8x32xf32>, vector<8x32xf32> -> vector<8x32xf32>
    %360 = arith.addf %319, %359 : vector<8x32xf32>
    %c6 = arith.constant 6 : index
    %c0_233 = arith.constant 0 : index
    %c0_234 = arith.constant 0 : index
    %361 = vector.load %arg5[%c6, %c0_233, %c0_234] : memref<8x32x8xf32, #tpu.memory_space<vmem>>, vector<1x32x8xf32>
    %362 = vector.shape_cast %361 : vector<1x32x8xf32> to vector<32x8xf32>
    %cst_235 = arith.constant dense<0.000000e+00> : vector<8x8xf32>
    %363 = tpu.matmul %277, %362, %cst_235 {dimension_numbers = #tpu.dot_dimension_numbers<[1], [0], [0], [1], [0, 0, 1, 1], [], []>} : vector<8x32xf32>, vector<32x8xf32>, vector<8x8xf32> -> vector<8x8xf32>
    %c6_236 = arith.constant 6 : index
    %c0_237 = arith.constant 0 : index
    %c0_238 = arith.constant 0 : index
    %364 = vector.load %arg6[%c6_236, %c0_237, %c0_238] : memref<8x1x8xf32, #tpu.memory_space<vmem>>, vector<1x1x8xf32>
    %365 = vector.shape_cast %364 : vector<1x1x8xf32> to vector<1x8xf32>
    %366 = vector.broadcast %365 : vector<1x8xf32> to vector<8x8xf32>
    %367 = arith.addf %363, %366 : vector<8x8xf32>
    %c6_239 = arith.constant 6 : index
    %c0_240 = arith.constant 0 : index
    %c0_241 = arith.constant 0 : index
    %368 = vector.load %arg7[%c6_239, %c0_240, %c0_241] : memref<8x32x8xf32, #tpu.memory_space<vmem>>, vector<1x32x8xf32>
    %369 = vector.shape_cast %368 : vector<1x32x8xf32> to vector<32x8xf32>
    %cst_242 = arith.constant dense<0.000000e+00> : vector<8x8xf32>
    %370 = tpu.matmul %277, %369, %cst_242 {dimension_numbers = #tpu.dot_dimension_numbers<[1], [0], [0], [1], [0, 0, 1, 1], [], []>} : vector<8x32xf32>, vector<32x8xf32>, vector<8x8xf32> -> vector<8x8xf32>
    %c6_243 = arith.constant 6 : index
    %c0_244 = arith.constant 0 : index
    %c0_245 = arith.constant 0 : index
    %371 = vector.load %arg8[%c6_243, %c0_244, %c0_245] : memref<8x1x8xf32, #tpu.memory_space<vmem>>, vector<1x1x8xf32>
    %372 = vector.shape_cast %371 : vector<1x1x8xf32> to vector<1x8xf32>
    %373 = vector.broadcast %372 : vector<1x8xf32> to vector<8x8xf32>
    %374 = arith.addf %370, %373 : vector<8x8xf32>
    %c6_246 = arith.constant 6 : index
    %c0_247 = arith.constant 0 : index
    %c0_248 = arith.constant 0 : index
    %375 = vector.load %arg9[%c6_246, %c0_247, %c0_248] : memref<8x32x8xf32, #tpu.memory_space<vmem>>, vector<1x32x8xf32>
    %376 = vector.shape_cast %375 : vector<1x32x8xf32> to vector<32x8xf32>
    %cst_249 = arith.constant dense<0.000000e+00> : vector<8x8xf32>
    %377 = tpu.matmul %277, %376, %cst_249 {dimension_numbers = #tpu.dot_dimension_numbers<[1], [0], [0], [1], [0, 0, 1, 1], [], []>} : vector<8x32xf32>, vector<32x8xf32>, vector<8x8xf32> -> vector<8x8xf32>
    %c6_250 = arith.constant 6 : index
    %c0_251 = arith.constant 0 : index
    %c0_252 = arith.constant 0 : index
    %378 = vector.load %arg10[%c6_250, %c0_251, %c0_252] : memref<8x1x8xf32, #tpu.memory_space<vmem>>, vector<1x1x8xf32>
    %379 = vector.shape_cast %378 : vector<1x1x8xf32> to vector<1x8xf32>
    %380 = vector.broadcast %379 : vector<1x8xf32> to vector<8x8xf32>
    %381 = arith.addf %377, %380 : vector<8x8xf32>
    %cst_253 = arith.constant dense<0.000000e+00> : vector<8x8xf32>
    %382 = tpu.matmul %367, %374, %cst_253 {dimension_numbers = #tpu.dot_dimension_numbers<[1], [1], [0], [0], [0, 0, 1, 0], [], []>} : vector<8x8xf32>, vector<8x8xf32>, vector<8x8xf32> -> vector<8x8xf32>
    %cst_254 = arith.constant 0.353553385 : f32
    %383 = vector.broadcast %cst_254 : f32 to vector<8x8xf32>
    %384 = arith.mulf %382, %383 : vector<8x8xf32>
    %385 = vector.broadcast %27 : vector<1x8xf32> to vector<8x8xf32>
    %386 = arith.addf %384, %385 : vector<8x8xf32>
    %cst_255 = arith.constant dense<0xFF800000> : vector<8xf32>
    %387 = vector.multi_reduction <maximumf>, %386, %cst_255 [1] : vector<8x8xf32> to vector<8xf32>
    %388 = vector.shape_cast %387 : vector<8xf32> to vector<8x1xf32>
    %389 = vector.broadcast %388 : vector<8x1xf32> to vector<8x8xf32>
    %390 = arith.subf %386, %389 : vector<8x8xf32>
    %391 = math.exp %390 : vector<8x8xf32>
    %cst_256 = arith.constant dense<0.000000e+00> : vector<8xf32>
    %392 = vector.multi_reduction <add>, %391, %cst_256 [1] : vector<8x8xf32> to vector<8xf32>
    %393 = vector.shape_cast %392 : vector<8xf32> to vector<8x1xf32>
    %394 = tpu.reciprocal %393 {approx = true} : vector<8x1xf32> -> vector<8x1xf32>
    %395 = vector.broadcast %394 : vector<8x1xf32> to vector<8x8xf32>
    %396 = arith.mulf %391, %395 : vector<8x8xf32>
    %cst_257 = arith.constant dense<0.000000e+00> : vector<8x8xf32>
    %397 = tpu.matmul %396, %381, %cst_257 {dimension_numbers = #tpu.dot_dimension_numbers<[1], [0], [0], [1], [0, 0, 1, 1], [], []>} : vector<8x8xf32>, vector<8x8xf32>, vector<8x8xf32> -> vector<8x8xf32>
    %c6_258 = arith.constant 6 : index
    %c0_259 = arith.constant 0 : index
    %c0_260 = arith.constant 0 : index
    %398 = vector.load %arg11[%c6_258, %c0_259, %c0_260] : memref<8x8x32xf32, #tpu.memory_space<vmem>>, vector<1x8x32xf32>
    %399 = vector.shape_cast %398 : vector<1x8x32xf32> to vector<8x32xf32>
    %cst_261 = arith.constant dense<0.000000e+00> : vector<8x32xf32>
    %400 = tpu.matmul %397, %399, %cst_261 {dimension_numbers = #tpu.dot_dimension_numbers<[1], [0], [0], [1], [0, 0, 1, 1], [], []>} : vector<8x8xf32>, vector<8x32xf32>, vector<8x32xf32> -> vector<8x32xf32>
    %401 = arith.addf %360, %400 : vector<8x32xf32>
    %c7 = arith.constant 7 : index
    %c0_262 = arith.constant 0 : index
    %c0_263 = arith.constant 0 : index
    %402 = vector.load %arg5[%c7, %c0_262, %c0_263] : memref<8x32x8xf32, #tpu.memory_space<vmem>>, vector<1x32x8xf32>
    %403 = vector.shape_cast %402 : vector<1x32x8xf32> to vector<32x8xf32>
    %cst_264 = arith.constant dense<0.000000e+00> : vector<8x8xf32>
    %404 = tpu.matmul %277, %403, %cst_264 {dimension_numbers = #tpu.dot_dimension_numbers<[1], [0], [0], [1], [0, 0, 1, 1], [], []>} : vector<8x32xf32>, vector<32x8xf32>, vector<8x8xf32> -> vector<8x8xf32>
    %c7_265 = arith.constant 7 : index
    %c0_266 = arith.constant 0 : index
    %c0_267 = arith.constant 0 : index
    %405 = vector.load %arg6[%c7_265, %c0_266, %c0_267] : memref<8x1x8xf32, #tpu.memory_space<vmem>>, vector<1x1x8xf32>
    %406 = vector.shape_cast %405 : vector<1x1x8xf32> to vector<1x8xf32>
    %407 = vector.broadcast %406 : vector<1x8xf32> to vector<8x8xf32>
    %408 = arith.addf %404, %407 : vector<8x8xf32>
    %c7_268 = arith.constant 7 : index
    %c0_269 = arith.constant 0 : index
    %c0_270 = arith.constant 0 : index
    %409 = vector.load %arg7[%c7_268, %c0_269, %c0_270] : memref<8x32x8xf32, #tpu.memory_space<vmem>>, vector<1x32x8xf32>
    %410 = vector.shape_cast %409 : vector<1x32x8xf32> to vector<32x8xf32>
    %cst_271 = arith.constant dense<0.000000e+00> : vector<8x8xf32>
    %411 = tpu.matmul %277, %410, %cst_271 {dimension_numbers = #tpu.dot_dimension_numbers<[1], [0], [0], [1], [0, 0, 1, 1], [], []>} : vector<8x32xf32>, vector<32x8xf32>, vector<8x8xf32> -> vector<8x8xf32>
    %c7_272 = arith.constant 7 : index
    %c0_273 = arith.constant 0 : index
    %c0_274 = arith.constant 0 : index
    %412 = vector.load %arg8[%c7_272, %c0_273, %c0_274] : memref<8x1x8xf32, #tpu.memory_space<vmem>>, vector<1x1x8xf32>
    %413 = vector.shape_cast %412 : vector<1x1x8xf32> to vector<1x8xf32>
    %414 = vector.broadcast %413 : vector<1x8xf32> to vector<8x8xf32>
    %415 = arith.addf %411, %414 : vector<8x8xf32>
    %c7_275 = arith.constant 7 : index
    %c0_276 = arith.constant 0 : index
    %c0_277 = arith.constant 0 : index
    %416 = vector.load %arg9[%c7_275, %c0_276, %c0_277] : memref<8x32x8xf32, #tpu.memory_space<vmem>>, vector<1x32x8xf32>
    %417 = vector.shape_cast %416 : vector<1x32x8xf32> to vector<32x8xf32>
    %cst_278 = arith.constant dense<0.000000e+00> : vector<8x8xf32>
    %418 = tpu.matmul %277, %417, %cst_278 {dimension_numbers = #tpu.dot_dimension_numbers<[1], [0], [0], [1], [0, 0, 1, 1], [], []>} : vector<8x32xf32>, vector<32x8xf32>, vector<8x8xf32> -> vector<8x8xf32>
    %c7_279 = arith.constant 7 : index
    %c0_280 = arith.constant 0 : index
    %c0_281 = arith.constant 0 : index
    %419 = vector.load %arg10[%c7_279, %c0_280, %c0_281] : memref<8x1x8xf32, #tpu.memory_space<vmem>>, vector<1x1x8xf32>
    %420 = vector.shape_cast %419 : vector<1x1x8xf32> to vector<1x8xf32>
    %421 = vector.broadcast %420 : vector<1x8xf32> to vector<8x8xf32>
    %422 = arith.addf %418, %421 : vector<8x8xf32>
    %cst_282 = arith.constant dense<0.000000e+00> : vector<8x8xf32>
    %423 = tpu.matmul %408, %415, %cst_282 {dimension_numbers = #tpu.dot_dimension_numbers<[1], [1], [0], [0], [0, 0, 1, 0], [], []>} : vector<8x8xf32>, vector<8x8xf32>, vector<8x8xf32> -> vector<8x8xf32>
    %cst_283 = arith.constant 0.353553385 : f32
    %424 = vector.broadcast %cst_283 : f32 to vector<8x8xf32>
    %425 = arith.mulf %423, %424 : vector<8x8xf32>
    %426 = vector.broadcast %27 : vector<1x8xf32> to vector<8x8xf32>
    %427 = arith.addf %425, %426 : vector<8x8xf32>
    %cst_284 = arith.constant dense<0xFF800000> : vector<8xf32>
    %428 = vector.multi_reduction <maximumf>, %427, %cst_284 [1] : vector<8x8xf32> to vector<8xf32>
    %429 = vector.shape_cast %428 : vector<8xf32> to vector<8x1xf32>
    %430 = vector.broadcast %429 : vector<8x1xf32> to vector<8x8xf32>
    %431 = arith.subf %427, %430 : vector<8x8xf32>
    %432 = math.exp %431 : vector<8x8xf32>
    %cst_285 = arith.constant dense<0.000000e+00> : vector<8xf32>
    %433 = vector.multi_reduction <add>, %432, %cst_285 [1] : vector<8x8xf32> to vector<8xf32>
    %434 = vector.shape_cast %433 : vector<8xf32> to vector<8x1xf32>
    %435 = tpu.reciprocal %434 {approx = true} : vector<8x1xf32> -> vector<8x1xf32>
    %436 = vector.broadcast %435 : vector<8x1xf32> to vector<8x8xf32>
    %437 = arith.mulf %432, %436 : vector<8x8xf32>
    %cst_286 = arith.constant dense<0.000000e+00> : vector<8x8xf32>
    %438 = tpu.matmul %437, %422, %cst_286 {dimension_numbers = #tpu.dot_dimension_numbers<[1], [0], [0], [1], [0, 0, 1, 1], [], []>} : vector<8x8xf32>, vector<8x8xf32>, vector<8x8xf32> -> vector<8x8xf32>
    %c7_287 = arith.constant 7 : index
    %c0_288 = arith.constant 0 : index
    %c0_289 = arith.constant 0 : index
    %439 = vector.load %arg11[%c7_287, %c0_288, %c0_289] : memref<8x8x32xf32, #tpu.memory_space<vmem>>, vector<1x8x32xf32>
    %440 = vector.shape_cast %439 : vector<1x8x32xf32> to vector<8x32xf32>
    %cst_290 = arith.constant dense<0.000000e+00> : vector<8x32xf32>
    %441 = tpu.matmul %438, %440, %cst_290 {dimension_numbers = #tpu.dot_dimension_numbers<[1], [0], [0], [1], [0, 0, 1, 1], [], []>} : vector<8x8xf32>, vector<8x32xf32>, vector<8x32xf32> -> vector<8x32xf32>
    %442 = arith.addf %401, %441 : vector<8x32xf32>
    %c1_291 = arith.constant 1 : index
    %c0_292 = arith.constant 0 : index
    %c0_293 = arith.constant 0 : index
    %443 = vector.load %arg12[%c1_291, %c0_292, %c0_293] : memref<2x1x32xf32, #tpu.memory_space<vmem>>, vector<1x1x32xf32>
    %444 = vector.shape_cast %443 : vector<1x1x32xf32> to vector<1x32xf32>
    %445 = vector.broadcast %444 : vector<1x32xf32> to vector<8x32xf32>
    %446 = arith.addf %442, %445 : vector<8x32xf32>
    %447 = arith.addf %277, %446 : vector<8x32xf32>
    %c1_294 = arith.constant 1 : index
    %c0_295 = arith.constant 0 : index
    %c0_296 = arith.constant 0 : index
    %448 = vector.load %arg13[%c1_294, %c0_295, %c0_296] : memref<2x1x32xf32, #tpu.memory_space<vmem>>, vector<1x1x32xf32>
    %449 = vector.shape_cast %448 : vector<1x1x32xf32> to vector<1x32xf32>
    %c1_297 = arith.constant 1 : index
    %c0_298 = arith.constant 0 : index
    %c0_299 = arith.constant 0 : index
    %450 = vector.load %arg14[%c1_297, %c0_298, %c0_299] : memref<2x1x32xf32, #tpu.memory_space<vmem>>, vector<1x1x32xf32>
    %451 = vector.shape_cast %450 : vector<1x1x32xf32> to vector<1x32xf32>
    %cst_300 = arith.constant dense<0.000000e+00> : vector<8xf32>
    %452 = vector.multi_reduction <add>, %447, %cst_300 [1] : vector<8x32xf32> to vector<8xf32>
    %453 = vector.shape_cast %452 : vector<8xf32> to vector<8x1xf32>
    %cst_301 = arith.constant 3.200000e+01 : f32
    %454 = vector.broadcast %cst_301 : f32 to vector<8x1xf32>
    %455 = arith.divf %453, %454 : vector<8x1xf32>
    %456 = vector.broadcast %455 : vector<8x1xf32> to vector<8x32xf32>
    %457 = arith.subf %447, %456 : vector<8x32xf32>
    %458 = arith.mulf %457, %457 : vector<8x32xf32>
    %cst_302 = arith.constant dense<0.000000e+00> : vector<8xf32>
    %459 = vector.multi_reduction <add>, %458, %cst_302 [1] : vector<8x32xf32> to vector<8xf32>
    %460 = vector.shape_cast %459 : vector<8xf32> to vector<8x1xf32>
    %cst_303 = arith.constant 3.200000e+01 : f32
    %461 = vector.broadcast %cst_303 : f32 to vector<8x1xf32>
    %462 = arith.divf %460, %461 : vector<8x1xf32>
    %463 = vector.broadcast %455 : vector<8x1xf32> to vector<8x32xf32>
    %464 = arith.subf %447, %463 : vector<8x32xf32>
    %cst_304 = arith.constant 9.99999996E-13 : f32
    %465 = vector.broadcast %cst_304 : f32 to vector<8x1xf32>
    %466 = arith.addf %462, %465 : vector<8x1xf32>
    %467 = math.rsqrt %466 : vector<8x1xf32>
    %468 = vector.broadcast %467 : vector<8x1xf32> to vector<8x32xf32>
    %469 = arith.mulf %464, %468 : vector<8x32xf32>
    %470 = vector.broadcast %449 : vector<1x32xf32> to vector<8x32xf32>
    %471 = arith.mulf %469, %470 : vector<8x32xf32>
    %472 = vector.broadcast %451 : vector<1x32xf32> to vector<8x32xf32>
    %473 = arith.addf %471, %472 : vector<8x32xf32>
    %c1_305 = arith.constant 1 : index
    %c0_306 = arith.constant 0 : index
    %c0_307 = arith.constant 0 : index
    %474 = vector.load %arg15[%c1_305, %c0_306, %c0_307] : memref<2x32x64xf32, #tpu.memory_space<vmem>>, vector<1x32x64xf32>
    %475 = vector.shape_cast %474 : vector<1x32x64xf32> to vector<32x64xf32>
    %cst_308 = arith.constant dense<0.000000e+00> : vector<8x64xf32>
    %476 = tpu.matmul %473, %475, %cst_308 {dimension_numbers = #tpu.dot_dimension_numbers<[1], [0], [0], [1], [0, 0, 1, 1], [], []>} : vector<8x32xf32>, vector<32x64xf32>, vector<8x64xf32> -> vector<8x64xf32>
    %c1_309 = arith.constant 1 : index
    %c0_310 = arith.constant 0 : index
    %c0_311 = arith.constant 0 : index
    %477 = vector.load %arg16[%c1_309, %c0_310, %c0_311] : memref<2x1x64xf32, #tpu.memory_space<vmem>>, vector<1x1x64xf32>
    %478 = vector.shape_cast %477 : vector<1x1x64xf32> to vector<1x64xf32>
    %479 = vector.broadcast %478 : vector<1x64xf32> to vector<8x64xf32>
    %480 = arith.addf %476, %479 : vector<8x64xf32>
    %481 = arith.mulf %480, %480 : vector<8x64xf32>
    %482 = arith.mulf %480, %481 : vector<8x64xf32>
    %cst_312 = arith.constant 4.471500e-02 : f32
    %483 = vector.broadcast %cst_312 : f32 to vector<8x64xf32>
    %484 = arith.mulf %483, %482 : vector<8x64xf32>
    %485 = arith.addf %480, %484 : vector<8x64xf32>
    %cst_313 = arith.constant 0.797884583 : f32
    %486 = vector.broadcast %cst_313 : f32 to vector<8x64xf32>
    %487 = arith.mulf %486, %485 : vector<8x64xf32>
    %488 = math.tanh %487 : vector<8x64xf32>
    %cst_314 = arith.constant 1.000000e+00 : f32
    %489 = vector.broadcast %cst_314 : f32 to vector<8x64xf32>
    %490 = arith.addf %489, %488 : vector<8x64xf32>
    %cst_315 = arith.constant 5.000000e-01 : f32
    %491 = vector.broadcast %cst_315 : f32 to vector<8x64xf32>
    %492 = arith.mulf %491, %490 : vector<8x64xf32>
    %493 = arith.mulf %480, %492 : vector<8x64xf32>
    %c1_316 = arith.constant 1 : index
    %c0_317 = arith.constant 0 : index
    %c0_318 = arith.constant 0 : index
    %494 = vector.load %arg17[%c1_316, %c0_317, %c0_318] : memref<2x64x32xf32, #tpu.memory_space<vmem>>, vector<1x64x32xf32>
    %495 = vector.shape_cast %494 : vector<1x64x32xf32> to vector<64x32xf32>
    %cst_319 = arith.constant dense<0.000000e+00> : vector<8x32xf32>
    %496 = tpu.matmul %493, %495, %cst_319 {dimension_numbers = #tpu.dot_dimension_numbers<[1], [0], [0], [1], [0, 0, 1, 1], [], []>} : vector<8x64xf32>, vector<64x32xf32>, vector<8x32xf32> -> vector<8x32xf32>
    %c1_320 = arith.constant 1 : index
    %c0_321 = arith.constant 0 : index
    %c0_322 = arith.constant 0 : index
    %497 = vector.load %arg18[%c1_320, %c0_321, %c0_322] : memref<2x1x32xf32, #tpu.memory_space<vmem>>, vector<1x1x32xf32>
    %498 = vector.shape_cast %497 : vector<1x1x32xf32> to vector<1x32xf32>
    %499 = vector.broadcast %498 : vector<1x32xf32> to vector<8x32xf32>
    %500 = arith.addf %496, %499 : vector<8x32xf32>
    %501 = arith.addf %473, %500 : vector<8x32xf32>
    %c1_323 = arith.constant 1 : index
    %c0_324 = arith.constant 0 : index
    %c0_325 = arith.constant 0 : index
    %502 = vector.load %arg19[%c1_323, %c0_324, %c0_325] : memref<2x1x32xf32, #tpu.memory_space<vmem>>, vector<1x1x32xf32>
    %503 = vector.shape_cast %502 : vector<1x1x32xf32> to vector<1x32xf32>
    %c1_326 = arith.constant 1 : index
    %c0_327 = arith.constant 0 : index
    %c0_328 = arith.constant 0 : index
    %504 = vector.load %arg20[%c1_326, %c0_327, %c0_328] : memref<2x1x32xf32, #tpu.memory_space<vmem>>, vector<1x1x32xf32>
    %505 = vector.shape_cast %504 : vector<1x1x32xf32> to vector<1x32xf32>
    %cst_329 = arith.constant dense<0.000000e+00> : vector<8xf32>
    %506 = vector.multi_reduction <add>, %501, %cst_329 [1] : vector<8x32xf32> to vector<8xf32>
    %507 = vector.shape_cast %506 : vector<8xf32> to vector<8x1xf32>
    %cst_330 = arith.constant 3.200000e+01 : f32
    %508 = vector.broadcast %cst_330 : f32 to vector<8x1xf32>
    %509 = arith.divf %507, %508 : vector<8x1xf32>
    %510 = vector.broadcast %509 : vector<8x1xf32> to vector<8x32xf32>
    %511 = arith.subf %501, %510 : vector<8x32xf32>
    %512 = arith.mulf %511, %511 : vector<8x32xf32>
    %cst_331 = arith.constant dense<0.000000e+00> : vector<8xf32>
    %513 = vector.multi_reduction <add>, %512, %cst_331 [1] : vector<8x32xf32> to vector<8xf32>
    %514 = vector.shape_cast %513 : vector<8xf32> to vector<8x1xf32>
    %cst_332 = arith.constant 3.200000e+01 : f32
    %515 = vector.broadcast %cst_332 : f32 to vector<8x1xf32>
    %516 = arith.divf %514, %515 : vector<8x1xf32>
    %517 = vector.broadcast %509 : vector<8x1xf32> to vector<8x32xf32>
    %518 = arith.subf %501, %517 : vector<8x32xf32>
    %cst_333 = arith.constant 9.99999996E-13 : f32
    %519 = vector.broadcast %cst_333 : f32 to vector<8x1xf32>
    %520 = arith.addf %516, %519 : vector<8x1xf32>
    %521 = math.rsqrt %520 : vector<8x1xf32>
    %522 = vector.broadcast %521 : vector<8x1xf32> to vector<8x32xf32>
    %523 = arith.mulf %518, %522 : vector<8x32xf32>
    %524 = vector.broadcast %503 : vector<1x32xf32> to vector<8x32xf32>
    %525 = arith.mulf %523, %524 : vector<8x32xf32>
    %526 = vector.broadcast %505 : vector<1x32xf32> to vector<8x32xf32>
    %527 = arith.addf %525, %526 : vector<8x32xf32>
    %528 = vector.extract_strided_slice %527 {offsets = [0, 0], sizes = [1, 32], strides = [1, 1]} : vector<8x32xf32> to vector<1x32xf32>
    %c0_334 = arith.constant 0 : index
    %c0_335 = arith.constant 0 : index
    %529 = vector.load %arg21[%c0_334, %c0_335] : memref<32x16xf32, #tpu.memory_space<vmem>>, vector<32x16xf32>
    %cst_336 = arith.constant dense<0.000000e+00> : vector<1x16xf32>
    %530 = tpu.matmul %528, %529, %cst_336 {dimension_numbers = #tpu.dot_dimension_numbers<[1], [0], [0], [1], [0, 0, 1, 1], [], []>} : vector<1x32xf32>, vector<32x16xf32>, vector<1x16xf32> -> vector<1x16xf32>
    %c0_337 = arith.constant 0 : index
    %c0_338 = arith.constant 0 : index
    %531 = vector.load %arg22[%c0_337, %c0_338] : memref<1x16xf32, #tpu.memory_space<vmem>>, vector<1x16xf32>
    %532 = arith.addf %530, %531 : vector<1x16xf32>
    %533 = arith.mulf %532, %532 : vector<1x16xf32>
    %cst_339 = arith.constant dense<0.000000e+00> : vector<1xf32>
    %534 = vector.multi_reduction <add>, %533, %cst_339 [1] : vector<1x16xf32> to vector<1xf32>
    %535 = vector.shape_cast %534 : vector<1xf32> to vector<1x1xf32>
    %536 = math.sqrt %535 : vector<1x1xf32>
    %cst_340 = arith.constant 9.99999996E-13 : f32
    %537 = vector.broadcast %cst_340 : f32 to vector<1x1xf32>
    %538 = arith.maximumf %536, %537 : vector<1x1xf32>
    %539 = tpu.reciprocal %538 {approx = true} : vector<1x1xf32> -> vector<1x1xf32>
    %540 = vector.broadcast %539 : vector<1x1xf32> to vector<1x16xf32>
    %541 = arith.mulf %532, %540 : vector<1x16xf32>
    %c0_341 = arith.constant 0 : index
    %c0_342 = arith.constant 0 : index
    %542 = vector.load %arg23[%c0_341, %c0_342] : memref<16x4xf32, #tpu.memory_space<vmem>>, vector<16x4xf32>
    %cst_343 = arith.constant dense<0.000000e+00> : vector<1x4xf32>
    %543 = tpu.matmul %541, %542, %cst_343 {dimension_numbers = #tpu.dot_dimension_numbers<[1], [0], [0], [1], [0, 0, 1, 1], [], []>} : vector<1x16xf32>, vector<16x4xf32>, vector<1x4xf32> -> vector<1x4xf32>
    %c0_344 = arith.constant 0 : index
    %c0_345 = arith.constant 0 : index
    %544 = vector.load %arg24[%c0_344, %c0_345] : memref<1x4xf32, #tpu.memory_space<vmem>>, vector<1x4xf32>
    %545 = arith.addf %543, %544 : vector<1x4xf32>
    %c0_346 = arith.constant 0 : index
    %c0_347 = arith.constant 0 : index
    %c0_348 = arith.constant 0 : index
    %546 = vector.load %arg25[%c0_346, %c0_347, %c0_348] : memref<1x1x4xf32, #tpu.memory_space<vmem>>, vector<1x1x4xf32>
    %547 = vector.shape_cast %546 : vector<1x1x4xf32> to vector<1x4xf32>
    %548 = vector.shape_cast %545 : vector<1x4xf32> to vector<1x1x4xf32>
    tpu.vector_store %arg25[%c0_346, %c0_347, %c0_348], %548 {strides = array<i32>} : memref<1x1x4xf32, #tpu.memory_space<vmem>>, vector<1x1x4xf32>,
    return
  }
  func.func @transform_0(%arg0: i32) -> (i32, i32, i32) {
    %c0_i32 = arith.constant 0 : i32
    %c0_i32_0 = arith.constant 0 : i32
    %c0_i32_1 = arith.constant 0 : i32
    return %arg0, %c0_i32, %c0_i32_0 : i32, i32, i32
  }
  func.func @transform_1(%arg0: i32) -> (i32, i32, i32) {
    %c0_i32 = arith.constant 0 : i32
    %c0_i32_0 = arith.constant 0 : i32
    %c0_i32_1 = arith.constant 0 : i32
    return %arg0, %c0_i32, %c0_i32_0 : i32, i32, i32
  }
  func.func @transform_2(%arg0: i32) -> (i32, i32) {
    %c0_i32 = arith.constant 0 : i32
    %c0_i32_0 = arith.constant 0 : i32
    %c0_i32_1 = arith.constant 0 : i32
    return %c0_i32, %c0_i32_0 : i32, i32
  }
  func.func @transform_3(%arg0: i32) -> (i32, i32) {
    %c0_i32 = arith.constant 0 : i32
    %c0_i32_0 = arith.constant 0 : i32
    %c0_i32_1 = arith.constant 0 : i32
    return %c0_i32, %c0_i32_0 : i32, i32
  }
  func.func @transform_4(%arg0: i32) -> (i32, i32, i32) {
    %c0_i32 = arith.constant 0 : i32
    %c0_i32_0 = arith.constant 0 : i32
    %c0_i32_1 = arith.constant 0 : i32
    %c0_i32_2 = arith.constant 0 : i32
    return %c0_i32, %c0_i32_0, %c0_i32_1 : i32, i32, i32
  }
  func.func @transform_5(%arg0: i32) -> (i32, i32, i32) {
    %c0_i32 = arith.constant 0 : i32
    %c0_i32_0 = arith.constant 0 : i32
    %c0_i32_1 = arith.constant 0 : i32
    %c0_i32_2 = arith.constant 0 : i32
    return %c0_i32, %c0_i32_0, %c0_i32_1 : i32, i32, i32
  }
  func.func @transform_6(%arg0: i32) -> (i32, i32, i32) {
    %c0_i32 = arith.constant 0 : i32
    %c0_i32_0 = arith.constant 0 : i32
    %c0_i32_1 = arith.constant 0 : i32
    %c0_i32_2 = arith.constant 0 : i32
    return %c0_i32, %c0_i32_0, %c0_i32_1 : i32, i32, i32
  }
  func.func @transform_7(%arg0: i32) -> (i32, i32, i32) {
    %c0_i32 = arith.constant 0 : i32
    %c0_i32_0 = arith.constant 0 : i32
    %c0_i32_1 = arith.constant 0 : i32
    %c0_i32_2 = arith.constant 0 : i32
    return %c0_i32, %c0_i32_0, %c0_i32_1 : i32, i32, i32
  }
  func.func @transform_8(%arg0: i32) -> (i32, i32, i32) {
    %c0_i32 = arith.constant 0 : i32
    %c0_i32_0 = arith.constant 0 : i32
    %c0_i32_1 = arith.constant 0 : i32
    %c0_i32_2 = arith.constant 0 : i32
    return %c0_i32, %c0_i32_0, %c0_i32_1 : i32, i32, i32
  }
  func.func @transform_9(%arg0: i32) -> (i32, i32, i32) {
    %c0_i32 = arith.constant 0 : i32
    %c0_i32_0 = arith.constant 0 : i32
    %c0_i32_1 = arith.constant 0 : i32
    %c0_i32_2 = arith.constant 0 : i32
    return %c0_i32, %c0_i32_0, %c0_i32_1 : i32, i32, i32
  }
  func.func @transform_10(%arg0: i32) -> (i32, i32, i32) {
    %c0_i32 = arith.constant 0 : i32
    %c0_i32_0 = arith.constant 0 : i32
    %c0_i32_1 = arith.constant 0 : i32
    %c0_i32_2 = arith.constant 0 : i32
    return %c0_i32, %c0_i32_0, %c0_i32_1 : i32, i32, i32
  }
  func.func @transform_11(%arg0: i32) -> (i32, i32, i32) {
    %c0_i32 = arith.constant 0 : i32
    %c0_i32_0 = arith.constant 0 : i32
    %c0_i32_1 = arith.constant 0 : i32
    %c0_i32_2 = arith.constant 0 : i32
    return %c0_i32, %c0_i32_0, %c0_i32_1 : i32, i32, i32
  }
  func.func @transform_12(%arg0: i32) -> (i32, i32, i32) {
    %c0_i32 = arith.constant 0 : i32
    %c0_i32_0 = arith.constant 0 : i32
    %c0_i32_1 = arith.constant 0 : i32
    %c0_i32_2 = arith.constant 0 : i32
    return %c0_i32, %c0_i32_0, %c0_i32_1 : i32, i32, i32
  }
  func.func @transform_13(%arg0: i32) -> (i32, i32, i32) {
    %c0_i32 = arith.constant 0 : i32
    %c0_i32_0 = arith.constant 0 : i32
    %c0_i32_1 = arith.constant 0 : i32
    %c0_i32_2 = arith.constant 0 : i32
    return %c0_i32, %c0_i32_0, %c0_i32_1 : i32, i32, i32
  }
  func.func @transform_14(%arg0: i32) -> (i32, i32, i32) {
    %c0_i32 = arith.constant 0 : i32
    %c0_i32_0 = arith.constant 0 : i32
    %c0_i32_1 = arith.constant 0 : i32
    %c0_i32_2 = arith.constant 0 : i32
    return %c0_i32, %c0_i32_0, %c0_i32_1 : i32, i32, i32
  }
  func.func @transform_15(%arg0: i32) -> (i32, i32, i32) {
    %c0_i32 = arith.constant 0 : i32
    %c0_i32_0 = arith.constant 0 : i32
    %c0_i32_1 = arith.constant 0 : i32
    %c0_i32_2 = arith.constant 0 : i32
    return %c0_i32, %c0_i32_0, %c0_i32_1 : i32, i32, i32
  }
  func.func @transform_16(%arg0: i32) -> (i32, i32, i32) {
    %c0_i32 = arith.constant 0 : i32
    %c0_i32_0 = arith.constant 0 : i32
    %c0_i32_1 = arith.constant 0 : i32
    %c0_i32_2 = arith.constant 0 : i32
    return %c0_i32, %c0_i32_0, %c0_i32_1 : i32, i32, i32
  }
  func.func @transform_17(%arg0: i32) -> (i32, i32, i32) {
    %c0_i32 = arith.constant 0 : i32
    %c0_i32_0 = arith.constant 0 : i32
    %c0_i32_1 = arith.constant 0 : i32
    %c0_i32_2 = arith.constant 0 : i32
    return %c0_i32, %c0_i32_0, %c0_i32_1 : i32, i32, i32
  }
  func.func @transform_18(%arg0: i32) -> (i32, i32, i32) {
    %c0_i32 = arith.constant 0 : i32
    %c0_i32_0 = arith.constant 0 : i32
    %c0_i32_1 = arith.constant 0 : i32
    %c0_i32_2 = arith.constant 0 : i32
    return %c0_i32, %c0_i32_0, %c0_i32_1 : i32, i32, i32
  }
  func.func @transform_19(%arg0: i32) -> (i32, i32, i32) {
    %c0_i32 = arith.constant 0 : i32
    %c0_i32_0 = arith.constant 0 : i32
    %c0_i32_1 = arith.constant 0 : i32
    %c0_i32_2 = arith.constant 0 : i32
    return %c0_i32, %c0_i32_0, %c0_i32_1 : i32, i32, i32
  }
  func.func @transform_20(%arg0: i32) -> (i32, i32) {
    %c0_i32 = arith.constant 0 : i32
    %c0_i32_0 = arith.constant 0 : i32
    %c0_i32_1 = arith.constant 0 : i32
    return %c0_i32, %c0_i32_0 : i32, i32
  }
  func.func @transform_21(%arg0: i32) -> (i32, i32) {
    %c0_i32 = arith.constant 0 : i32
    %c0_i32_0 = arith.constant 0 : i32
    %c0_i32_1 = arith.constant 0 : i32
    return %c0_i32, %c0_i32_0 : i32, i32
  }
  func.func @transform_22(%arg0: i32) -> (i32, i32) {
    %c0_i32 = arith.constant 0 : i32
    %c0_i32_0 = arith.constant 0 : i32
    %c0_i32_1 = arith.constant 0 : i32
    return %c0_i32, %c0_i32_0 : i32, i32
  }
  func.func @transform_23(%arg0: i32) -> (i32, i32) {
    %c0_i32 = arith.constant 0 : i32
    %c0_i32_0 = arith.constant 0 : i32
    %c0_i32_1 = arith.constant 0 : i32
    return %c0_i32, %c0_i32_0 : i32, i32
  }
  func.func @transform_24(%arg0: i32) -> (i32, i32, i32) {
    %c0_i32 = arith.constant 0 : i32
    %c0_i32_0 = arith.constant 0 : i32
    %c0_i32_1 = arith.constant 0 : i32
    return %arg0, %c0_i32, %c0_i32_0 : i32, i32, i32
  }
}

</mosaic_0001>

<llo_original>
// kernel: bert_classification_forward.1
$region0: #{bert_classification_forward.1}
  #allocation0 [shape = 'u32[]', space=smem, size = 0x4, offset = 0x4, fixed_abs, tag = 'smem constant byte address 0x4 - core index']
  #allocation1 [shape = 'u32[72,128]{1,0:T(1,128)}', space=vmem, size = 0x9000, scoped, tag = 'internal scratch']
  %s0 = inlined_call_operand.vmem [shape: f32[2,8,32], index: 0, kind: input, shape index: {}]
  %s1 = inlined_call_operand.vmem [shape: f32[2,1,8], index: 1, kind: input, shape index: {}]
  %s2 = inlined_call_operand.vmem [shape: f32[1,32], index: 2, kind: input, shape index: {}]
  %s3 = inlined_call_operand.vmem [shape: f32[1,32], index: 3, kind: input, shape index: {}]
  %s4 = inlined_call_operand.vmem [shape: f32[8,32,8], index: 4, kind: input, shape index: {}]
  %s5 = inlined_call_operand.vmem [shape: f32[8,1,8], index: 5, kind: input, shape index: {}]
  %s6 = inlined_call_operand.vmem [shape: f32[8,32,8], index: 6, kind: input, shape index: {}]
  %s7 = inlined_call_operand.vmem [shape: f32[8,1,8], index: 7, kind: input, shape index: {}]
  %s8 = inlined_call_operand.vmem [shape: f32[8,32,8], index: 8, kind: input, shape index: {}]
  %s9 = inlined_call_operand.vmem [shape: f32[8,1,8], index: 9, kind: input, shape index: {}]
  %s10 = inlined_call_operand.vmem [shape: f32[8,8,32], index: 10, kind: input, shape index: {}]
  %s11 = inlined_call_operand.vmem [shape: f32[2,1,32], index: 11, kind: input, shape index: {}]
  %s12 = inlined_call_operand.vmem [shape: f32[2,1,32], index: 12, kind: input, shape index: {}]
  %s13 = inlined_call_operand.vmem [shape: f32[2,1,32], index: 13, kind: input, shape index: {}]
  %s14 = inlined_call_operand.vmem [shape: f32[2,32,64], index: 14, kind: input, shape index: {}]
  %s15 = inlined_call_operand.vmem [shape: f32[2,1,64], index: 15, kind: input, shape index: {}]
  %s16 = inlined_call_operand.vmem [shape: f32[2,64,32], index: 16, kind: input, shape index: {}]
  %s17 = inlined_call_operand.vmem [shape: f32[2,1,32], index: 17, kind: input, shape index: {}]
  %s18 = inlined_call_operand.vmem [shape: f32[2,1,32], index: 18, kind: input, shape index: {}]
  %s19 = inlined_call_operand.vmem [shape: f32[2,1,32], index: 19, kind: input, shape index: {}]
  %s20 = inlined_call_operand.vmem [shape: f32[32,16], index: 20, kind: input, shape index: {}]
  %s21 = inlined_call_operand.vmem [shape: f32[1,16], index: 21, kind: input, shape index: {}]
  %s22 = inlined_call_operand.vmem [shape: f32[16,4], index: 22, kind: input, shape index: {}]
  %s23 = inlined_call_operand.vmem [shape: f32[1,4], index: 23, kind: input, shape index: {}]
  %s24 = inlined_call_operand.hbm [shape: f32[2,1,4], index: 24, kind: output, shape index: {}]
  %s25 = sld [smem:[#allocation0]]
  $region129: #{bert_classification_forward.1} parent=0
    _
  %s27 = ssub.s32 1, %s25
  %s28 = scalar_select 0, %s27, %s25
  $region1: #{bert_classification_forward.1} parent=0
    #allocation2 [shape = 'u8[1024]{0}', space=vmem, size = 0x400, scoped, tag = 'output window, operand 0']
    #allocation3 [shape = 's32[2]{0}', space=sflag, size = 0x8, scoped, tag = 'scoped memory for bert_classification_forward.1']
    %29 = vsyncpa [#allocation3], 0
    %s30 = scalar_lea.sflag [#allocation3], 1
    %31 = vsyncpa %s30, 0
    loop: start=0, step=1, limit=4
    $region2: #{bert_classification_forward.1} parent=1 // loop_pre_header
      _
    $region3: #{bert_classification_forward.1} parent=1 // loop_header
      %s33 = sphi 0, %s37
      %p34 = scmp.ge.s32.totalorder %s33, 4
      %s43 = sphi 0, %s45
      %s46 = sphi 0, %s43
      %s47 = sphi 0, %s46
      %s63 = sphi 0, %s47
      %s69 = sphi 0, %s71
      %s72 = sphi 0, %s69
      %s73 = sphi 0, %s72
      %s89 = sphi 0, %s73
      %s93 = sphi 0, %s93
      %s95 = sphi 0, %s93
      %s96 = sphi 0, %s95
      %s110 = sphi 0, %s96
      %s114 = sphi 0, %s114
      %s116 = sphi 0, %s114
      %s117 = sphi 0, %s116
      %s131 = sphi 0, %s117
      %s135 = sphi 0, %s135
      %s137 = sphi 0, %s135
      %s138 = sphi 0, %s137
      %s152 = sphi 0, %s138
      %s156 = sphi 0, %s156
      %s158 = sphi 0, %s156
      %s159 = sphi 0, %s158
      %s173 = sphi 0, %s159
      %s177 = sphi 0, %s177
      %s179 = sphi 0, %s177
      %s180 = sphi 0, %s179
      %s194 = sphi 0, %s180
      %s198 = sphi 0, %s198
      %s200 = sphi 0, %s198
      %s201 = sphi 0, %s200
      %s215 = sphi 0, %s201
      %s219 = sphi 0, %s219
      %s221 = sphi 0, %s219
      %s222 = sphi 0, %s221
      %s236 = sphi 0, %s222
      %s240 = sphi 0, %s240
      %s242 = sphi 0, %s240
      %s243 = sphi 0, %s242
      %s257 = sphi 0, %s243
      %s261 = sphi 0, %s261
      %s263 = sphi 0, %s261
      %s264 = sphi 0, %s263
      %s278 = sphi 0, %s264
      %s282 = sphi 0, %s282
      %s284 = sphi 0, %s282
      %s285 = sphi 0, %s284
      %s299 = sphi 0, %s285
      %s303 = sphi 0, %s303
      %s305 = sphi 0, %s303
      %s306 = sphi 0, %s305
      %s320 = sphi 0, %s306
      %s324 = sphi 0, %s324
      %s326 = sphi 0, %s324
      %s327 = sphi 0, %s326
      %s341 = sphi 0, %s327
      %s345 = sphi 0, %s345
      %s347 = sphi 0, %s345
      %s348 = sphi 0, %s347
      %s362 = sphi 0, %s348
      %s366 = sphi 0, %s366
      %s368 = sphi 0, %s366
      %s369 = sphi 0, %s368
      %s383 = sphi 0, %s369
      %s387 = sphi 0, %s387
      %s389 = sphi 0, %s387
      %s390 = sphi 0, %s389
      %s404 = sphi 0, %s390
      %s408 = sphi 0, %s408
      %s410 = sphi 0, %s408
      %s411 = sphi 0, %s410
      %s425 = sphi 0, %s411
      %s429 = sphi 0, %s429
      %s431 = sphi 0, %s429
      %s432 = sphi 0, %s431
      %s446 = sphi 0, %s432
      %s450 = sphi 0, %s450
      %s452 = sphi 0, %s450
      %s453 = sphi 0, %s452
      %s467 = sphi 0, %s453
      %s471 = sphi 0, %s471
      %s473 = sphi 0, %s471
      %s474 = sphi 0, %s473
      %s488 = sphi 0, %s474
      %s492 = sphi 0, %s492
      %s494 = sphi 0, %s492
      %s495 = sphi 0, %s494
      %s509 = sphi 0, %s495
      %s513 = sphi 0, %s513
      %s515 = sphi 0, %s513
      %s516 = sphi 0, %s515
      %s530 = sphi 0, %s516
      %s534 = sphi 0, %s534
      %s536 = sphi 0, %s534
      %s537 = sphi 0, %s536
      %s551 = sphi 0, %s537
      %s557 = sphi 0, %s559
      %s560 = sphi 0, %s557
      %s561 = sphi 0, %s560
      %s577 = sphi 0, %s561
    $region4: #{bert_classification_forward.1} parent=1 // loop_header_branch
      %36 = sbr.rel (%p34) target = $region8
    $region5: #{bert_classification_forward.1} parent=1 // loop_body
      %s38 = ssub.s32 %s33, 1
      %s39 = ssub.s32 %s33, 2
      %s40 = sadd.s32 %s33, 1
      %s41 = ssub.s32 %s33, %s40
      %p42 = scmp.eq.s32.totalorder %s41, 0
      %s44 = sadd.s32 %s43, 1
      %s45 = scalar_select %p42, %s43, %s44
      %p48 = pneg %p42
      %p49 = scmp.eq.s32.totalorder %s33, 1
      %p50 = por %p48, %p49
      %p51 = scmp.ne.s32.totalorder %s43, %s46
      %p52 = scmp.eq.s32.totalorder %s33, 0
      %p53 = por %p51, %p52
      %p54 = scmp.ne.s32.totalorder %s43, %s46
      %p55 = scmp.eq.s32.totalorder %s38, 1
      %p56 = por %p54, %p55
      %p57 = scmp.ne.s32.totalorder %s46, %s47
      %p58 = scmp.eq.s32.totalorder %s38, 0
      %p59 = por %p57, %p58
      %p60 = scmp.ne.s32.totalorder %s46, %s47
      %p61 = scmp.eq.s32.totalorder %s39, 1
      %p62 = por %p60, %p61
      %p64 = scmp.ne.s32.totalorder %s47, %s63
      %p65 = scmp.eq.s32.totalorder %s39, 0
      %p66 = por %p64, %p65
      %s67 = ssub.s32 %s33, %s40
      %p68 = scmp.eq.s32.totalorder %s67, 0
      %s70 = sadd.s32 %s69, 1
      %s71 = scalar_select %p68, %s69, %s70
      %p74 = pneg %p68
      %p75 = scmp.eq.s32.totalorder %s33, 1
      %p76 = por %p74, %p75
      %p77 = scmp.ne.s32.totalorder %s69, %s72
      %p78 = scmp.eq.s32.totalorder %s33, 0
      %p79 = por %p77, %p78
      %p80 = scmp.ne.s32.totalorder %s69, %s72
      %p81 = scmp.eq.s32.totalorder %s38, 1
      %p82 = por %p80, %p81
      %p83 = scmp.ne.s32.totalorder %s72, %s73
      %p84 = scmp.eq.s32.totalorder %s38, 0
      %p85 = por %p83, %p84
      %p86 = scmp.ne.s32.totalorder %s72, %s73
      %p87 = scmp.eq.s32.totalorder %s39, 1
      %p88 = por %p86, %p87
      %p90 = scmp.ne.s32.totalorder %s73, %s89
      %p91 = scmp.eq.s32.totalorder %s39, 0
      %p92 = por %p90, %p91
      %s94 = sadd.s32 %s93, 1
      %p97 = scmp.eq.s32.totalorder %s33, 1
      %p98 = scmp.ne.s32.totalorder %s93, %s95
      %p99 = scmp.eq.s32.totalorder %s33, 0
      %p100 = por %p98, %p99
      %p101 = scmp.ne.s32.totalorder %s93, %s95
      %p102 = scmp.eq.s32.totalorder %s38, 1
      %p103 = por %p101, %p102
      %p104 = scmp.ne.s32.totalorder %s95, %s96
      %p105 = scmp.eq.s32.totalorder %s38, 0
      %p106 = por %p104, %p105
      %p107 = scmp.ne.s32.totalorder %s95, %s96
      %p108 = scmp.eq.s32.totalorder %s39, 1
      %p109 = por %p107, %p108
      %p111 = scmp.ne.s32.totalorder %s96, %s110
      %p112 = scmp.eq.s32.totalorder %s39, 0
      %p113 = por %p111, %p112
      %s115 = sadd.s32 %s114, 1
      %p118 = scmp.eq.s32.totalorder %s33, 1
      %p119 = scmp.ne.s32.totalorder %s114, %s116
      %p120 = scmp.eq.s32.totalorder %s33, 0
      %p121 = por %p119, %p120
      %p122 = scmp.ne.s32.totalorder %s114, %s116
      %p123 = scmp.eq.s32.totalorder %s38, 1
      %p124 = por %p122, %p123
      %p125 = scmp.ne.s32.totalorder %s116, %s117
      %p126 = scmp.eq.s32.totalorder %s38, 0
      %p127 = por %p125, %p126
      %p128 = scmp.ne.s32.totalorder %s116, %s117
      %p129 = scmp.eq.s32.totalorder %s39, 1
      %p130 = por %p128, %p129
      %p132 = scmp.ne.s32.totalorder %s117, %s131
      %p133 = scmp.eq.s32.totalorder %s39, 0
      %p134 = por %p132, %p133
      %s136 = sadd.s32 %s135, 1
      %p139 = scmp.eq.s32.totalorder %s33, 1
      %p140 = scmp.ne.s32.totalorder %s135, %s137
      %p141 = scmp.eq.s32.totalorder %s33, 0
      %p142 = por %p140, %p141
      %p143 = scmp.ne.s32.totalorder %s135, %s137
      %p144 = scmp.eq.s32.totalorder %s38, 1
      %p145 = por %p143, %p144
      %p146 = scmp.ne.s32.totalorder %s137, %s138
      %p147 = scmp.eq.s32.totalorder %s38, 0
      %p148 = por %p146, %p147
      %p149 = scmp.ne.s32.totalorder %s137, %s138
      %p150 = scmp.eq.s32.totalorder %s39, 1
      %p151 = por %p149, %p150
      %p153 = scmp.ne.s32.totalorder %s138, %s152
      %p154 = scmp.eq.s32.totalorder %s39, 0
      %p155 = por %p153, %p154
      %s157 = sadd.s32 %s156, 1
      %p160 = scmp.eq.s32.totalorder %s33, 1
      %p161 = scmp.ne.s32.totalorder %s156, %s158
      %p162 = scmp.eq.s32.totalorder %s33, 0
      %p163 = por %p161, %p162
      %p164 = scmp.ne.s32.totalorder %s156, %s158
      %p165 = scmp.eq.s32.totalorder %s38, 1
      %p166 = por %p164, %p165
      %p167 = scmp.ne.s32.totalorder %s158, %s159
      %p168 = scmp.eq.s32.totalorder %s38, 0
      %p169 = por %p167, %p168
      %p170 = scmp.ne.s32.totalorder %s158, %s159
      %p171 = scmp.eq.s32.totalorder %s39, 1
      %p172 = por %p170, %p171
      %p174 = scmp.ne.s32.totalorder %s159, %s173
      %p175 = scmp.eq.s32.totalorder %s39, 0
      %p176 = por %p174, %p175
      %s178 = sadd.s32 %s177, 1
      %p181 = scmp.eq.s32.totalorder %s33, 1
      %p182 = scmp.ne.s32.totalorder %s177, %s179
      %p183 = scmp.eq.s32.totalorder %s33, 0
      %p184 = por %p182, %p183
      %p185 = scmp.ne.s32.totalorder %s177, %s179
      %p186 = scmp.eq.s32.totalorder %s38, 1
      %p187 = por %p185, %p186
      %p188 = scmp.ne.s32.totalorder %s179, %s180
      %p189 = scmp.eq.s32.totalorder %s38, 0
      %p190 = por %p188, %p189
      %p191 = scmp.ne.s32.totalorder %s179, %s180
      %p192 = scmp.eq.s32.totalorder %s39, 1
      %p193 = por %p191, %p192
      %p195 = scmp.ne.s32.totalorder %s180, %s194
      %p196 = scmp.eq.s32.totalorder %s39, 0
      %p197 = por %p195, %p196
      %s199 = sadd.s32 %s198, 1
      %p202 = scmp.eq.s32.totalorder %s33, 1
      %p203 = scmp.ne.s32.totalorder %s198, %s200
      %p204 = scmp.eq.s32.totalorder %s33, 0
      %p205 = por %p203, %p204
      %p206 = scmp.ne.s32.totalorder %s198, %s200
      %p207 = scmp.eq.s32.totalorder %s38, 1
      %p208 = por %p206, %p207
      %p209 = scmp.ne.s32.totalorder %s200, %s201
      %p210 = scmp.eq.s32.totalorder %s38, 0
      %p211 = por %p209, %p210
      %p212 = scmp.ne.s32.totalorder %s200, %s201
      %p213 = scmp.eq.s32.totalorder %s39, 1
      %p214 = por %p212, %p213
      %p216 = scmp.ne.s32.totalorder %s201, %s215
      %p217 = scmp.eq.s32.totalorder %s39, 0
      %p218 = por %p216, %p217
      %s220 = sadd.s32 %s219, 1
      %p223 = scmp.eq.s32.totalorder %s33, 1
      %p224 = scmp.ne.s32.totalorder %s219, %s221
      %p225 = scmp.eq.s32.totalorder %s33, 0
      %p226 = por %p224, %p225
      %p227 = scmp.ne.s32.totalorder %s219, %s221
      %p228 = scmp.eq.s32.totalorder %s38, 1
      %p229 = por %p227, %p228
      %p230 = scmp.ne.s32.totalorder %s221, %s222
      %p231 = scmp.eq.s32.totalorder %s38, 0
      %p232 = por %p230, %p231
      %p233 = scmp.ne.s32.totalorder %s221, %s222
      %p234 = scmp.eq.s32.totalorder %s39, 1
      %p235 = por %p233, %p234
      %p237 = scmp.ne.s32.totalorder %s222, %s236
      %p238 = scmp.eq.s32.totalorder %s39, 0
      %p239 = por %p237, %p238
      %s241 = sadd.s32 %s240, 1
      %p244 = scmp.eq.s32.totalorder %s33, 1
      %p245 = scmp.ne.s32.totalorder %s240, %s242
      %p246 = scmp.eq.s32.totalorder %s33, 0
      %p247 = por %p245, %p246
      %p248 = scmp.ne.s32.totalorder %s240, %s242
      %p249 = scmp.eq.s32.totalorder %s38, 1
      %p250 = por %p248, %p249
      %p251 = scmp.ne.s32.totalorder %s242, %s243
      %p252 = scmp.eq.s32.totalorder %s38, 0
      %p253 = por %p251, %p252
      %p254 = scmp.ne.s32.totalorder %s242, %s243
      %p255 = scmp.eq.s32.totalorder %s39, 1
      %p256 = por %p254, %p255
      %p258 = scmp.ne.s32.totalorder %s243, %s257
      %p259 = scmp.eq.s32.totalorder %s39, 0
      %p260 = por %p258, %p259
      %s262 = sadd.s32 %s261, 1
      %p265 = scmp.eq.s32.totalorder %s33, 1
      %p266 = scmp.ne.s32.totalorder %s261, %s263
      %p267 = scmp.eq.s32.totalorder %s33, 0
      %p268 = por %p266, %p267
      %p269 = scmp.ne.s32.totalorder %s261, %s263
      %p270 = scmp.eq.s32.totalorder %s38, 1
      %p271 = por %p269, %p270
      %p272 = scmp.ne.s32.totalorder %s263, %s264
      %p273 = scmp.eq.s32.totalorder %s38, 0
      %p274 = por %p272, %p273
      %p275 = scmp.ne.s32.totalorder %s263, %s264
      %p276 = scmp.eq.s32.totalorder %s39, 1
      %p277 = por %p275, %p276
      %p279 = scmp.ne.s32.totalorder %s264, %s278
      %p280 = scmp.eq.s32.totalorder %s39, 0
      %p281 = por %p279, %p280
      %s283 = sadd.s32 %s282, 1
      %p286 = scmp.eq.s32.totalorder %s33, 1
      %p287 = scmp.ne.s32.totalorder %s282, %s284
      %p288 = scmp.eq.s32.totalorder %s33, 0
      %p289 = por %p287, %p288
      %p290 = scmp.ne.s32.totalorder %s282, %s284
      %p291 = scmp.eq.s32.totalorder %s38, 1
      %p292 = por %p290, %p291
      %p293 = scmp.ne.s32.totalorder %s284, %s285
      %p294 = scmp.eq.s32.totalorder %s38, 0
      %p295 = por %p293, %p294
      %p296 = scmp.ne.s32.totalorder %s284, %s285
      %p297 = scmp.eq.s32.totalorder %s39, 1
      %p298 = por %p296, %p297
      %p300 = scmp.ne.s32.totalorder %s285, %s299
      %p301 = scmp.eq.s32.totalorder %s39, 0
      %p302 = por %p300, %p301
      %s304 = sadd.s32 %s303, 1
      %p307 = scmp.eq.s32.totalorder %s33, 1
      %p308 = scmp.ne.s32.totalorder %s303, %s305
      %p309 = scmp.eq.s32.totalorder %s33, 0
      %p310 = por %p308, %p309
      %p311 = scmp.ne.s32.totalorder %s303, %s305
      %p312 = scmp.eq.s32.totalorder %s38, 1
      %p313 = por %p311, %p312
      %p314 = scmp.ne.s32.totalorder %s305, %s306
      %p315 = scmp.eq.s32.totalorder %s38, 0
      %p316 = por %p314, %p315
      %p317 = scmp.ne.s32.totalorder %s305, %s306
      %p318 = scmp.eq.s32.totalorder %s39, 1
      %p319 = por %p317, %p318
      %p321 = scmp.ne.s32.totalorder %s306, %s320
      %p322 = scmp.eq.s32.totalorder %s39, 0
      %p323 = por %p321, %p322
      %s325 = sadd.s32 %s324, 1
      %p328 = scmp.eq.s32.totalorder %s33, 1
      %p329 = scmp.ne.s32.totalorder %s324, %s326
      %p330 = scmp.eq.s32.totalorder %s33, 0
      %p331 = por %p329, %p330
      %p332 = scmp.ne.s32.totalorder %s324, %s326
      %p333 = scmp.eq.s32.totalorder %s38, 1
      %p334 = por %p332, %p333
      %p335 = scmp.ne.s32.totalorder %s326, %s327
      %p336 = scmp.eq.s32.totalorder %s38, 0
      %p337 = por %p335, %p336
      %p338 = scmp.ne.s32.totalorder %s326, %s327
      %p339 = scmp.eq.s32.totalorder %s39, 1
      %p340 = por %p338, %p339
      %p342 = scmp.ne.s32.totalorder %s327, %s341
      %p343 = scmp.eq.s32.totalorder %s39, 0
      %p344 = por %p342, %p343
      %s346 = sadd.s32 %s345, 1
      %p349 = scmp.eq.s32.totalorder %s33, 1
      %p350 = scmp.ne.s32.totalorder %s345, %s347
      %p351 = scmp.eq.s32.totalorder %s33, 0
      %p352 = por %p350, %p351
      %p353 = scmp.ne.s32.totalorder %s345, %s347
      %p354 = scmp.eq.s32.totalorder %s38, 1
      %p355 = por %p353, %p354
      %p356 = scmp.ne.s32.totalorder %s347, %s348
      %p357 = scmp.eq.s32.totalorder %s38, 0
      %p358 = por %p356, %p357
      %p359 = scmp.ne.s32.totalorder %s347, %s348
      %p360 = scmp.eq.s32.totalorder %s39, 1
      %p361 = por %p359, %p360
      %p363 = scmp.ne.s32.totalorder %s348, %s362
      %p364 = scmp.eq.s32.totalorder %s39, 0
      %p365 = por %p363, %p364
      %s367 = sadd.s32 %s366, 1
      %p370 = scmp.eq.s32.totalorder %s33, 1
      %p371 = scmp.ne.s32.totalorder %s366, %s368
      %p372 = scmp.eq.s32.totalorder %s33, 0
      %p373 = por %p371, %p372
      %p374 = scmp.ne.s32.totalorder %s366, %s368
      %p375 = scmp.eq.s32.totalorder %s38, 1
      %p376 = por %p374, %p375
      %p377 = scmp.ne.s32.totalorder %s368, %s369
      %p378 = scmp.eq.s32.totalorder %s38, 0
      %p379 = por %p377, %p378
      %p380 = scmp.ne.s32.totalorder %s368, %s369
      %p381 = scmp.eq.s32.totalorder %s39, 1
      %p382 = por %p380, %p381
      %p384 = scmp.ne.s32.totalorder %s369, %s383
      %p385 = scmp.eq.s32.totalorder %s39, 0
      %p386 = por %p384, %p385
      %s388 = sadd.s32 %s387, 1
      %p391 = scmp.eq.s32.totalorder %s33, 1
      %p392 = scmp.ne.s32.totalorder %s387, %s389
      %p393 = scmp.eq.s32.totalorder %s33, 0
      %p394 = por %p392, %p393
      %p395 = scmp.ne.s32.totalorder %s387, %s389
      %p396 = scmp.eq.s32.totalorder %s38, 1
      %p397 = por %p395, %p396
      %p398 = scmp.ne.s32.totalorder %s389, %s390
      %p399 = scmp.eq.s32.totalorder %s38, 0
      %p400 = por %p398, %p399
      %p401 = scmp.ne.s32.totalorder %s389, %s390
      %p402 = scmp.eq.s32.totalorder %s39, 1
      %p403 = por %p401, %p402
      %p405 = scmp.ne.s32.totalorder %s390, %s404
      %p406 = scmp.eq.s32.totalorder %s39, 0
      %p407 = por %p405, %p406
      %s409 = sadd.s32 %s408, 1
      %p412 = scmp.eq.s32.totalorder %s33, 1
      %p413 = scmp.ne.s32.totalorder %s408, %s410
      %p414 = scmp.eq.s32.totalorder %s33, 0
      %p415 = por %p413, %p414
      %p416 = scmp.ne.s32.totalorder %s408, %s410
      %p417 = scmp.eq.s32.totalorder %s38, 1
      %p418 = por %p416, %p417
      %p419 = scmp.ne.s32.totalorder %s410, %s411
      %p420 = scmp.eq.s32.totalorder %s38, 0
      %p421 = por %p419, %p420
      %p422 = scmp.ne.s32.totalorder %s410, %s411
      %p423 = scmp.eq.s32.totalorder %s39, 1
      %p424 = por %p422, %p423
      %p426 = scmp.ne.s32.totalorder %s411, %s425
      %p427 = scmp.eq.s32.totalorder %s39, 0
      %p428 = por %p426, %p427
      %s430 = sadd.s32 %s429, 1
      %p433 = scmp.eq.s32.totalorder %s33, 1
      %p434 = scmp.ne.s32.totalorder %s429, %s431
      %p435 = scmp.eq.s32.totalorder %s33, 0
      %p436 = por %p434, %p435
      %p437 = scmp.ne.s32.totalorder %s429, %s431
      %p438 = scmp.eq.s32.totalorder %s38, 1
      %p439 = por %p437, %p438
      %p440 = scmp.ne.s32.totalorder %s431, %s432
      %p441 = scmp.eq.s32.totalorder %s38, 0
      %p442 = por %p440, %p441
      %p443 = scmp.ne.s32.totalorder %s431, %s432
      %p444 = scmp.eq.s32.totalorder %s39, 1
      %p445 = por %p443, %p444
      %p447 = scmp.ne.s32.totalorder %s432, %s446
      %p448 = scmp.eq.s32.totalorder %s39, 0
      %p449 = por %p447, %p448
      %s451 = sadd.s32 %s450, 1
      %p454 = scmp.eq.s32.totalorder %s33, 1
      %p455 = scmp.ne.s32.totalorder %s450, %s452
      %p456 = scmp.eq.s32.totalorder %s33, 0
      %p457 = por %p455, %p456
      %p458 = scmp.ne.s32.totalorder %s450, %s452
      %p459 = scmp.eq.s32.totalorder %s38, 1
      %p460 = por %p458, %p459
      %p461 = scmp.ne.s32.totalorder %s452, %s453
      %p462 = scmp.eq.s32.totalorder %s38, 0
      %p463 = por %p461, %p462
      %p464 = scmp.ne.s32.totalorder %s452, %s453
      %p465 = scmp.eq.s32.totalorder %s39, 1
      %p466 = por %p464, %p465
      %p468 = scmp.ne.s32.totalorder %s453, %s467
      %p469 = scmp.eq.s32.totalorder %s39, 0
      %p470 = por %p468, %p469
      %s472 = sadd.s32 %s471, 1
      %p475 = scmp.eq.s32.totalorder %s33, 1
      %p476 = scmp.ne.s32.totalorder %s471, %s473
      %p477 = scmp.eq.s32.totalorder %s33, 0
      %p478 = por %p476, %p477
      %p479 = scmp.ne.s32.totalorder %s471, %s473
      %p480 = scmp.eq.s32.totalorder %s38, 1
      %p481 = por %p479, %p480
      %p482 = scmp.ne.s32.totalorder %s473, %s474
      %p483 = scmp.eq.s32.totalorder %s38, 0
      %p484 = por %p482, %p483
      %p485 = scmp.ne.s32.totalorder %s473, %s474
      %p486 = scmp.eq.s32.totalorder %s39, 1
      %p487 = por %p485, %p486
      %p489 = scmp.ne.s32.totalorder %s474, %s488
      %p490 = scmp.eq.s32.totalorder %s39, 0
      %p491 = por %p489, %p490
      %s493 = sadd.s32 %s492, 1
      %p496 = scmp.eq.s32.totalorder %s33, 1
      %p497 = scmp.ne.s32.totalorder %s492, %s494
      %p498 = scmp.eq.s32.totalorder %s33, 0
      %p499 = por %p497, %p498
      %p500 = scmp.ne.s32.totalorder %s492, %s494
      %p501 = scmp.eq.s32.totalorder %s38, 1
      %p502 = por %p500, %p501
      %p503 = scmp.ne.s32.totalorder %s494, %s495
      %p504 = scmp.eq.s32.totalorder %s38, 0
      %p505 = por %p503, %p504
      %p506 = scmp.ne.s32.totalorder %s494, %s495
      %p507 = scmp.eq.s32.totalorder %s39, 1
      %p508 = por %p506, %p507
      %p510 = scmp.ne.s32.totalorder %s495, %s509
      %p511 = scmp.eq.s32.totalorder %s39, 0
      %p512 = por %p510, %p511
      %s514 = sadd.s32 %s513, 1
      %p517 = scmp.eq.s32.totalorder %s33, 1
      %p518 = scmp.ne.s32.totalorder %s513, %s515
      %p519 = scmp.eq.s32.totalorder %s33, 0
      %p520 = por %p518, %p519
      %p521 = scmp.ne.s32.totalorder %s513, %s515
      %p522 = scmp.eq.s32.totalorder %s38, 1
      %p523 = por %p521, %p522
      %p524 = scmp.ne.s32.totalorder %s515, %s516
      %p525 = scmp.eq.s32.totalorder %s38, 0
      %p526 = por %p524, %p525
      %p527 = scmp.ne.s32.totalorder %s515, %s516
      %p528 = scmp.eq.s32.totalorder %s39, 1
      %p529 = por %p527, %p528
      %p531 = scmp.ne.s32.totalorder %s516, %s530
      %p532 = scmp.eq.s32.totalorder %s39, 0
      %p533 = por %p531, %p532
      %s535 = sadd.s32 %s534, 1
      %p538 = scmp.eq.s32.totalorder %s33, 1
      %p539 = scmp.ne.s32.totalorder %s534, %s536
      %p540 = scmp.eq.s32.totalorder %s33, 0
      %p541 = por %p539, %p540
      %p542 = scmp.ne.s32.totalorder %s534, %s536
      %p543 = scmp.eq.s32.totalorder %s38, 1
      %p544 = por %p542, %p543
      %p545 = scmp.ne.s32.totalorder %s536, %s537
      %p546 = scmp.eq.s32.totalorder %s38, 0
      %p547 = por %p545, %p546
      %p548 = scmp.ne.s32.totalorder %s536, %s537
      %p549 = scmp.eq.s32.totalorder %s39, 1
      %p550 = por %p548, %p549
      %p552 = scmp.ne.s32.totalorder %s537, %s551
      %p553 = scmp.eq.s32.totalorder %s39, 0
      %p554 = por %p552, %p553
      %s555 = ssub.s32 %s33, %s40
      %p556 = scmp.eq.s32.totalorder %s555, 0
      %s558 = sadd.s32 %s557, 1
      %s559 = scalar_select %p556, %s557, %s558
      %p562 = pneg %p556
      %p563 = scmp.eq.s32.totalorder %s33, 1
      %p564 = por %p562, %p563
      %p565 = scmp.ne.s32.totalorder %s557, %s560
      %p566 = scmp.eq.s32.totalorder %s33, 0
      %p567 = por %p565, %p566
      %p568 = scmp.ne.s32.totalorder %s557, %s560
      %p569 = scmp.eq.s32.totalorder %s38, 1
      %p570 = por %p568, %p569
      %p571 = scmp.ne.s32.totalorder %s560, %s561
      %p572 = scmp.eq.s32.totalorder %s38, 0
      %p573 = por %p571, %p572
      %p574 = scmp.ne.s32.totalorder %s560, %s561
      %p575 = scmp.eq.s32.totalorder %s39, 1
      %p576 = por %p574, %p575
      %p578 = scmp.ne.s32.totalorder %s561, %s577
      %p579 = scmp.eq.s32.totalorder %s39, 0
      %p580 = por %p578, %p579
      %p581 = scmp.le.s32.totalorder 1, %s33
      %p582 = scmp.lt.s32.totalorder %s33, 3
      %p583 = pnand %p581, %p582
      %p584 = pneg %p583
      // Predicated region
      $region9: #{bert_classification_forward.1} parent=5 // pred_check
        _
      $region10: #{bert_classification_forward.1} parent=5 // pred_check_branch
        %586 = sbr.rel (%p583) target = $region12
      $region11: #{bert_classification_forward.1} parent=5 // pred_region
        %s587 = ssub.s32 %s33, 1
        // Predicated region
        $region13: #{bert_classification_forward.1} parent=11 // pred_check
          %p588 = pneg %p106
        $region14: #{bert_classification_forward.1} parent=11 // pred_check_branch
          %590 = sbr.rel (%p588) target = $region16
        $region15: #{bert_classification_forward.1} parent=11 // pred_region
          _
        $region16: #{bert_classification_forward.1} parent=11 // pred_fallthru
          _
        // Predicated region
        $region17: #{bert_classification_forward.1} parent=11 // pred_check
          %p591 = pneg %p127
        $region18: #{bert_classification_forward.1} parent=11 // pred_check_branch
          %593 = sbr.rel (%p591) target = $region20
        $region19: #{bert_classification_forward.1} parent=11 // pred_region
          _
        $region20: #{bert_classification_forward.1} parent=11 // pred_fallthru
          _
        // Predicated region
        $region21: #{bert_classification_forward.1} parent=11 // pred_check
          %p594 = pneg %p148
        $region22: #{bert_classification_forward.1} parent=11 // pred_check_branch
          %596 = sbr.rel (%p594) target = $region24
        $region23: #{bert_classification_forward.1} parent=11 // pred_region
          _
        $region24: #{bert_classification_forward.1} parent=11 // pred_fallthru
          _
        // Predicated region
        $region25: #{bert_classification_forward.1} parent=11 // pred_check
          %p597 = pneg %p169
        $region26: #{bert_classification_forward.1} parent=11 // pred_check_branch
          %599 = sbr.rel (%p597) target = $region28
        $region27: #{bert_classification_forward.1} parent=11 // pred_region
          _
        $region28: #{bert_classification_forward.1} parent=11 // pred_fallthru
          _
        // Predicated region
        $region29: #{bert_classification_forward.1} parent=11 // pred_check
          %p600 = pneg %p190
        $region30: #{bert_classification_forward.1} parent=11 // pred_check_branch
          %602 = sbr.rel (%p600) target = $region32
        $region31: #{bert_classification_forward.1} parent=11 // pred_region
          _
        $region32: #{bert_classification_forward.1} parent=11 // pred_fallthru
          _
        // Predicated region
        $region33: #{bert_classification_forward.1} parent=11 // pred_check
          %p603 = pneg %p211
        $region34: #{bert_classification_forward.1} parent=11 // pred_check_branch
          %605 = sbr.rel (%p603) target = $region36
        $region35: #{bert_classification_forward.1} parent=11 // pred_region
          _
        $region36: #{bert_classification_forward.1} parent=11 // pred_fallthru
          _
        // Predicated region
        $region37: #{bert_classification_forward.1} parent=11 // pred_check
          %p606 = pneg %p232
        $region38: #{bert_classification_forward.1} parent=11 // pred_check_branch
          %608 = sbr.rel (%p606) target = $region40
        $region39: #{bert_classification_forward.1} parent=11 // pred_region
          _
        $region40: #{bert_classification_forward.1} parent=11 // pred_fallthru
          _
        // Predicated region
        $region41: #{bert_classification_forward.1} parent=11 // pred_check
          %p609 = pneg %p253
        $region42: #{bert_classification_forward.1} parent=11 // pred_check_branch
          %611 = sbr.rel (%p609) target = $region44
        $region43: #{bert_classification_forward.1} parent=11 // pred_region
          _
        $region44: #{bert_classification_forward.1} parent=11 // pred_fallthru
          _
        // Predicated region
        $region45: #{bert_classification_forward.1} parent=11 // pred_check
          %p612 = pneg %p274
        $region46: #{bert_classification_forward.1} parent=11 // pred_check_branch
          %614 = sbr.rel (%p612) target = $region48
        $region47: #{bert_classification_forward.1} parent=11 // pred_region
          _
        $region48: #{bert_classification_forward.1} parent=11 // pred_fallthru
          _
        // Predicated region
        $region49: #{bert_classification_forward.1} parent=11 // pred_check
          %p615 = pneg %p295
        $region50: #{bert_classification_forward.1} parent=11 // pred_check_branch
          %617 = sbr.rel (%p615) target = $region52
        $region51: #{bert_classification_forward.1} parent=11 // pred_region
          _
        $region52: #{bert_classification_forward.1} parent=11 // pred_fallthru
          _
        // Predicated region
        $region53: #{bert_classification_forward.1} parent=11 // pred_check
          %p618 = pneg %p316
        $region54: #{bert_classification_forward.1} parent=11 // pred_check_branch
          %620 = sbr.rel (%p618) target = $region56
        $region55: #{bert_classification_forward.1} parent=11 // pred_region
          _
        $region56: #{bert_classification_forward.1} parent=11 // pred_fallthru
          _
        // Predicated region
        $region57: #{bert_classification_forward.1} parent=11 // pred_check
          %p621 = pneg %p337
        $region58: #{bert_classification_forward.1} parent=11 // pred_check_branch
          %623 = sbr.rel (%p621) target = $region60
        $region59: #{bert_classification_forward.1} parent=11 // pred_region
          _
        $region60: #{bert_classification_forward.1} parent=11 // pred_fallthru
          _
        // Predicated region
        $region61: #{bert_classification_forward.1} parent=11 // pred_check
          %p624 = pneg %p358
        $region62: #{bert_classification_forward.1} parent=11 // pred_check_branch
          %626 = sbr.rel (%p624) target = $region64
        $region63: #{bert_classification_forward.1} parent=11 // pred_region
          _
        $region64: #{bert_classification_forward.1} parent=11 // pred_fallthru
          _
        // Predicated region
        $region65: #{bert_classification_forward.1} parent=11 // pred_check
          %p627 = pneg %p379
        $region66: #{bert_classification_forward.1} parent=11 // pred_check_branch
          %629 = sbr.rel (%p627) target = $region68
        $region67: #{bert_classification_forward.1} parent=11 // pred_region
          _
        $region68: #{bert_classification_forward.1} parent=11 // pred_fallthru
          _
        // Predicated region
        $region69: #{bert_classification_forward.1} parent=11 // pred_check
          %p630 = pneg %p400
        $region70: #{bert_classification_forward.1} parent=11 // pred_check_branch
          %632 = sbr.rel (%p630) target = $region72
        $region71: #{bert_classification_forward.1} parent=11 // pred_region
          _
        $region72: #{bert_classification_forward.1} parent=11 // pred_fallthru
          _
        // Predicated region
        $region73: #{bert_classification_forward.1} parent=11 // pred_check
          %p633 = pneg %p421
        $region74: #{bert_classification_forward.1} parent=11 // pred_check_branch
          %635 = sbr.rel (%p633) target = $region76
        $region75: #{bert_classification_forward.1} parent=11 // pred_region
          _
        $region76: #{bert_classification_forward.1} parent=11 // pred_fallthru
          _
        // Predicated region
        $region77: #{bert_classification_forward.1} parent=11 // pred_check
          %p636 = pneg %p442
        $region78: #{bert_classification_forward.1} parent=11 // pred_check_branch
          %638 = sbr.rel (%p636) target = $region80
        $region79: #{bert_classification_forward.1} parent=11 // pred_region
          _
        $region80: #{bert_classification_forward.1} parent=11 // pred_fallthru
          _
        // Predicated region
        $region81: #{bert_classification_forward.1} parent=11 // pred_check
          %p639 = pneg %p463
        $region82: #{bert_classification_forward.1} parent=11 // pred_check_branch
          %641 = sbr.rel (%p639) target = $region84
        $region83: #{bert_classification_forward.1} parent=11 // pred_region
          _
        $region84: #{bert_classification_forward.1} parent=11 // pred_fallthru
          _
        // Predicated region
        $region85: #{bert_classification_forward.1} parent=11 // pred_check
          %p642 = pneg %p484
        $region86: #{bert_classification_forward.1} parent=11 // pred_check_branch
          %644 = sbr.rel (%p642) target = $region88
        $region87: #{bert_classification_forward.1} parent=11 // pred_region
          _
        $region88: #{bert_classification_forward.1} parent=11 // pred_fallthru
          _
        // Predicated region
        $region89: #{bert_classification_forward.1} parent=11 // pred_check
          %p645 = pneg %p505
        $region90: #{bert_classification_forward.1} parent=11 // pred_check_branch
          %647 = sbr.rel (%p645) target = $region92
        $region91: #{bert_classification_forward.1} parent=11 // pred_region
          _
        $region92: #{bert_classification_forward.1} parent=11 // pred_fallthru
          _
        // Predicated region
        $region93: #{bert_classification_forward.1} parent=11 // pred_check
          %p648 = pneg %p526
        $region94: #{bert_classification_forward.1} parent=11 // pred_check_branch
          %650 = sbr.rel (%p648) target = $region96
        $region95: #{bert_classification_forward.1} parent=11 // pred_region
          _
        $region96: #{bert_classification_forward.1} parent=11 // pred_fallthru
          _
        // Predicated region
        $region97: #{bert_classification_forward.1} parent=11 // pred_check
          %p651 = pneg %p547
        $region98: #{bert_classification_forward.1} parent=11 // pred_check_branch
          %653 = sbr.rel (%p651) target = $region100
        $region99: #{bert_classification_forward.1} parent=11 // pred_region
          _
        $region100: #{bert_classification_forward.1} parent=11 // pred_fallthru
          _
      $region12: #{bert_classification_forward.1} parent=5 // pred_fallthru
        _
      %p654 = scmp.lt.s32.totalorder %s33, 2
      // Predicated region
      $region101: #{bert_classification_forward.1} parent=5 // pred_check
        %p655 = pneg %p654
      $region102: #{bert_classification_forward.1} parent=5 // pred_check_branch
        %657 = sbr.rel (%p655) target = $region104
      $region103: #{bert_classification_forward.1} parent=5 // pred_region
        // Predicated region
        $region105: #{bert_classification_forward.1} parent=103 // pred_check
          %p658 = pneg %p53
        $region106: #{bert_classification_forward.1} parent=103 // pred_check_branch
          %660 = sbr.rel (%p658) target = $region108
        $region107: #{bert_classification_forward.1} parent=103 // pred_region
          %p661 = scmp.lt.s32.totalorder %s33, 1
          %s662 = scalar_select %p661, %s33, 1
          %s663 = smul.addr %s662, 8
          %s664 = scalar_lea.vmem %s0, %s663
        $region108: #{bert_classification_forward.1} parent=103 // pred_fallthru
          _
        // Predicated region
        $region109: #{bert_classification_forward.1} parent=103 // pred_check
          %p665 = pneg %p79
        $region110: #{bert_classification_forward.1} parent=103 // pred_check_branch
          %667 = sbr.rel (%p665) target = $region112
        $region111: #{bert_classification_forward.1} parent=103 // pred_region
          %p668 = scmp.lt.s32.totalorder %s33, 1
          %s669 = scalar_select %p668, %s33, 1
          %s670 = scalar_lea.vmem %s1, %s669
        $region112: #{bert_classification_forward.1} parent=103 // pred_fallthru
          _
      $region104: #{bert_classification_forward.1} parent=5 // pred_fallthru
        _
      %p671 = scmp.le.s32.totalorder 1, %s33
      %p672 = scmp.lt.s32.totalorder %s33, 3
      %p673 = pnand %p671, %p672
      %p674 = pneg %p673
      // Predicated region
      $region113: #{bert_classification_forward.1} parent=5 // pred_check
        _
      $region114: #{bert_classification_forward.1} parent=5 // pred_check_branch
        %676 = sbr.rel (%p673) target = $region116
      $region115: #{bert_classification_forward.1} parent=5 // pred_region
        %s677 = ssub.s32 %s33, 1
        %p678 = scmp.lt.s32.totalorder %s38, 1
        %s679 = scalar_select %p678, %s38, 1
        %s680 = smul.addr %s679, 8
        %s681 = scalar_lea.vmem %s0, %s680
        %p682 = pneg %p59
        %p683 = pneg %p56
        %p684 = scmp.lt.s32.totalorder %s38, 1
        %s685 = scalar_select %p684, %s38, 1
        %s686 = scalar_lea.vmem %s1, %s685
        %p687 = pneg %p85
        %p688 = pneg %p82
        %p689 = pneg %p106
        %p690 = pneg %p103
        %p691 = pneg %p127
        %p692 = pneg %p124
        %p693 = pneg %p148
        %p694 = pneg %p145
        %p695 = pneg %p169
        %p696 = pneg %p166
        %p697 = pneg %p190
        %p698 = pneg %p187
        %p699 = pneg %p211
        %p700 = pneg %p208
        %p701 = pneg %p232
        %p702 = pneg %p229
        %p703 = pneg %p253
        %p704 = pneg %p250
        %p705 = pneg %p274
        %p706 = pneg %p271
        %p707 = pneg %p295
        %p708 = pneg %p292
        %p709 = pneg %p316
        %p710 = pneg %p313
        %p711 = pneg %p337
        %p712 = pneg %p334
        %p713 = pneg %p358
        %p714 = pneg %p355
        %p715 = pneg %p379
        %p716 = pneg %p376
        %p717 = pneg %p400
        %p718 = pneg %p397
        %p719 = pneg %p421
        %p720 = pneg %p418
        %p721 = pneg %p442
        %p722 = pneg %p439
        %p723 = pneg %p463
        %p724 = pneg %p460
        %p725 = pneg %p484
        %p726 = pneg %p481
        %p727 = pneg %p505
        %p728 = pneg %p502
        %p729 = pneg %p526
        %p730 = pneg %p523
        %p731 = pneg %p547
        %p732 = pneg %p544
        %p733 = pneg %p573
        %p734 = pneg %p570
        %s735 = sand.u32 %s560, 1
        %s736 = scalar_lea.sflag [#allocation3], %s735
        %s737 = sand.u32 %s560, 1
        %s738 = scalar_lea.vmem [#allocation2], %s737
        %p739 = scmp.lt.s32.totalorder %s38, 1
        %s740 = scalar_select %p739, %s38, 1
        %s741 = smul.addr %s740, 8
        %s742 = scalar_lea.vmem %s0, %s741
        %p743 = scmp.lt.s32.totalorder %s38, 1
        %s744 = scalar_select %p743, %s38, 1
        %s745 = scalar_lea.vmem %s1, %s744
        %v746 = vld [vmem:[%s742] sm:$0xff]
        %v747 = vld [vmem:[%s2] sm:$0x1]
        %v748 = vld [vmem:[%s3] sm:$0x1]
        %vm749 = vcmask 261120
        %v750 = vsel %vm749, %v746, 0.0
        %751 = vadd.xlane.f32.xlu0 %v750
        %v752 = vpop.xlane.xlu0 %751
        %v753 = vrcp.pop 32.0
        %v754 = vmul.f32 32.0, %v753
        %v755 = vsub.f32 1.0, %v754
        %v756 = vmul.f32 %v753, %v755
        %v757 = vadd.f32 %v753, %v756
        %vm758 = vweird.f32 %v753
        %v759 = vsel %vm758, %v753, %v757
        %v760 = vmul.f32 %v752, %v759
        %v761 = vsub.f32 %v746, %v760
        %v762 = vmul.f32 %v761, %v761
        %v763 = vsel %vm749, %v762, 0.0
        %764 = vadd.xlane.f32.xlu0 %v763
        %v765 = vpop.xlane.xlu0 %764
        %v766 = vmul.f32 %v765, %v759
        %v767 = vadd.f32 %v766, 1e-12
        %v768 = vrsqrt.pop %v767
        %v769 = vmul.f32 %v768, %v767
        %v770 = vmul.f32 %v769, %v768
        %v771 = vmul.f32 0.5, %v770
        %v772 = vsub.f32 1.5, %v771
        %v773 = vmul.f32 %v768, %v772
        %vm774 = vweird.f32 %v767
        %vm775 = vweird.f32 %v768
        %vm776 = vmor %vm774, %vm775
        %v777 = vsel %vm776, %v768, %v773
        %v778 = vmul.f32 %v761, %v777
        %v780 = vperm.slane %v747, 0
        %v782 = vmul.f32 %v778, %v780
        %v784 = vperm.slane %v748, 0
        %v786 = vadd.f32 %v782, %v784
        %v787 = vld [vmem:[%s745] sm:$0x1]
        %v788 = vld [vmem:[%s4] sm:$0xff]
        %v789 = vld [vmem:[%s4 + $0x8] sm:$0xff]
        %v790 = vld [vmem:[%s4 + $0x10] sm:$0xff]
        %v791 = vld [vmem:[%s4 + $0x18] sm:$0xff]
        %v792 = vld [vmem:[%s5] sm:$0x1]
        %v794 = vperm.slane %v792, 0
        %v797 = vsel %vm749, %v786, 0
        %799 = vmatpush.msra.mxu0 0.0
        %800 = vmatpush.msra.mxu0 0.0
        %801 = vmatpush.msra.mxu0 0.0
        %802 = vmatpush.msra.mxu0 0.0
        %803 = vmatpush.msra.mxu0 0.0
        %804 = vmatpush.msra.mxu0 0.0
        %805 = vmatpush.msra.mxu0 0.0
        %806 = vmatpush.msra.mxu0 0.0
        %807 = vmatpush.msra.mxu0 0.0
        %808 = vmatpush.msra.mxu0 0.0
        %809 = vmatpush.msra.mxu0 0.0
        %810 = vmatpush.msra.mxu0 0.0
        %811 = vmatpush.msra.mxu0 %v791
        %812 = vmatpush.msra.mxu0 %v790
        %813 = vmatpush.msra.mxu0 %v789
        %814 = vmatpush.msra.mxu0 %v788
        %815 = vmatmul.f32.gmra.mxu0 %v797
        %v816 = vpop.f32.mrf.mxu0
        %v817 = vadd.f32 %v794, %v816
        %818 = vdwg.mxu0
        %v819 = vld [vmem:[%s6] sm:$0xff]
        %v820 = vld [vmem:[%s6 + $0x8] sm:$0xff]
        %v821 = vld [vmem:[%s6 + $0x10] sm:$0xff]
        %v822 = vld [vmem:[%s6 + $0x18] sm:$0xff]
        %v823 = vld [vmem:[%s7] sm:$0x1]
        %v825 = vperm.slane %v823, 0
        %827 = vmatpush.msra.mxu0 0.0
        %828 = vmatpush.msra.mxu0 0.0
        %829 = vmatpush.msra.mxu0 0.0
        %830 = vmatpush.msra.mxu0 0.0
        %831 = vmatpush.msra.mxu0 0.0
        %832 = vmatpush.msra.mxu0 0.0
        %833 = vmatpush.msra.mxu0 0.0
        %834 = vmatpush.msra.mxu0 0.0
        %835 = vmatpush.msra.mxu0 0.0
        %836 = vmatpush.msra.mxu0 0.0
        %837 = vmatpush.msra.mxu0 0.0
        %838 = vmatpush.msra.mxu0 0.0
        %839 = vmatpush.msra.mxu0 %v822
        %840 = vmatpush.msra.mxu0 %v821
        %841 = vmatpush.msra.mxu0 %v820
        %842 = vmatpush.msra.mxu0 %v819
        %843 = vmatmul.f32.gmra.mxu0 %v797
        %v844 = vpop.f32.mrf.mxu0
        %v845 = vadd.f32 %v825, %v844
        %846 = vdwg.mxu0
        %v847 = vld [vmem:[%s8] sm:$0xff]
        %v848 = vld [vmem:[%s8 + $0x8] sm:$0xff]
        %v849 = vld [vmem:[%s8 + $0x10] sm:$0xff]
        %v850 = vld [vmem:[%s8 + $0x18] sm:$0xff]
        %v851 = vld [vmem:[%s9] sm:$0x1]
        %v853 = vperm.slane %v851, 0
        %855 = vmatpush.msra.mxu0 0.0
        %856 = vmatpush.msra.mxu0 0.0
        %857 = vmatpush.msra.mxu0 0.0
        %858 = vmatpush.msra.mxu0 0.0
        %859 = vmatpush.msra.mxu0 0.0
        %860 = vmatpush.msra.mxu0 0.0
        %861 = vmatpush.msra.mxu0 0.0
        %862 = vmatpush.msra.mxu0 0.0
        %863 = vmatpush.msra.mxu0 0.0
        %864 = vmatpush.msra.mxu0 0.0
        %865 = vmatpush.msra.mxu0 0.0
        %866 = vmatpush.msra.mxu0 0.0
        %867 = vmatpush.msra.mxu0 %v850
        %868 = vmatpush.msra.mxu0 %v849
        %869 = vmatpush.msra.mxu0 %v848
        %870 = vmatpush.msra.mxu0 %v847
        %871 = vmatmul.f32.gmra.mxu0 %v797
        %v872 = vpop.f32.mrf.mxu0
        %v873 = vadd.f32 %v853, %v872
        %874 = vdwg.mxu0
        %vm875 = vcmask 64512
        %v877 = vsel %vm875, %v817, 0
        %v880 = vsel %vm875, %v845, 0
        %882 = vmatpush.xpose.msra.mxu0 0.0
        %883 = vmatpush.xpose.msra.mxu0 0.0
        %884 = vmatpush.xpose.msra.mxu0 0.0
        %885 = vmatpush.xpose.msra.mxu0 0.0
        %886 = vmatpush.xpose.msra.mxu0 0.0
        %887 = vmatpush.xpose.msra.mxu0 0.0
        %888 = vmatpush.xpose.msra.mxu0 0.0
        %889 = vmatpush.xpose.msra.mxu0 0.0
        %890 = vmatpush.xpose.msra.mxu0 0.0
        %891 = vmatpush.xpose.msra.mxu0 0.0
        %892 = vmatpush.xpose.msra.mxu0 0.0
        %893 = vmatpush.xpose.msra.mxu0 0.0
        %894 = vmatpush.xpose.msra.mxu0 0.0
        %895 = vmatpush.xpose.msra.mxu0 0.0
        %896 = vmatpush.xpose.msra.mxu0 0.0
        %897 = vmatpush.xpose.msra.mxu0 %v880
        %898 = vmatmul.f32.gmra.mxu0 %v877
        %v899 = vpop.f32.mrf.mxu0
        %v900 = vadd.f32 0.0, %v899
        %901 = vdwg.mxu0
        %v902 = vmul.f32 %v900, 0.35355338
        %v904 = vperm.slane %v787, 0
        %v906 = vadd.f32 %v902, %v904
        %v907 = vsel %vm875, %v906, -inf
        %908 = vmax.xlane.f32.xlu0 %v907
        %v909 = vpop.xlane.xlu0 %908
        %v910 = vsub.f32 %v906, %v909
        %v911 = vmul.f32 %v910, 1.442695
        %v912 = vpow.pop %v911
        %v913 = vsel %vm875, %v912, 0.0
        %914 = vadd.xlane.f32.xlu0 %v913
        %v915 = vpop.xlane.xlu0 %914
        %v916 = vrcp.pop %v915
        %v917 = vmul.f32 %v912, %v916
        %v919 = vsel %vm875, %v917, 0
        %921 = vmatpush.msra.mxu0 0.0
        %922 = vmatpush.msra.mxu0 0.0
        %923 = vmatpush.msra.mxu0 0.0
        %924 = vmatpush.msra.mxu0 0.0
        %925 = vmatpush.msra.mxu0 0.0
        %926 = vmatpush.msra.mxu0 0.0
        %927 = vmatpush.msra.mxu0 0.0
        %928 = vmatpush.msra.mxu0 0.0
        %929 = vmatpush.msra.mxu0 0.0
        %930 = vmatpush.msra.mxu0 0.0
        %931 = vmatpush.msra.mxu0 0.0
        %932 = vmatpush.msra.mxu0 0.0
        %933 = vmatpush.msra.mxu0 0.0
        %934 = vmatpush.msra.mxu0 0.0
        %935 = vmatpush.msra.mxu0 0.0
        %936 = vmatpush.msra.mxu0 %v873
        %937 = vmatmul.f32.gmra.mxu0 %v919
        %v938 = vpop.f32.mrf.mxu0
        %v939 = vadd.f32 0.0, %v938
        %940 = vdwg.mxu0
        %v941 = vld [vmem:[%s10] sm:$0xff]
        %s942 = scalar_lea.vmem %s4, 32
        %v943 = vld [vmem:[%s942] sm:$0xff]
        %v944 = vld [vmem:[%s942 + $0x8] sm:$0xff]
        %v945 = vld [vmem:[%s942 + $0x10] sm:$0xff]
        %v946 = vld [vmem:[%s942 + $0x18] sm:$0xff]
        %s947 = scalar_lea.vmem %s5, 1
        %v948 = vld [vmem:[%s947] sm:$0x1]
        %v950 = vperm.slane %v948, 0
        %952 = vmatpush.msra.mxu0 0.0
        %953 = vmatpush.msra.mxu0 0.0
        %954 = vmatpush.msra.mxu0 0.0
        %955 = vmatpush.msra.mxu0 0.0
        %956 = vmatpush.msra.mxu0 0.0
        %957 = vmatpush.msra.mxu0 0.0
        %958 = vmatpush.msra.mxu0 0.0
        %959 = vmatpush.msra.mxu0 0.0
        %960 = vmatpush.msra.mxu0 0.0
        %961 = vmatpush.msra.mxu0 0.0
        %962 = vmatpush.msra.mxu0 0.0
        %963 = vmatpush.msra.mxu0 0.0
        %964 = vmatpush.msra.mxu0 %v946
        %965 = vmatpush.msra.mxu0 %v945
        %966 = vmatpush.msra.mxu0 %v944
        %967 = vmatpush.msra.mxu0 %v943
        %968 = vmatmul.f32.gmra.mxu0 %v797
        %v969 = vpop.f32.mrf.mxu0
        %v970 = vadd.f32 %v950, %v969
        %971 = vdwg.mxu0
        %s972 = scalar_lea.vmem %s6, 32
        %v973 = vld [vmem:[%s972] sm:$0xff]
        %v974 = vld [vmem:[%s972 + $0x8] sm:$0xff]
        %v975 = vld [vmem:[%s972 + $0x10] sm:$0xff]
        %v976 = vld [vmem:[%s972 + $0x18] sm:$0xff]
        %s977 = scalar_lea.vmem %s7, 1
        %v978 = vld [vmem:[%s977] sm:$0x1]
        %v980 = vperm.slane %v978, 0
        %982 = vmatpush.msra.mxu0 0.0
        %983 = vmatpush.msra.mxu0 0.0
        %984 = vmatpush.msra.mxu0 0.0
        %985 = vmatpush.msra.mxu0 0.0
        %986 = vmatpush.msra.mxu0 0.0
        %987 = vmatpush.msra.mxu0 0.0
        %988 = vmatpush.msra.mxu0 0.0
        %989 = vmatpush.msra.mxu0 0.0
        %990 = vmatpush.msra.mxu0 0.0
        %991 = vmatpush.msra.mxu0 0.0
        %992 = vmatpush.msra.mxu0 0.0
        %993 = vmatpush.msra.mxu0 0.0
        %994 = vmatpush.msra.mxu0 %v976
        %995 = vmatpush.msra.mxu0 %v975
        %996 = vmatpush.msra.mxu0 %v974
        %997 = vmatpush.msra.mxu0 %v973
        %998 = vmatmul.f32.gmra.mxu0 %v797
        %v999 = vpop.f32.mrf.mxu0
        %v1000 = vadd.f32 %v980, %v999
        %1001 = vdwg.mxu0
        %s1002 = scalar_lea.vmem %s8, 32
        %v1003 = vld [vmem:[%s1002] sm:$0xff]
        %v1004 = vld [vmem:[%s1002 + $0x8] sm:$0xff]
        %v1005 = vld [vmem:[%s1002 + $0x10] sm:$0xff]
        %v1006 = vld [vmem:[%s1002 + $0x18] sm:$0xff]
        %s1007 = scalar_lea.vmem %s9, 1
        %v1008 = vld [vmem:[%s1007] sm:$0x1]
        %v1010 = vperm.slane %v1008, 0
        %1012 = vmatpush.msra.mxu0 0.0
        %1013 = vmatpush.msra.mxu0 0.0
        %1014 = vmatpush.msra.mxu0 0.0
        %1015 = vmatpush.msra.mxu0 0.0
        %1016 = vmatpush.msra.mxu0 0.0
        %1017 = vmatpush.msra.mxu0 0.0
        %1018 = vmatpush.msra.mxu0 0.0
        %1019 = vmatpush.msra.mxu0 0.0
        %1020 = vmatpush.msra.mxu0 0.0
        %1021 = vmatpush.msra.mxu0 0.0
        %1022 = vmatpush.msra.mxu0 0.0
        %1023 = vmatpush.msra.mxu0 0.0
        %1024 = vmatpush.msra.mxu0 %v1006
        %1025 = vmatpush.msra.mxu0 %v1005
        %1026 = vmatpush.msra.mxu0 %v1004
        %1027 = vmatpush.msra.mxu0 %v1003
        %1028 = vmatmul.f32.gmra.mxu0 %v797
        %v1029 = vpop.f32.mrf.mxu0
        %v1030 = vadd.f32 %v1010, %v1029
        %1031 = vdwg.mxu0
        %v1033 = vsel %vm875, %v970, 0
        %v1036 = vsel %vm875, %v1000, 0
        %1038 = vmatpush.xpose.msra.mxu0 0.0
        %1039 = vmatpush.xpose.msra.mxu0 0.0
        %1040 = vmatpush.xpose.msra.mxu0 0.0
        %1041 = vmatpush.xpose.msra.mxu0 0.0
        %1042 = vmatpush.xpose.msra.mxu0 0.0
        %1043 = vmatpush.xpose.msra.mxu0 0.0
        %1044 = vmatpush.xpose.msra.mxu0 0.0
        %1045 = vmatpush.xpose.msra.mxu0 0.0
        %1046 = vmatpush.xpose.msra.mxu0 0.0
        %1047 = vmatpush.xpose.msra.mxu0 0.0
        %1048 = vmatpush.xpose.msra.mxu0 0.0
        %1049 = vmatpush.xpose.msra.mxu0 0.0
        %1050 = vmatpush.xpose.msra.mxu0 0.0
        %1051 = vmatpush.xpose.msra.mxu0 0.0
        %1052 = vmatpush.xpose.msra.mxu0 0.0
        %1053 = vmatpush.xpose.msra.mxu0 %v1036
        %1054 = vmatmul.f32.gmra.mxu0 %v1033
        %v1055 = vpop.f32.mrf.mxu0
        %v1056 = vadd.f32 0.0, %v1055
        %1057 = vdwg.mxu0
        %v1058 = vmul.f32 %v1056, 0.35355338
        %v1059 = vadd.f32 %v1058, %v904
        %v1060 = vsel %vm875, %v1059, -inf
        %1061 = vmax.xlane.f32.xlu0 %v1060
        %v1062 = vpop.xlane.xlu0 %1061
        %v1063 = vsub.f32 %v1059, %v1062
        %v1064 = vmul.f32 %v1063, 1.442695
        %v1065 = vpow.pop %v1064
        %v1066 = vsel %vm875, %v1065, 0.0
        %1067 = vadd.xlane.f32.xlu0 %v1066
        %v1068 = vpop.xlane.xlu0 %1067
        %v1069 = vrcp.pop %v1068
        %v1070 = vmul.f32 %v1065, %v1069
        %v1072 = vsel %vm875, %v1070, 0
        %1074 = vmatpush.msra.mxu0 0.0
        %1075 = vmatpush.msra.mxu0 0.0
        %1076 = vmatpush.msra.mxu0 0.0
        %1077 = vmatpush.msra.mxu0 0.0
        %1078 = vmatpush.msra.mxu0 0.0
        %1079 = vmatpush.msra.mxu0 0.0
        %1080 = vmatpush.msra.mxu0 0.0
        %1081 = vmatpush.msra.mxu0 0.0
        %1082 = vmatpush.msra.mxu0 0.0
        %1083 = vmatpush.msra.mxu0 0.0
        %1084 = vmatpush.msra.mxu0 0.0
        %1085 = vmatpush.msra.mxu0 0.0
        %1086 = vmatpush.msra.mxu0 0.0
        %1087 = vmatpush.msra.mxu0 0.0
        %1088 = vmatpush.msra.mxu0 0.0
        %1089 = vmatpush.msra.mxu0 %v1030
        %1090 = vmatmul.f32.gmra.mxu0 %v1072
        %v1091 = vpop.f32.mrf.mxu0
        %v1092 = vadd.f32 0.0, %v1091
        %1093 = vdwg.mxu0
        %s1094 = scalar_lea.vmem %s10, 8
        %v1095 = vld [vmem:[%s1094] sm:$0xff]
        %v1097 = vsel %vm875, %v1092, 0
        %1099 = vmatpush.msra.mxu0 0.0
        %1100 = vmatpush.msra.mxu0 0.0
        %1101 = vmatpush.msra.mxu0 0.0
        %1102 = vmatpush.msra.mxu0 0.0
        %1103 = vmatpush.msra.mxu0 0.0
        %1104 = vmatpush.msra.mxu0 0.0
        %1105 = vmatpush.msra.mxu0 0.0
        %1106 = vmatpush.msra.mxu0 0.0
        %1107 = vmatpush.msra.mxu0 0.0
        %1108 = vmatpush.msra.mxu0 0.0
        %1109 = vmatpush.msra.mxu0 0.0
        %1110 = vmatpush.msra.mxu0 0.0
        %1111 = vmatpush.msra.mxu0 0.0
        %1112 = vmatpush.msra.mxu0 0.0
        %1113 = vmatpush.msra.mxu0 0.0
        %1114 = vmatpush.msra.mxu0 %v1095
        %1115 = vmatmul.f32.gmra.mxu0 %v1097
        %v1116 = vpop.f32.mrf.mxu0
        %v1117 = vadd.f32 0.0, %v1116
        %1118 = vdwg.mxu0
        %v1120 = vsel %vm875, %v939, 0
        %1122 = vmatpush.msra.mxu0 0.0
        %1123 = vmatpush.msra.mxu0 0.0
        %1124 = vmatpush.msra.mxu0 0.0
        %1125 = vmatpush.msra.mxu0 0.0
        %1126 = vmatpush.msra.mxu0 0.0
        %1127 = vmatpush.msra.mxu0 0.0
        %1128 = vmatpush.msra.mxu0 0.0
        %1129 = vmatpush.msra.mxu0 0.0
        %1130 = vmatpush.msra.mxu0 0.0
        %1131 = vmatpush.msra.mxu0 0.0
        %1132 = vmatpush.msra.mxu0 0.0
        %1133 = vmatpush.msra.mxu0 0.0
        %1134 = vmatpush.msra.mxu0 0.0
        %1135 = vmatpush.msra.mxu0 0.0
        %1136 = vmatpush.msra.mxu0 0.0
        %1137 = vmatpush.msra.mxu0 %v941
        %1138 = vmatmul.f32.gmra.mxu0 %v1120
        %v1139 = vpop.f32.mrf.mxu0
        %v1140 = vadd.f32 %v1117, %v1139
        %1141 = vdwg.mxu0
        %s1142 = scalar_lea.vmem %s4, 64
        %v1143 = vld [vmem:[%s1142] sm:$0xff]
        %v1144 = vld [vmem:[%s1142 + $0x8] sm:$0xff]
        %v1145 = vld [vmem:[%s1142 + $0x10] sm:$0xff]
        %v1146 = vld [vmem:[%s1142 + $0x18] sm:$0xff]
        %s1147 = scalar_lea.vmem %s5, 2
        %v1148 = vld [vmem:[%s1147] sm:$0x1]
        %v1150 = vperm.slane %v1148, 0
        %1152 = vmatpush.msra.mxu0 0.0
        %1153 = vmatpush.msra.mxu0 0.0
        %1154 = vmatpush.msra.mxu0 0.0
        %1155 = vmatpush.msra.mxu0 0.0
        %1156 = vmatpush.msra.mxu0 0.0
        %1157 = vmatpush.msra.mxu0 0.0
        %1158 = vmatpush.msra.mxu0 0.0
        %1159 = vmatpush.msra.mxu0 0.0
        %1160 = vmatpush.msra.mxu0 0.0
        %1161 = vmatpush.msra.mxu0 0.0
        %1162 = vmatpush.msra.mxu0 0.0
        %1163 = vmatpush.msra.mxu0 0.0
        %1164 = vmatpush.msra.mxu0 %v1146
        %1165 = vmatpush.msra.mxu0 %v1145
        %1166 = vmatpush.msra.mxu0 %v1144
        %1167 = vmatpush.msra.mxu0 %v1143
        %1168 = vmatmul.f32.gmra.mxu0 %v797
        %v1169 = vpop.f32.mrf.mxu0
        %v1170 = vadd.f32 %v1150, %v1169
        %1171 = vdwg.mxu0
        %s1172 = scalar_lea.vmem %s6, 64
        %v1173 = vld [vmem:[%s1172] sm:$0xff]
        %v1174 = vld [vmem:[%s1172 + $0x8] sm:$0xff]
        %v1175 = vld [vmem:[%s1172 + $0x10] sm:$0xff]
        %v1176 = vld [vmem:[%s1172 + $0x18] sm:$0xff]
        %s1177 = scalar_lea.vmem %s7, 2
        %v1178 = vld [vmem:[%s1177] sm:$0x1]
        %v1180 = vperm.slane %v1178, 0
        %1182 = vmatpush.msra.mxu0 0.0
        %1183 = vmatpush.msra.mxu0 0.0
        %1184 = vmatpush.msra.mxu0 0.0
        %1185 = vmatpush.msra.mxu0 0.0
        %1186 = vmatpush.msra.mxu0 0.0
        %1187 = vmatpush.msra.mxu0 0.0
        %1188 = vmatpush.msra.mxu0 0.0
        %1189 = vmatpush.msra.mxu0 0.0
        %1190 = vmatpush.msra.mxu0 0.0
        %1191 = vmatpush.msra.mxu0 0.0
        %1192 = vmatpush.msra.mxu0 0.0
        %1193 = vmatpush.msra.mxu0 0.0
        %1194 = vmatpush.msra.mxu0 %v1176
        %1195 = vmatpush.msra.mxu0 %v1175
        %1196 = vmatpush.msra.mxu0 %v1174
        %1197 = vmatpush.msra.mxu0 %v1173
        %1198 = vmatmul.f32.gmra.mxu0 %v797
        %v1199 = vpop.f32.mrf.mxu0
        %v1200 = vadd.f32 %v1180, %v1199
        %1201 = vdwg.mxu0
        %s1202 = scalar_lea.vmem %s8, 64
        %v1203 = vld [vmem:[%s1202] sm:$0xff]
        %v1204 = vld [vmem:[%s1202 + $0x8] sm:$0xff]
        %v1205 = vld [vmem:[%s1202 + $0x10] sm:$0xff]
        %v1206 = vld [vmem:[%s1202 + $0x18] sm:$0xff]
        %s1207 = scalar_lea.vmem %s9, 2
        %v1208 = vld [vmem:[%s1207] sm:$0x1]
        %v1210 = vperm.slane %v1208, 0
        %1212 = vmatpush.msra.mxu0 0.0
        %1213 = vmatpush.msra.mxu0 0.0
        %1214 = vmatpush.msra.mxu0 0.0
        %1215 = vmatpush.msra.mxu0 0.0
        %1216 = vmatpush.msra.mxu0 0.0
        %1217 = vmatpush.msra.mxu0 0.0
        %1218 = vmatpush.msra.mxu0 0.0
        %1219 = vmatpush.msra.mxu0 0.0
        %1220 = vmatpush.msra.mxu0 0.0
        %1221 = vmatpush.msra.mxu0 0.0
        %1222 = vmatpush.msra.mxu0 0.0
        %1223 = vmatpush.msra.mxu0 0.0
        %1224 = vmatpush.msra.mxu0 %v1206
        %1225 = vmatpush.msra.mxu0 %v1205
        %1226 = vmatpush.msra.mxu0 %v1204
        %1227 = vmatpush.msra.mxu0 %v1203
        %1228 = vmatmul.f32.gmra.mxu0 %v797
        %v1229 = vpop.f32.mrf.mxu0
        %v1230 = vadd.f32 %v1210, %v1229
        %1231 = vdwg.mxu0
        %v1233 = vsel %vm875, %v1170, 0
        %v1236 = vsel %vm875, %v1200, 0
        %1238 = vmatpush.xpose.msra.mxu0 0.0
        %1239 = vmatpush.xpose.msra.mxu0 0.0
        %1240 = vmatpush.xpose.msra.mxu0 0.0
        %1241 = vmatpush.xpose.msra.mxu0 0.0
        %1242 = vmatpush.xpose.msra.mxu0 0.0
        %1243 = vmatpush.xpose.msra.mxu0 0.0
        %1244 = vmatpush.xpose.msra.mxu0 0.0
        %1245 = vmatpush.xpose.msra.mxu0 0.0
        %1246 = vmatpush.xpose.msra.mxu0 0.0
        %1247 = vmatpush.xpose.msra.mxu0 0.0
        %1248 = vmatpush.xpose.msra.mxu0 0.0
        %1249 = vmatpush.xpose.msra.mxu0 0.0
        %1250 = vmatpush.xpose.msra.mxu0 0.0
        %1251 = vmatpush.xpose.msra.mxu0 0.0
        %1252 = vmatpush.xpose.msra.mxu0 0.0
        %1253 = vmatpush.xpose.msra.mxu0 %v1236
        %1254 = vmatmul.f32.gmra.mxu0 %v1233
        %v1255 = vpop.f32.mrf.mxu0
        %v1256 = vadd.f32 0.0, %v1255
        %1257 = vdwg.mxu0
        %v1258 = vmul.f32 %v1256, 0.35355338
        %v1259 = vadd.f32 %v1258, %v904
        %v1260 = vsel %vm875, %v1259, -inf
        %1261 = vmax.xlane.f32.xlu0 %v1260
        %v1262 = vpop.xlane.xlu0 %1261
        %v1263 = vsub.f32 %v1259, %v1262
        %v1264 = vmul.f32 %v1263, 1.442695
        %v1265 = vpow.pop %v1264
        %v1266 = vsel %vm875, %v1265, 0.0
        %1267 = vadd.xlane.f32.xlu0 %v1266
        %v1268 = vpop.xlane.xlu0 %1267
        %v1269 = vrcp.pop %v1268
        %v1270 = vmul.f32 %v1265, %v1269
        %v1272 = vsel %vm875, %v1270, 0
        %1274 = vmatpush.msra.mxu0 0.0
        %1275 = vmatpush.msra.mxu0 0.0
        %1276 = vmatpush.msra.mxu0 0.0
        %1277 = vmatpush.msra.mxu0 0.0
        %1278 = vmatpush.msra.mxu0 0.0
        %1279 = vmatpush.msra.mxu0 0.0
        %1280 = vmatpush.msra.mxu0 0.0
        %1281 = vmatpush.msra.mxu0 0.0
        %1282 = vmatpush.msra.mxu0 0.0
        %1283 = vmatpush.msra.mxu0 0.0
        %1284 = vmatpush.msra.mxu0 0.0
        %1285 = vmatpush.msra.mxu0 0.0
        %1286 = vmatpush.msra.mxu0 0.0
        %1287 = vmatpush.msra.mxu0 0.0
        %1288 = vmatpush.msra.mxu0 0.0
        %1289 = vmatpush.msra.mxu0 %v1230
        %1290 = vmatmul.f32.gmra.mxu0 %v1272
        %v1291 = vpop.f32.mrf.mxu0
        %v1292 = vadd.f32 0.0, %v1291
        %1293 = vdwg.mxu0
        %s1294 = scalar_lea.vmem %s10, 16
        %v1295 = vld [vmem:[%s1294] sm:$0xff]
        %v1297 = vsel %vm875, %v1292, 0
        %1299 = vmatpush.msra.mxu0 0.0
        %1300 = vmatpush.msra.mxu0 0.0
        %1301 = vmatpush.msra.mxu0 0.0
        %1302 = vmatpush.msra.mxu0 0.0
        %1303 = vmatpush.msra.mxu0 0.0
        %1304 = vmatpush.msra.mxu0 0.0
        %1305 = vmatpush.msra.mxu0 0.0
        %1306 = vmatpush.msra.mxu0 0.0
        %1307 = vmatpush.msra.mxu0 0.0
        %1308 = vmatpush.msra.mxu0 0.0
        %1309 = vmatpush.msra.mxu0 0.0
        %1310 = vmatpush.msra.mxu0 0.0
        %1311 = vmatpush.msra.mxu0 0.0
        %1312 = vmatpush.msra.mxu0 0.0
        %1313 = vmatpush.msra.mxu0 0.0
        %1314 = vmatpush.msra.mxu0 %v1295
        %1315 = vmatmul.f32.gmra.mxu0 %v1297
        %v1316 = vpop.f32.mrf.mxu0
        %v1317 = vadd.f32 0.0, %v1316
        %1318 = vdwg.mxu0
        %v1319 = vadd.f32 %v1140, %v1317
        %s1320 = scalar_lea.vmem %s4, 96
        %v1321 = vld [vmem:[%s1320] sm:$0xff]
        %v1322 = vld [vmem:[%s1320 + $0x8] sm:$0xff]
        %v1323 = vld [vmem:[%s1320 + $0x10] sm:$0xff]
        %v1324 = vld [vmem:[%s1320 + $0x18] sm:$0xff]
        %s1325 = scalar_lea.vmem %s5, 3
        %v1326 = vld [vmem:[%s1325] sm:$0x1]
        %v1328 = vperm.slane %v1326, 0
        %1330 = vmatpush.msra.mxu0 0.0
        %1331 = vmatpush.msra.mxu0 0.0
        %1332 = vmatpush.msra.mxu0 0.0
        %1333 = vmatpush.msra.mxu0 0.0
        %1334 = vmatpush.msra.mxu0 0.0
        %1335 = vmatpush.msra.mxu0 0.0
        %1336 = vmatpush.msra.mxu0 0.0
        %1337 = vmatpush.msra.mxu0 0.0
        %1338 = vmatpush.msra.mxu0 0.0
        %1339 = vmatpush.msra.mxu0 0.0
        %1340 = vmatpush.msra.mxu0 0.0
        %1341 = vmatpush.msra.mxu0 0.0
        %1342 = vmatpush.msra.mxu0 %v1324
        %1343 = vmatpush.msra.mxu0 %v1323
        %1344 = vmatpush.msra.mxu0 %v1322
        %1345 = vmatpush.msra.mxu0 %v1321
        %1346 = vmatmul.f32.gmra.mxu0 %v797
        %v1347 = vpop.f32.mrf.mxu0
        %v1348 = vadd.f32 %v1328, %v1347
        %1349 = vdwg.mxu0
        %s1350 = scalar_lea.vmem %s6, 96
        %v1351 = vld [vmem:[%s1350] sm:$0xff]
        %v1352 = vld [vmem:[%s1350 + $0x8] sm:$0xff]
        %v1353 = vld [vmem:[%s1350 + $0x10] sm:$0xff]
        %v1354 = vld [vmem:[%s1350 + $0x18] sm:$0xff]
        %s1355 = scalar_lea.vmem %s7, 3
        %v1356 = vld [vmem:[%s1355] sm:$0x1]
        %v1358 = vperm.slane %v1356, 0
        %1360 = vmatpush.msra.mxu0 0.0
        %1361 = vmatpush.msra.mxu0 0.0
        %1362 = vmatpush.msra.mxu0 0.0
        %1363 = vmatpush.msra.mxu0 0.0
        %1364 = vmatpush.msra.mxu0 0.0
        %1365 = vmatpush.msra.mxu0 0.0
        %1366 = vmatpush.msra.mxu0 0.0
        %1367 = vmatpush.msra.mxu0 0.0
        %1368 = vmatpush.msra.mxu0 0.0
        %1369 = vmatpush.msra.mxu0 0.0
        %1370 = vmatpush.msra.mxu0 0.0
        %1371 = vmatpush.msra.mxu0 0.0
        %1372 = vmatpush.msra.mxu0 %v1354
        %1373 = vmatpush.msra.mxu0 %v1353
        %1374 = vmatpush.msra.mxu0 %v1352
        %1375 = vmatpush.msra.mxu0 %v1351
        %1376 = vmatmul.f32.gmra.mxu0 %v797
        %v1377 = vpop.f32.mrf.mxu0
        %v1378 = vadd.f32 %v1358, %v1377
        %1379 = vdwg.mxu0
        %s1380 = scalar_lea.vmem %s8, 96
        %v1381 = vld [vmem:[%s1380] sm:$0xff]
        %v1382 = vld [vmem:[%s1380 + $0x8] sm:$0xff]
        %v1383 = vld [vmem:[%s1380 + $0x10] sm:$0xff]
        %v1384 = vld [vmem:[%s1380 + $0x18] sm:$0xff]
        %s1385 = scalar_lea.vmem %s9, 3
        %v1386 = vld [vmem:[%s1385] sm:$0x1]
        %v1388 = vperm.slane %v1386, 0
        %1390 = vmatpush.msra.mxu0 0.0
        %1391 = vmatpush.msra.mxu0 0.0
        %1392 = vmatpush.msra.mxu0 0.0
        %1393 = vmatpush.msra.mxu0 0.0
        %1394 = vmatpush.msra.mxu0 0.0
        %1395 = vmatpush.msra.mxu0 0.0
        %1396 = vmatpush.msra.mxu0 0.0
        %1397 = vmatpush.msra.mxu0 0.0
        %1398 = vmatpush.msra.mxu0 0.0
        %1399 = vmatpush.msra.mxu0 0.0
        %1400 = vmatpush.msra.mxu0 0.0
        %1401 = vmatpush.msra.mxu0 0.0
        %1402 = vmatpush.msra.mxu0 %v1384
        %1403 = vmatpush.msra.mxu0 %v1383
        %1404 = vmatpush.msra.mxu0 %v1382
        %1405 = vmatpush.msra.mxu0 %v1381
        %1406 = vmatmul.f32.gmra.mxu0 %v797
        %v1407 = vpop.f32.mrf.mxu0
        %v1408 = vadd.f32 %v1388, %v1407
        %1409 = vdwg.mxu0
        %v1411 = vsel %vm875, %v1348, 0
        %v1414 = vsel %vm875, %v1378, 0
        %1416 = vmatpush.xpose.msra.mxu0 0.0
        %1417 = vmatpush.xpose.msra.mxu0 0.0
        %1418 = vmatpush.xpose.msra.mxu0 0.0
        %1419 = vmatpush.xpose.msra.mxu0 0.0
        %1420 = vmatpush.xpose.msra.mxu0 0.0
        %1421 = vmatpush.xpose.msra.mxu0 0.0
        %1422 = vmatpush.xpose.msra.mxu0 0.0
        %1423 = vmatpush.xpose.msra.mxu0 0.0
        %1424 = vmatpush.xpose.msra.mxu0 0.0
        %1425 = vmatpush.xpose.msra.mxu0 0.0
        %1426 = vmatpush.xpose.msra.mxu0 0.0
        %1427 = vmatpush.xpose.msra.mxu0 0.0
        %1428 = vmatpush.xpose.msra.mxu0 0.0
        %1429 = vmatpush.xpose.msra.mxu0 0.0
        %1430 = vmatpush.xpose.msra.mxu0 0.0
        %1431 = vmatpush.xpose.msra.mxu0 %v1414
        %1432 = vmatmul.f32.gmra.mxu0 %v1411
        %v1433 = vpop.f32.mrf.mxu0
        %v1434 = vadd.f32 0.0, %v1433
        %1435 = vdwg.mxu0
        %v1436 = vmul.f32 %v1434, 0.35355338
        %v1437 = vadd.f32 %v1436, %v904
        %v1438 = vsel %vm875, %v1437, -inf
        %1439 = vmax.xlane.f32.xlu0 %v1438
        %v1440 = vpop.xlane.xlu0 %1439
        %v1441 = vsub.f32 %v1437, %v1440
        %v1442 = vmul.f32 %v1441, 1.442695
        %v1443 = vpow.pop %v1442
        %v1444 = vsel %vm875, %v1443, 0.0
        %1445 = vadd.xlane.f32.xlu0 %v1444
        %v1446 = vpop.xlane.xlu0 %1445
        %v1447 = vrcp.pop %v1446
        %v1448 = vmul.f32 %v1443, %v1447
        %v1450 = vsel %vm875, %v1448, 0
        %1452 = vmatpush.msra.mxu0 0.0
        %1453 = vmatpush.msra.mxu0 0.0
        %1454 = vmatpush.msra.mxu0 0.0
        %1455 = vmatpush.msra.mxu0 0.0
        %1456 = vmatpush.msra.mxu0 0.0
        %1457 = vmatpush.msra.mxu0 0.0
        %1458 = vmatpush.msra.mxu0 0.0
        %1459 = vmatpush.msra.mxu0 0.0
        %1460 = vmatpush.msra.mxu0 0.0
        %1461 = vmatpush.msra.mxu0 0.0
        %1462 = vmatpush.msra.mxu0 0.0
        %1463 = vmatpush.msra.mxu0 0.0
        %1464 = vmatpush.msra.mxu0 0.0
        %1465 = vmatpush.msra.mxu0 0.0
        %1466 = vmatpush.msra.mxu0 0.0
        %1467 = vmatpush.msra.mxu0 %v1408
        %1468 = vmatmul.f32.gmra.mxu0 %v1450
        %v1469 = vpop.f32.mrf.mxu0
        %v1470 = vadd.f32 0.0, %v1469
        %1471 = vdwg.mxu0
        %s1472 = scalar_lea.vmem %s10, 24
        %v1473 = vld [vmem:[%s1472] sm:$0xff]
        %v1475 = vsel %vm875, %v1470, 0
        %1477 = vmatpush.msra.mxu0 0.0
        %1478 = vmatpush.msra.mxu0 0.0
        %1479 = vmatpush.msra.mxu0 0.0
        %1480 = vmatpush.msra.mxu0 0.0
        %1481 = vmatpush.msra.mxu0 0.0
        %1482 = vmatpush.msra.mxu0 0.0
        %1483 = vmatpush.msra.mxu0 0.0
        %1484 = vmatpush.msra.mxu0 0.0
        %1485 = vmatpush.msra.mxu0 0.0
        %1486 = vmatpush.msra.mxu0 0.0
        %1487 = vmatpush.msra.mxu0 0.0
        %1488 = vmatpush.msra.mxu0 0.0
        %1489 = vmatpush.msra.mxu0 0.0
        %1490 = vmatpush.msra.mxu0 0.0
        %1491 = vmatpush.msra.mxu0 0.0
        %1492 = vmatpush.msra.mxu0 %v1473
        %1493 = vmatmul.f32.gmra.mxu0 %v1475
        %v1494 = vpop.f32.mrf.mxu0
        %v1495 = vadd.f32 0.0, %v1494
        %1496 = vdwg.mxu0
        %v1497 = vadd.f32 %v1319, %v1495
        %v1498 = vld [vmem:[%s11] sm:$0x1]
        %v1500 = vperm.slane %v1498, 0
        %v1502 = vadd.f32 %v1497, %v1500
        %v1503 = vadd.f32 %v786, %v1502
        %v1504 = vld [vmem:[%s12] sm:$0x1]
        %v1505 = vld [vmem:[%s13] sm:$0x1]
        %v1506 = vsel %vm749, %v1503, 0.0
        %1507 = vadd.xlane.f32.xlu0 %v1506
        %v1508 = vpop.xlane.xlu0 %1507
        %v1509 = vmul.f32 %v1508, %v759
        %v1510 = vsub.f32 %v1503, %v1509
        %v1511 = vmul.f32 %v1510, %v1510
        %v1512 = vsel %vm749, %v1511, 0.0
        %1513 = vadd.xlane.f32.xlu0 %v1512
        %v1514 = vpop.xlane.xlu0 %1513
        %v1515 = vmul.f32 %v1514, %v759
        %v1516 = vadd.f32 %v1515, 1e-12
        %v1517 = vrsqrt.pop %v1516
        %v1518 = vmul.f32 %v1517, %v1516
        %v1519 = vmul.f32 %v1518, %v1517
        %v1520 = vmul.f32 0.5, %v1519
        %v1521 = vsub.f32 1.5, %v1520
        %v1522 = vmul.f32 %v1517, %v1521
        %vm1523 = vweird.f32 %v1516
        %vm1524 = vweird.f32 %v1517
        %vm1525 = vmor %vm1523, %vm1524
        %v1526 = vsel %vm1525, %v1517, %v1522
        %v1527 = vmul.f32 %v1510, %v1526
        %v1529 = vperm.slane %v1504, 0
        %v1531 = vmul.f32 %v1527, %v1529
        %v1533 = vperm.slane %v1505, 0
        %v1535 = vadd.f32 %v1531, %v1533
        %v1536 = vld [vmem:[%s14] sm:$0xff]
        %v1537 = vld [vmem:[%s14 + $0x8] sm:$0xff]
        %v1538 = vld [vmem:[%s14 + $0x10] sm:$0xff]
        %v1539 = vld [vmem:[%s14 + $0x18] sm:$0xff]
        %v1540 = vld [vmem:[%s15] sm:$0x1]
        %v1542 = vperm.slane %v1540, 0
        %v1545 = vsel %vm749, %v1535, 0
        %1547 = vmatpush.msra.mxu0 0.0
        %1548 = vmatpush.msra.mxu0 0.0
        %1549 = vmatpush.msra.mxu0 0.0
        %1550 = vmatpush.msra.mxu0 0.0
        %1551 = vmatpush.msra.mxu0 0.0
        %1552 = vmatpush.msra.mxu0 0.0
        %1553 = vmatpush.msra.mxu0 0.0
        %1554 = vmatpush.msra.mxu0 0.0
        %1555 = vmatpush.msra.mxu0 0.0
        %1556 = vmatpush.msra.mxu0 0.0
        %1557 = vmatpush.msra.mxu0 0.0
        %1558 = vmatpush.msra.mxu0 0.0
        %1559 = vmatpush.msra.mxu0 %v1539
        %1560 = vmatpush.msra.mxu0 %v1538
        %1561 = vmatpush.msra.mxu0 %v1537
        %1562 = vmatpush.msra.mxu0 %v1536
        %1563 = vmatmul.f32.gmra.mxu0 %v1545
        %v1564 = vpop.f32.mrf.mxu0
        %v1565 = vadd.f32 %v1542, %v1564
        %1566 = vdwg.mxu0
        %v1567 = vmul.f32 %v1565, %v1565
        %v1568 = vmul.f32 %v1565, %v1567
        %v1569 = vmul.f32 %v1568, 0.044715
        %v1570 = vadd.f32 %v1565, %v1569
        %v1571 = vmul.f32 %v1570, 0.7978846
        %v1572 = vtanh.pop %v1571
        %v1573 = vadd.f32 %v1572, 1.0
        %v1574 = vmul.f32 %v1573, 0.5
        %v1575 = vmul.f32 %v1565, %v1574
        %v1576 = vld [vmem:[%s16] sm:$0xff]
        %v1577 = vld [vmem:[%s16 + $0x8] sm:$0xff]
        %v1578 = vld [vmem:[%s16 + $0x10] sm:$0xff]
        %v1579 = vld [vmem:[%s16 + $0x18] sm:$0xff]
        %v1580 = vld [vmem:[%s16 + $0x20] sm:$0xff]
        %v1581 = vld [vmem:[%s16 + $0x28] sm:$0xff]
        %v1582 = vld [vmem:[%s16 + $0x30] sm:$0xff]
        %v1583 = vld [vmem:[%s16 + $0x38] sm:$0xff]
        %v1584 = vld [vmem:[%s17] sm:$0x1]
        %v1586 = vperm.slane %v1584, 0
        %vm1588 = vcmask 523264
        %v1590 = vsel %vm1588, %v1575, 0
        %1592 = vmatpush.msra.mxu0 0.0
        %1593 = vmatpush.msra.mxu0 0.0
        %1594 = vmatpush.msra.mxu0 0.0
        %1595 = vmatpush.msra.mxu0 0.0
        %1596 = vmatpush.msra.mxu0 0.0
        %1597 = vmatpush.msra.mxu0 0.0
        %1598 = vmatpush.msra.mxu0 0.0
        %1599 = vmatpush.msra.mxu0 0.0
        %1600 = vmatpush.msra.mxu0 %v1583
        %1601 = vmatpush.msra.mxu0 %v1582
        %1602 = vmatpush.msra.mxu0 %v1581
        %1603 = vmatpush.msra.mxu0 %v1580
        %1604 = vmatpush.msra.mxu0 %v1579
        %1605 = vmatpush.msra.mxu0 %v1578
        %1606 = vmatpush.msra.mxu0 %v1577
        %1607 = vmatpush.msra.mxu0 %v1576
        %1608 = vmatmul.f32.gmra.mxu0 %v1590
        %v1609 = vpop.f32.mrf.mxu0
        %v1610 = vadd.f32 %v1586, %v1609
        %1611 = vdwg.mxu0
        %v1612 = vadd.f32 %v1535, %v1610
        %v1613 = vld [vmem:[%s18] sm:$0x1]
        %v1614 = vld [vmem:[%s19] sm:$0x1]
        %v1615 = vsel %vm749, %v1612, 0.0
        %1616 = vadd.xlane.f32.xlu0 %v1615
        %v1617 = vpop.xlane.xlu0 %1616
        %v1618 = vmul.f32 %v1617, %v759
        %v1619 = vsub.f32 %v1612, %v1618
        %v1620 = vmul.f32 %v1619, %v1619
        %v1621 = vsel %vm749, %v1620, 0.0
        %1622 = vadd.xlane.f32.xlu0 %v1621
        %v1623 = vpop.xlane.xlu0 %1622
        %v1624 = vmul.f32 %v1623, %v759
        %v1625 = vadd.f32 %v1624, 1e-12
        %v1626 = vrsqrt.pop %v1625
        %v1627 = vmul.f32 %v1626, %v1625
        %v1628 = vmul.f32 %v1627, %v1626
        %v1629 = vmul.f32 0.5, %v1628
        %v1630 = vsub.f32 1.5, %v1629
        %v1631 = vmul.f32 %v1626, %v1630
        %vm1632 = vweird.f32 %v1625
        %vm1633 = vweird.f32 %v1626
        %vm1634 = vmor %vm1632, %vm1633
        %v1635 = vsel %vm1634, %v1626, %v1631
        %v1636 = vmul.f32 %v1619, %v1635
        %v1638 = vperm.slane %v1613, 0
        %v1640 = vmul.f32 %v1636, %v1638
        %v1642 = vperm.slane %v1614, 0
        %v1644 = vadd.f32 %v1640, %v1642
        %s1645 = scalar_lea.vmem %s4, 128
        %v1646 = vld [vmem:[%s1645] sm:$0xff]
        %v1647 = vld [vmem:[%s1645 + $0x8] sm:$0xff]
        %v1648 = vld [vmem:[%s1645 + $0x10] sm:$0xff]
        %v1649 = vld [vmem:[%s1645 + $0x18] sm:$0xff]
        %s1650 = scalar_lea.vmem %s5, 4
        %v1651 = vld [vmem:[%s1650] sm:$0x1]
        %v1653 = vperm.slane %v1651, 0
        %v1656 = vsel %vm749, %v1644, 0
        %1658 = vmatpush.msra.mxu0 0.0
        %1659 = vmatpush.msra.mxu0 0.0
        %1660 = vmatpush.msra.mxu0 0.0
        %1661 = vmatpush.msra.mxu0 0.0
        %1662 = vmatpush.msra.mxu0 0.0
        %1663 = vmatpush.msra.mxu0 0.0
        %1664 = vmatpush.msra.mxu0 0.0
        %1665 = vmatpush.msra.mxu0 0.0
        %1666 = vmatpush.msra.mxu0 0.0
        %1667 = vmatpush.msra.mxu0 0.0
        %1668 = vmatpush.msra.mxu0 0.0
        %1669 = vmatpush.msra.mxu0 0.0
        %1670 = vmatpush.msra.mxu0 %v1649
        %1671 = vmatpush.msra.mxu0 %v1648
        %1672 = vmatpush.msra.mxu0 %v1647
        %1673 = vmatpush.msra.mxu0 %v1646
        %1674 = vmatmul.f32.gmra.mxu0 %v1656
        %v1675 = vpop.f32.mrf.mxu0
        %v1676 = vadd.f32 %v1653, %v1675
        %1677 = vdwg.mxu0
        %s1678 = scalar_lea.vmem %s6, 128
        %v1679 = vld [vmem:[%s1678] sm:$0xff]
        %v1680 = vld [vmem:[%s1678 + $0x8] sm:$0xff]
        %v1681 = vld [vmem:[%s1678 + $0x10] sm:$0xff]
        %v1682 = vld [vmem:[%s1678 + $0x18] sm:$0xff]
        %s1683 = scalar_lea.vmem %s7, 4
        %v1684 = vld [vmem:[%s1683] sm:$0x1]
        %v1686 = vperm.slane %v1684, 0
        %1688 = vmatpush.msra.mxu0 0.0
        %1689 = vmatpush.msra.mxu0 0.0
        %1690 = vmatpush.msra.mxu0 0.0
        %1691 = vmatpush.msra.mxu0 0.0
        %1692 = vmatpush.msra.mxu0 0.0
        %1693 = vmatpush.msra.mxu0 0.0
        %1694 = vmatpush.msra.mxu0 0.0
        %1695 = vmatpush.msra.mxu0 0.0
        %1696 = vmatpush.msra.mxu0 0.0
        %1697 = vmatpush.msra.mxu0 0.0
        %1698 = vmatpush.msra.mxu0 0.0
        %1699 = vmatpush.msra.mxu0 0.0
        %1700 = vmatpush.msra.mxu0 %v1682
        %1701 = vmatpush.msra.mxu0 %v1681
        %1702 = vmatpush.msra.mxu0 %v1680
        %1703 = vmatpush.msra.mxu0 %v1679
        %1704 = vmatmul.f32.gmra.mxu0 %v1656
        %v1705 = vpop.f32.mrf.mxu0
        %v1706 = vadd.f32 %v1686, %v1705
        %1707 = vdwg.mxu0
        %s1708 = scalar_lea.vmem %s8, 128
        %v1709 = vld [vmem:[%s1708] sm:$0xff]
        %v1710 = vld [vmem:[%s1708 + $0x8] sm:$0xff]
        %v1711 = vld [vmem:[%s1708 + $0x10] sm:$0xff]
        %v1712 = vld [vmem:[%s1708 + $0x18] sm:$0xff]
        %s1713 = scalar_lea.vmem %s9, 4
        %v1714 = vld [vmem:[%s1713] sm:$0x1]
        %v1716 = vperm.slane %v1714, 0
        %1718 = vmatpush.msra.mxu0 0.0
        %1719 = vmatpush.msra.mxu0 0.0
        %1720 = vmatpush.msra.mxu0 0.0
        %1721 = vmatpush.msra.mxu0 0.0
        %1722 = vmatpush.msra.mxu0 0.0
        %1723 = vmatpush.msra.mxu0 0.0
        %1724 = vmatpush.msra.mxu0 0.0
        %1725 = vmatpush.msra.mxu0 0.0
        %1726 = vmatpush.msra.mxu0 0.0
        %1727 = vmatpush.msra.mxu0 0.0
        %1728 = vmatpush.msra.mxu0 0.0
        %1729 = vmatpush.msra.mxu0 0.0
        %1730 = vmatpush.msra.mxu0 %v1712
        %1731 = vmatpush.msra.mxu0 %v1711
        %1732 = vmatpush.msra.mxu0 %v1710
        %1733 = vmatpush.msra.mxu0 %v1709
        %1734 = vmatmul.f32.gmra.mxu0 %v1656
        %v1735 = vpop.f32.mrf.mxu0
        %v1736 = vadd.f32 %v1716, %v1735
        %1737 = vdwg.mxu0
        %v1739 = vsel %vm875, %v1676, 0
        %v1742 = vsel %vm875, %v1706, 0
        %1744 = vmatpush.xpose.msra.mxu0 0.0
        %1745 = vmatpush.xpose.msra.mxu0 0.0
        %1746 = vmatpush.xpose.msra.mxu0 0.0
        %1747 = vmatpush.xpose.msra.mxu0 0.0
        %1748 = vmatpush.xpose.msra.mxu0 0.0
        %1749 = vmatpush.xpose.msra.mxu0 0.0
        %1750 = vmatpush.xpose.msra.mxu0 0.0
        %1751 = vmatpush.xpose.msra.mxu0 0.0
        %1752 = vmatpush.xpose.msra.mxu0 0.0
        %1753 = vmatpush.xpose.msra.mxu0 0.0
        %1754 = vmatpush.xpose.msra.mxu0 0.0
        %1755 = vmatpush.xpose.msra.mxu0 0.0
        %1756 = vmatpush.xpose.msra.mxu0 0.0
        %1757 = vmatpush.xpose.msra.mxu0 0.0
        %1758 = vmatpush.xpose.msra.mxu0 0.0
        %1759 = vmatpush.xpose.msra.mxu0 %v1742
        %1760 = vmatmul.f32.gmra.mxu0 %v1739
        %v1761 = vpop.f32.mrf.mxu0
        %v1762 = vadd.f32 0.0, %v1761
        %1763 = vdwg.mxu0
        %v1764 = vmul.f32 %v1762, 0.35355338
        %v1765 = vadd.f32 %v1764, %v904
        %v1766 = vsel %vm875, %v1765, -inf
        %1767 = vmax.xlane.f32.xlu0 %v1766
        %v1768 = vpop.xlane.xlu0 %1767
        %v1769 = vsub.f32 %v1765, %v1768
        %v1770 = vmul.f32 %v1769, 1.442695
        %v1771 = vpow.pop %v1770
        %v1772 = vsel %vm875, %v1771, 0.0
        %1773 = vadd.xlane.f32.xlu0 %v1772
        %v1774 = vpop.xlane.xlu0 %1773
        %v1775 = vrcp.pop %v1774
        %v1776 = vmul.f32 %v1771, %v1775
        %v1778 = vsel %vm875, %v1776, 0
        %1780 = vmatpush.msra.mxu0 0.0
        %1781 = vmatpush.msra.mxu0 0.0
        %1782 = vmatpush.msra.mxu0 0.0
        %1783 = vmatpush.msra.mxu0 0.0
        %1784 = vmatpush.msra.mxu0 0.0
        %1785 = vmatpush.msra.mxu0 0.0
        %1786 = vmatpush.msra.mxu0 0.0
        %1787 = vmatpush.msra.mxu0 0.0
        %1788 = vmatpush.msra.mxu0 0.0
        %1789 = vmatpush.msra.mxu0 0.0
        %1790 = vmatpush.msra.mxu0 0.0
        %1791 = vmatpush.msra.mxu0 0.0
        %1792 = vmatpush.msra.mxu0 0.0
        %1793 = vmatpush.msra.mxu0 0.0
        %1794 = vmatpush.msra.mxu0 0.0
        %1795 = vmatpush.msra.mxu0 %v1736
        %1796 = vmatmul.f32.gmra.mxu0 %v1778
        %v1797 = vpop.f32.mrf.mxu0
        %v1798 = vadd.f32 0.0, %v1797
        %1799 = vdwg.mxu0
        %s1800 = scalar_lea.vmem %s10, 32
        %v1801 = vld [vmem:[%s1800] sm:$0xff]
        %s1802 = scalar_lea.vmem %s4, 160
        %v1803 = vld [vmem:[%s1802] sm:$0xff]
        %v1804 = vld [vmem:[%s1802 + $0x8] sm:$0xff]
        %v1805 = vld [vmem:[%s1802 + $0x10] sm:$0xff]
        %v1806 = vld [vmem:[%s1802 + $0x18] sm:$0xff]
        %s1807 = scalar_lea.vmem %s5, 5
        %v1808 = vld [vmem:[%s1807] sm:$0x1]
        %v1810 = vperm.slane %v1808, 0
        %1812 = vmatpush.msra.mxu0 0.0
        %1813 = vmatpush.msra.mxu0 0.0
        %1814 = vmatpush.msra.mxu0 0.0
        %1815 = vmatpush.msra.mxu0 0.0
        %1816 = vmatpush.msra.mxu0 0.0
        %1817 = vmatpush.msra.mxu0 0.0
        %1818 = vmatpush.msra.mxu0 0.0
        %1819 = vmatpush.msra.mxu0 0.0
        %1820 = vmatpush.msra.mxu0 0.0
        %1821 = vmatpush.msra.mxu0 0.0
        %1822 = vmatpush.msra.mxu0 0.0
        %1823 = vmatpush.msra.mxu0 0.0
        %1824 = vmatpush.msra.mxu0 %v1806
        %1825 = vmatpush.msra.mxu0 %v1805
        %1826 = vmatpush.msra.mxu0 %v1804
        %1827 = vmatpush.msra.mxu0 %v1803
        %1828 = vmatmul.f32.gmra.mxu0 %v1656
        %v1829 = vpop.f32.mrf.mxu0
        %v1830 = vadd.f32 %v1810, %v1829
        %1831 = vdwg.mxu0
        %s1832 = scalar_lea.vmem %s6, 160
        %v1833 = vld [vmem:[%s1832] sm:$0xff]
        %v1834 = vld [vmem:[%s1832 + $0x8] sm:$0xff]
        %v1835 = vld [vmem:[%s1832 + $0x10] sm:$0xff]
        %v1836 = vld [vmem:[%s1832 + $0x18] sm:$0xff]
        %s1837 = scalar_lea.vmem %s7, 5
        %v1838 = vld [vmem:[%s1837] sm:$0x1]
        %v1840 = vperm.slane %v1838, 0
        %1842 = vmatpush.msra.mxu0 0.0
        %1843 = vmatpush.msra.mxu0 0.0
        %1844 = vmatpush.msra.mxu0 0.0
        %1845 = vmatpush.msra.mxu0 0.0
        %1846 = vmatpush.msra.mxu0 0.0
        %1847 = vmatpush.msra.mxu0 0.0
        %1848 = vmatpush.msra.mxu0 0.0
        %1849 = vmatpush.msra.mxu0 0.0
        %1850 = vmatpush.msra.mxu0 0.0
        %1851 = vmatpush.msra.mxu0 0.0
        %1852 = vmatpush.msra.mxu0 0.0
        %1853 = vmatpush.msra.mxu0 0.0
        %1854 = vmatpush.msra.mxu0 %v1836
        %1855 = vmatpush.msra.mxu0 %v1835
        %1856 = vmatpush.msra.mxu0 %v1834
        %1857 = vmatpush.msra.mxu0 %v1833
        %1858 = vmatmul.f32.gmra.mxu0 %v1656
        %v1859 = vpop.f32.mrf.mxu0
        %v1860 = vadd.f32 %v1840, %v1859
        %1861 = vdwg.mxu0
        %s1862 = scalar_lea.vmem %s8, 160
        %v1863 = vld [vmem:[%s1862] sm:$0xff]
        %v1864 = vld [vmem:[%s1862 + $0x8] sm:$0xff]
        %v1865 = vld [vmem:[%s1862 + $0x10] sm:$0xff]
        %v1866 = vld [vmem:[%s1862 + $0x18] sm:$0xff]
        %s1867 = scalar_lea.vmem %s9, 5
        %v1868 = vld [vmem:[%s1867] sm:$0x1]
        %v1870 = vperm.slane %v1868, 0
        %1872 = vmatpush.msra.mxu0 0.0
        %1873 = vmatpush.msra.mxu0 0.0
        %1874 = vmatpush.msra.mxu0 0.0
        %1875 = vmatpush.msra.mxu0 0.0
        %1876 = vmatpush.msra.mxu0 0.0
        %1877 = vmatpush.msra.mxu0 0.0
        %1878 = vmatpush.msra.mxu0 0.0
        %1879 = vmatpush.msra.mxu0 0.0
        %1880 = vmatpush.msra.mxu0 0.0
        %1881 = vmatpush.msra.mxu0 0.0
        %1882 = vmatpush.msra.mxu0 0.0
        %1883 = vmatpush.msra.mxu0 0.0
        %1884 = vmatpush.msra.mxu0 %v1866
        %1885 = vmatpush.msra.mxu0 %v1865
        %1886 = vmatpush.msra.mxu0 %v1864
        %1887 = vmatpush.msra.mxu0 %v1863
        %1888 = vmatmul.f32.gmra.mxu0 %v1656
        %v1889 = vpop.f32.mrf.mxu0
        %v1890 = vadd.f32 %v1870, %v1889
        %1891 = vdwg.mxu0
        %v1893 = vsel %vm875, %v1830, 0
        %v1896 = vsel %vm875, %v1860, 0
        %1898 = vmatpush.xpose.msra.mxu0 0.0
        %1899 = vmatpush.xpose.msra.mxu0 0.0
        %1900 = vmatpush.xpose.msra.mxu0 0.0
        %1901 = vmatpush.xpose.msra.mxu0 0.0
        %1902 = vmatpush.xpose.msra.mxu0 0.0
        %1903 = vmatpush.xpose.msra.mxu0 0.0
        %1904 = vmatpush.xpose.msra.mxu0 0.0
        %1905 = vmatpush.xpose.msra.mxu0 0.0
        %1906 = vmatpush.xpose.msra.mxu0 0.0
        %1907 = vmatpush.xpose.msra.mxu0 0.0
        %1908 = vmatpush.xpose.msra.mxu0 0.0
        %1909 = vmatpush.xpose.msra.mxu0 0.0
        %1910 = vmatpush.xpose.msra.mxu0 0.0
        %1911 = vmatpush.xpose.msra.mxu0 0.0
        %1912 = vmatpush.xpose.msra.mxu0 0.0
        %1913 = vmatpush.xpose.msra.mxu0 %v1896
        %1914 = vmatmul.f32.gmra.mxu0 %v1893
        %v1915 = vpop.f32.mrf.mxu0
        %v1916 = vadd.f32 0.0, %v1915
        %1917 = vdwg.mxu0
        %v1918 = vmul.f32 %v1916, 0.35355338
        %v1919 = vadd.f32 %v1918, %v904
        %v1920 = vsel %vm875, %v1919, -inf
        %1921 = vmax.xlane.f32.xlu0 %v1920
        %v1922 = vpop.xlane.xlu0 %1921
        %v1923 = vsub.f32 %v1919, %v1922
        %v1924 = vmul.f32 %v1923, 1.442695
        %v1925 = vpow.pop %v1924
        %v1926 = vsel %vm875, %v1925, 0.0
        %1927 = vadd.xlane.f32.xlu0 %v1926
        %v1928 = vpop.xlane.xlu0 %1927
        %v1929 = vrcp.pop %v1928
        %v1930 = vmul.f32 %v1925, %v1929
        %v1932 = vsel %vm875, %v1930, 0
        %1934 = vmatpush.msra.mxu0 0.0
        %1935 = vmatpush.msra.mxu0 0.0
        %1936 = vmatpush.msra.mxu0 0.0
        %1937 = vmatpush.msra.mxu0 0.0
        %1938 = vmatpush.msra.mxu0 0.0
        %1939 = vmatpush.msra.mxu0 0.0
        %1940 = vmatpush.msra.mxu0 0.0
        %1941 = vmatpush.msra.mxu0 0.0
        %1942 = vmatpush.msra.mxu0 0.0
        %1943 = vmatpush.msra.mxu0 0.0
        %1944 = vmatpush.msra.mxu0 0.0
        %1945 = vmatpush.msra.mxu0 0.0
        %1946 = vmatpush.msra.mxu0 0.0
        %1947 = vmatpush.msra.mxu0 0.0
        %1948 = vmatpush.msra.mxu0 0.0
        %1949 = vmatpush.msra.mxu0 %v1890
        %1950 = vmatmul.f32.gmra.mxu0 %v1932
        %v1951 = vpop.f32.mrf.mxu0
        %v1952 = vadd.f32 0.0, %v1951
        %1953 = vdwg.mxu0
        %s1954 = scalar_lea.vmem %s10, 40
        %v1955 = vld [vmem:[%s1954] sm:$0xff]
        %v1957 = vsel %vm875, %v1952, 0
        %1959 = vmatpush.msra.mxu0 0.0
        %1960 = vmatpush.msra.mxu0 0.0
        %1961 = vmatpush.msra.mxu0 0.0
        %1962 = vmatpush.msra.mxu0 0.0
        %1963 = vmatpush.msra.mxu0 0.0
        %1964 = vmatpush.msra.mxu0 0.0
        %1965 = vmatpush.msra.mxu0 0.0
        %1966 = vmatpush.msra.mxu0 0.0
        %1967 = vmatpush.msra.mxu0 0.0
        %1968 = vmatpush.msra.mxu0 0.0
        %1969 = vmatpush.msra.mxu0 0.0
        %1970 = vmatpush.msra.mxu0 0.0
        %1971 = vmatpush.msra.mxu0 0.0
        %1972 = vmatpush.msra.mxu0 0.0
        %1973 = vmatpush.msra.mxu0 0.0
        %1974 = vmatpush.msra.mxu0 %v1955
        %1975 = vmatmul.f32.gmra.mxu0 %v1957
        %v1976 = vpop.f32.mrf.mxu0
        %v1977 = vadd.f32 0.0, %v1976
        %1978 = vdwg.mxu0
        %v1980 = vsel %vm875, %v1798, 0
        %1982 = vmatpush.msra.mxu0 0.0
        %1983 = vmatpush.msra.mxu0 0.0
        %1984 = vmatpush.msra.mxu0 0.0
        %1985 = vmatpush.msra.mxu0 0.0
        %1986 = vmatpush.msra.mxu0 0.0
        %1987 = vmatpush.msra.mxu0 0.0
        %1988 = vmatpush.msra.mxu0 0.0
        %1989 = vmatpush.msra.mxu0 0.0
        %1990 = vmatpush.msra.mxu0 0.0
        %1991 = vmatpush.msra.mxu0 0.0
        %1992 = vmatpush.msra.mxu0 0.0
        %1993 = vmatpush.msra.mxu0 0.0
        %1994 = vmatpush.msra.mxu0 0.0
        %1995 = vmatpush.msra.mxu0 0.0
        %1996 = vmatpush.msra.mxu0 0.0
        %1997 = vmatpush.msra.mxu0 %v1801
        %1998 = vmatmul.f32.gmra.mxu0 %v1980
        %v1999 = vpop.f32.mrf.mxu0
        %v2000 = vadd.f32 %v1977, %v1999
        %2001 = vdwg.mxu0
        %s2002 = scalar_lea.vmem %s4, 192
        %v2003 = vld [vmem:[%s2002] sm:$0xff]
        %v2004 = vld [vmem:[%s2002 + $0x8] sm:$0xff]
        %v2005 = vld [vmem:[%s2002 + $0x10] sm:$0xff]
        %v2006 = vld [vmem:[%s2002 + $0x18] sm:$0xff]
        %s2007 = scalar_lea.vmem %s5, 6
        %v2008 = vld [vmem:[%s2007] sm:$0x1]
        %v2010 = vperm.slane %v2008, 0
        %2012 = vmatpush.msra.mxu0 0.0
        %2013 = vmatpush.msra.mxu0 0.0
        %2014 = vmatpush.msra.mxu0 0.0
        %2015 = vmatpush.msra.mxu0 0.0
        %2016 = vmatpush.msra.mxu0 0.0
        %2017 = vmatpush.msra.mxu0 0.0
        %2018 = vmatpush.msra.mxu0 0.0
        %2019 = vmatpush.msra.mxu0 0.0
        %2020 = vmatpush.msra.mxu0 0.0
        %2021 = vmatpush.msra.mxu0 0.0
        %2022 = vmatpush.msra.mxu0 0.0
        %2023 = vmatpush.msra.mxu0 0.0
        %2024 = vmatpush.msra.mxu0 %v2006
        %2025 = vmatpush.msra.mxu0 %v2005
        %2026 = vmatpush.msra.mxu0 %v2004
        %2027 = vmatpush.msra.mxu0 %v2003
        %2028 = vmatmul.f32.gmra.mxu0 %v1656
        %v2029 = vpop.f32.mrf.mxu0
        %v2030 = vadd.f32 %v2010, %v2029
        %2031 = vdwg.mxu0
        %s2032 = scalar_lea.vmem %s6, 192
        %v2033 = vld [vmem:[%s2032] sm:$0xff]
        %v2034 = vld [vmem:[%s2032 + $0x8] sm:$0xff]
        %v2035 = vld [vmem:[%s2032 + $0x10] sm:$0xff]
        %v2036 = vld [vmem:[%s2032 + $0x18] sm:$0xff]
        %s2037 = scalar_lea.vmem %s7, 6
        %v2038 = vld [vmem:[%s2037] sm:$0x1]
        %v2040 = vperm.slane %v2038, 0
        %2042 = vmatpush.msra.mxu0 0.0
        %2043 = vmatpush.msra.mxu0 0.0
        %2044 = vmatpush.msra.mxu0 0.0
        %2045 = vmatpush.msra.mxu0 0.0
        %2046 = vmatpush.msra.mxu0 0.0
        %2047 = vmatpush.msra.mxu0 0.0
        %2048 = vmatpush.msra.mxu0 0.0
        %2049 = vmatpush.msra.mxu0 0.0
        %2050 = vmatpush.msra.mxu0 0.0
        %2051 = vmatpush.msra.mxu0 0.0
        %2052 = vmatpush.msra.mxu0 0.0
        %2053 = vmatpush.msra.mxu0 0.0
        %2054 = vmatpush.msra.mxu0 %v2036
        %2055 = vmatpush.msra.mxu0 %v2035
        %2056 = vmatpush.msra.mxu0 %v2034
        %2057 = vmatpush.msra.mxu0 %v2033
        %2058 = vmatmul.f32.gmra.mxu0 %v1656
        %v2059 = vpop.f32.mrf.mxu0
        %v2060 = vadd.f32 %v2040, %v2059
        %2061 = vdwg.mxu0
        %s2062 = scalar_lea.vmem %s8, 192
        %v2063 = vld [vmem:[%s2062] sm:$0xff]
        %v2064 = vld [vmem:[%s2062 + $0x8] sm:$0xff]
        %v2065 = vld [vmem:[%s2062 + $0x10] sm:$0xff]
        %v2066 = vld [vmem:[%s2062 + $0x18] sm:$0xff]
        %s2067 = scalar_lea.vmem %s9, 6
        %v2068 = vld [vmem:[%s2067] sm:$0x1]
        %v2070 = vperm.slane %v2068, 0
        %2072 = vmatpush.msra.mxu0 0.0
        %2073 = vmatpush.msra.mxu0 0.0
        %2074 = vmatpush.msra.mxu0 0.0
        %2075 = vmatpush.msra.mxu0 0.0
        %2076 = vmatpush.msra.mxu0 0.0
        %2077 = vmatpush.msra.mxu0 0.0
        %2078 = vmatpush.msra.mxu0 0.0
        %2079 = vmatpush.msra.mxu0 0.0
        %2080 = vmatpush.msra.mxu0 0.0
        %2081 = vmatpush.msra.mxu0 0.0
        %2082 = vmatpush.msra.mxu0 0.0
        %2083 = vmatpush.msra.mxu0 0.0
        %2084 = vmatpush.msra.mxu0 %v2066
        %2085 = vmatpush.msra.mxu0 %v2065
        %2086 = vmatpush.msra.mxu0 %v2064
        %2087 = vmatpush.msra.mxu0 %v2063
        %2088 = vmatmul.f32.gmra.mxu0 %v1656
        %v2089 = vpop.f32.mrf.mxu0
        %v2090 = vadd.f32 %v2070, %v2089
        %2091 = vdwg.mxu0
        %v2093 = vsel %vm875, %v2030, 0
        %v2096 = vsel %vm875, %v2060, 0
        %2098 = vmatpush.xpose.msra.mxu0 0.0
        %2099 = vmatpush.xpose.msra.mxu0 0.0
        %2100 = vmatpush.xpose.msra.mxu0 0.0
        %2101 = vmatpush.xpose.msra.mxu0 0.0
        %2102 = vmatpush.xpose.msra.mxu0 0.0
        %2103 = vmatpush.xpose.msra.mxu0 0.0
        %2104 = vmatpush.xpose.msra.mxu0 0.0
        %2105 = vmatpush.xpose.msra.mxu0 0.0
        %2106 = vmatpush.xpose.msra.mxu0 0.0
        %2107 = vmatpush.xpose.msra.mxu0 0.0
        %2108 = vmatpush.xpose.msra.mxu0 0.0
        %2109 = vmatpush.xpose.msra.mxu0 0.0
        %2110 = vmatpush.xpose.msra.mxu0 0.0
        %2111 = vmatpush.xpose.msra.mxu0 0.0
        %2112 = vmatpush.xpose.msra.mxu0 0.0
        %2113 = vmatpush.xpose.msra.mxu0 %v2096
        %2114 = vmatmul.f32.gmra.mxu0 %v2093
        %v2115 = vpop.f32.mrf.mxu0
        %v2116 = vadd.f32 0.0, %v2115
        %2117 = vdwg.mxu0
        %v2118 = vmul.f32 %v2116, 0.35355338
        %v2119 = vadd.f32 %v2118, %v904
        %v2120 = vsel %vm875, %v2119, -inf
        %2121 = vmax.xlane.f32.xlu0 %v2120
        %v2122 = vpop.xlane.xlu0 %2121
        %v2123 = vsub.f32 %v2119, %v2122
        %v2124 = vmul.f32 %v2123, 1.442695
        %v2125 = vpow.pop %v2124
        %v2126 = vsel %vm875, %v2125, 0.0
        %2127 = vadd.xlane.f32.xlu0 %v2126
        %v2128 = vpop.xlane.xlu0 %2127
        %v2129 = vrcp.pop %v2128
        %v2130 = vmul.f32 %v2125, %v2129
        %v2132 = vsel %vm875, %v2130, 0
        %2134 = vmatpush.msra.mxu0 0.0
        %2135 = vmatpush.msra.mxu0 0.0
        %2136 = vmatpush.msra.mxu0 0.0
        %2137 = vmatpush.msra.mxu0 0.0
        %2138 = vmatpush.msra.mxu0 0.0
        %2139 = vmatpush.msra.mxu0 0.0
        %2140 = vmatpush.msra.mxu0 0.0
        %2141 = vmatpush.msra.mxu0 0.0
        %2142 = vmatpush.msra.mxu0 0.0
        %2143 = vmatpush.msra.mxu0 0.0
        %2144 = vmatpush.msra.mxu0 0.0
        %2145 = vmatpush.msra.mxu0 0.0
        %2146 = vmatpush.msra.mxu0 0.0
        %2147 = vmatpush.msra.mxu0 0.0
        %2148 = vmatpush.msra.mxu0 0.0
        %2149 = vmatpush.msra.mxu0 %v2090
        %2150 = vmatmul.f32.gmra.mxu0 %v2132
        %v2151 = vpop.f32.mrf.mxu0
        %v2152 = vadd.f32 0.0, %v2151
        %2153 = vdwg.mxu0
        %s2154 = scalar_lea.vmem %s10, 48
        %v2155 = vld [vmem:[%s2154] sm:$0xff]
        %v2157 = vsel %vm875, %v2152, 0
        %2159 = vmatpush.msra.mxu0 0.0
        %2160 = vmatpush.msra.mxu0 0.0
        %2161 = vmatpush.msra.mxu0 0.0
        %2162 = vmatpush.msra.mxu0 0.0
        %2163 = vmatpush.msra.mxu0 0.0
        %2164 = vmatpush.msra.mxu0 0.0
        %2165 = vmatpush.msra.mxu0 0.0
        %2166 = vmatpush.msra.mxu0 0.0
        %2167 = vmatpush.msra.mxu0 0.0
        %2168 = vmatpush.msra.mxu0 0.0
        %2169 = vmatpush.msra.mxu0 0.0
        %2170 = vmatpush.msra.mxu0 0.0
        %2171 = vmatpush.msra.mxu0 0.0
        %2172 = vmatpush.msra.mxu0 0.0
        %2173 = vmatpush.msra.mxu0 0.0
        %2174 = vmatpush.msra.mxu0 %v2155
        %2175 = vmatmul.f32.gmra.mxu0 %v2157
        %v2176 = vpop.f32.mrf.mxu0
        %v2177 = vadd.f32 0.0, %v2176
        %2178 = vdwg.mxu0
        %v2179 = vadd.f32 %v2000, %v2177
        %s2180 = scalar_lea.vmem %s4, 224
        %v2181 = vld [vmem:[%s2180] sm:$0xff]
        %v2182 = vld [vmem:[%s2180 + $0x8] sm:$0xff]
        %v2183 = vld [vmem:[%s2180 + $0x10] sm:$0xff]
        %v2184 = vld [vmem:[%s2180 + $0x18] sm:$0xff]
        %s2185 = scalar_lea.vmem %s5, 7
        %v2186 = vld [vmem:[%s2185] sm:$0x1]
        %v2188 = vperm.slane %v2186, 0
        %2190 = vmatpush.msra.mxu0 0.0
        %2191 = vmatpush.msra.mxu0 0.0
        %2192 = vmatpush.msra.mxu0 0.0
        %2193 = vmatpush.msra.mxu0 0.0
        %2194 = vmatpush.msra.mxu0 0.0
        %2195 = vmatpush.msra.mxu0 0.0
        %2196 = vmatpush.msra.mxu0 0.0
        %2197 = vmatpush.msra.mxu0 0.0
        %2198 = vmatpush.msra.mxu0 0.0
        %2199 = vmatpush.msra.mxu0 0.0
        %2200 = vmatpush.msra.mxu0 0.0
        %2201 = vmatpush.msra.mxu0 0.0
        %2202 = vmatpush.msra.mxu0 %v2184
        %2203 = vmatpush.msra.mxu0 %v2183
        %2204 = vmatpush.msra.mxu0 %v2182
        %2205 = vmatpush.msra.mxu0 %v2181
        %2206 = vmatmul.f32.gmra.mxu0 %v1656
        %v2207 = vpop.f32.mrf.mxu0
        %v2208 = vadd.f32 %v2188, %v2207
        %2209 = vdwg.mxu0
        %s2210 = scalar_lea.vmem %s6, 224
        %v2211 = vld [vmem:[%s2210] sm:$0xff]
        %v2212 = vld [vmem:[%s2210 + $0x8] sm:$0xff]
        %v2213 = vld [vmem:[%s2210 + $0x10] sm:$0xff]
        %v2214 = vld [vmem:[%s2210 + $0x18] sm:$0xff]
        %s2215 = scalar_lea.vmem %s7, 7
        %v2216 = vld [vmem:[%s2215] sm:$0x1]
        %v2218 = vperm.slane %v2216, 0
        %2220 = vmatpush.msra.mxu0 0.0
        %2221 = vmatpush.msra.mxu0 0.0
        %2222 = vmatpush.msra.mxu0 0.0
        %2223 = vmatpush.msra.mxu0 0.0
        %2224 = vmatpush.msra.mxu0 0.0
        %2225 = vmatpush.msra.mxu0 0.0
        %2226 = vmatpush.msra.mxu0 0.0
        %2227 = vmatpush.msra.mxu0 0.0
        %2228 = vmatpush.msra.mxu0 0.0
        %2229 = vmatpush.msra.mxu0 0.0
        %2230 = vmatpush.msra.mxu0 0.0
        %2231 = vmatpush.msra.mxu0 0.0
        %2232 = vmatpush.msra.mxu0 %v2214
        %2233 = vmatpush.msra.mxu0 %v2213
        %2234 = vmatpush.msra.mxu0 %v2212
        %2235 = vmatpush.msra.mxu0 %v2211
        %2236 = vmatmul.f32.gmra.mxu0 %v1656
        %v2237 = vpop.f32.mrf.mxu0
        %v2238 = vadd.f32 %v2218, %v2237
        %2239 = vdwg.mxu0
        %s2240 = scalar_lea.vmem %s8, 224
        %v2241 = vld [vmem:[%s2240] sm:$0xff]
        %v2242 = vld [vmem:[%s2240 + $0x8] sm:$0xff]
        %v2243 = vld [vmem:[%s2240 + $0x10] sm:$0xff]
        %v2244 = vld [vmem:[%s2240 + $0x18] sm:$0xff]
        %s2245 = scalar_lea.vmem %s9, 7
        %v2246 = vld [vmem:[%s2245] sm:$0x1]
        %v2248 = vperm.slane %v2246, 0
        %2250 = vmatpush.msra.mxu0 0.0
        %2251 = vmatpush.msra.mxu0 0.0
        %2252 = vmatpush.msra.mxu0 0.0
        %2253 = vmatpush.msra.mxu0 0.0
        %2254 = vmatpush.msra.mxu0 0.0
        %2255 = vmatpush.msra.mxu0 0.0
        %2256 = vmatpush.msra.mxu0 0.0
        %2257 = vmatpush.msra.mxu0 0.0
        %2258 = vmatpush.msra.mxu0 0.0
        %2259 = vmatpush.msra.mxu0 0.0
        %2260 = vmatpush.msra.mxu0 0.0
        %2261 = vmatpush.msra.mxu0 0.0
        %2262 = vmatpush.msra.mxu0 %v2244
        %2263 = vmatpush.msra.mxu0 %v2243
        %2264 = vmatpush.msra.mxu0 %v2242
        %2265 = vmatpush.msra.mxu0 %v2241
        %2266 = vmatmul.f32.gmra.mxu0 %v1656
        %v2267 = vpop.f32.mrf.mxu0
        %v2268 = vadd.f32 %v2248, %v2267
        %2269 = vdwg.mxu0
        %v2271 = vsel %vm875, %v2208, 0
        %v2274 = vsel %vm875, %v2238, 0
        %2276 = vmatpush.xpose.msra.mxu0 0.0
        %2277 = vmatpush.xpose.msra.mxu0 0.0
        %2278 = vmatpush.xpose.msra.mxu0 0.0
        %2279 = vmatpush.xpose.msra.mxu0 0.0
        %2280 = vmatpush.xpose.msra.mxu0 0.0
        %2281 = vmatpush.xpose.msra.mxu0 0.0
        %2282 = vmatpush.xpose.msra.mxu0 0.0
        %2283 = vmatpush.xpose.msra.mxu0 0.0
        %2284 = vmatpush.xpose.msra.mxu0 0.0
        %2285 = vmatpush.xpose.msra.mxu0 0.0
        %2286 = vmatpush.xpose.msra.mxu0 0.0
        %2287 = vmatpush.xpose.msra.mxu0 0.0
        %2288 = vmatpush.xpose.msra.mxu0 0.0
        %2289 = vmatpush.xpose.msra.mxu0 0.0
        %2290 = vmatpush.xpose.msra.mxu0 0.0
        %2291 = vmatpush.xpose.msra.mxu0 %v2274
        %2292 = vmatmul.f32.gmra.mxu0 %v2271
        %v2293 = vpop.f32.mrf.mxu0
        %v2294 = vadd.f32 0.0, %v2293
        %2295 = vdwg.mxu0
        %v2296 = vmul.f32 %v2294, 0.35355338
        %v2297 = vadd.f32 %v2296, %v904
        %v2298 = vsel %vm875, %v2297, -inf
        %2299 = vmax.xlane.f32.xlu0 %v2298
        %v2300 = vpop.xlane.xlu0 %2299
        %v2301 = vsub.f32 %v2297, %v2300
        %v2302 = vmul.f32 %v2301, 1.442695
        %v2303 = vpow.pop %v2302
        %v2304 = vsel %vm875, %v2303, 0.0
        %2305 = vadd.xlane.f32.xlu0 %v2304
        %v2306 = vpop.xlane.xlu0 %2305
        %v2307 = vrcp.pop %v2306
        %v2308 = vmul.f32 %v2303, %v2307
        %v2310 = vsel %vm875, %v2308, 0
        %2312 = vmatpush.msra.mxu0 0.0
        %2313 = vmatpush.msra.mxu0 0.0
        %2314 = vmatpush.msra.mxu0 0.0
        %2315 = vmatpush.msra.mxu0 0.0
        %2316 = vmatpush.msra.mxu0 0.0
        %2317 = vmatpush.msra.mxu0 0.0
        %2318 = vmatpush.msra.mxu0 0.0
        %2319 = vmatpush.msra.mxu0 0.0
        %2320 = vmatpush.msra.mxu0 0.0
        %2321 = vmatpush.msra.mxu0 0.0
        %2322 = vmatpush.msra.mxu0 0.0
        %2323 = vmatpush.msra.mxu0 0.0
        %2324 = vmatpush.msra.mxu0 0.0
        %2325 = vmatpush.msra.mxu0 0.0
        %2326 = vmatpush.msra.mxu0 0.0
        %2327 = vmatpush.msra.mxu0 %v2268
        %2328 = vmatmul.f32.gmra.mxu0 %v2310
        %v2329 = vpop.f32.mrf.mxu0
        %v2330 = vadd.f32 0.0, %v2329
        %2331 = vdwg.mxu0
        %s2332 = scalar_lea.vmem %s10, 56
        %v2333 = vld [vmem:[%s2332] sm:$0xff]
        %v2335 = vsel %vm875, %v2330, 0
        %2337 = vmatpush.msra.mxu0 0.0
        %2338 = vmatpush.msra.mxu0 0.0
        %2339 = vmatpush.msra.mxu0 0.0
        %2340 = vmatpush.msra.mxu0 0.0
        %2341 = vmatpush.msra.mxu0 0.0
        %2342 = vmatpush.msra.mxu0 0.0
        %2343 = vmatpush.msra.mxu0 0.0
        %2344 = vmatpush.msra.mxu0 0.0
        %2345 = vmatpush.msra.mxu0 0.0
        %2346 = vmatpush.msra.mxu0 0.0
        %2347 = vmatpush.msra.mxu0 0.0
        %2348 = vmatpush.msra.mxu0 0.0
        %2349 = vmatpush.msra.mxu0 0.0
        %2350 = vmatpush.msra.mxu0 0.0
        %2351 = vmatpush.msra.mxu0 0.0
        %2352 = vmatpush.msra.mxu0 %v2333
        %2353 = vmatmul.f32.gmra.mxu0 %v2335
        %v2354 = vpop.f32.mrf.mxu0
        %v2355 = vadd.f32 0.0, %v2354
        %2356 = vdwg.mxu0
        %v2357 = vadd.f32 %v2179, %v2355
        %s2358 = scalar_lea.vmem %s11, 1
        %v2359 = vld [vmem:[%s2358] sm:$0x1]
        %v2361 = vperm.slane %v2359, 0
        %v2363 = vadd.f32 %v2357, %v2361
        %v2364 = vadd.f32 %v1644, %v2363
        %s2365 = scalar_lea.vmem %s12, 1
        %v2366 = vld [vmem:[%s2365] sm:$0x1]
        %s2367 = scalar_lea.vmem %s13, 1
        %v2368 = vld [vmem:[%s2367] sm:$0x1]
        %v2369 = vsel %vm749, %v2364, 0.0
        %2370 = vadd.xlane.f32.xlu0 %v2369
        %v2371 = vpop.xlane.xlu0 %2370
        %v2372 = vmul.f32 %v2371, %v759
        %v2373 = vsub.f32 %v2364, %v2372
        %v2374 = vmul.f32 %v2373, %v2373
        %v2375 = vsel %vm749, %v2374, 0.0
        %2376 = vadd.xlane.f32.xlu0 %v2375
        %v2377 = vpop.xlane.xlu0 %2376
        %v2378 = vmul.f32 %v2377, %v759
        %v2379 = vadd.f32 %v2378, 1e-12
        %v2380 = vrsqrt.pop %v2379
        %v2381 = vmul.f32 %v2380, %v2379
        %v2382 = vmul.f32 %v2381, %v2380
        %v2383 = vmul.f32 0.5, %v2382
        %v2384 = vsub.f32 1.5, %v2383
        %v2385 = vmul.f32 %v2380, %v2384
        %vm2386 = vweird.f32 %v2379
        %vm2387 = vweird.f32 %v2380
        %vm2388 = vmor %vm2386, %vm2387
        %v2389 = vsel %vm2388, %v2380, %v2385
        %v2390 = vmul.f32 %v2373, %v2389
        %v2392 = vperm.slane %v2366, 0
        %v2394 = vmul.f32 %v2390, %v2392
        %v2396 = vperm.slane %v2368, 0
        %v2398 = vadd.f32 %v2394, %v2396
        %s2399 = scalar_lea.vmem %s14, 32
        %v2400 = vld [vmem:[%s2399] sm:$0xff]
        %v2401 = vld [vmem:[%s2399 + $0x8] sm:$0xff]
        %v2402 = vld [vmem:[%s2399 + $0x10] sm:$0xff]
        %v2403 = vld [vmem:[%s2399 + $0x18] sm:$0xff]
        %s2404 = scalar_lea.vmem %s15, 1
        %v2405 = vld [vmem:[%s2404] sm:$0x1]
        %v2407 = vperm.slane %v2405, 0
        %v2410 = vsel %vm749, %v2398, 0
        %2412 = vmatpush.msra.mxu0 0.0
        %2413 = vmatpush.msra.mxu0 0.0
        %2414 = vmatpush.msra.mxu0 0.0
        %2415 = vmatpush.msra.mxu0 0.0
        %2416 = vmatpush.msra.mxu0 0.0
        %2417 = vmatpush.msra.mxu0 0.0
        %2418 = vmatpush.msra.mxu0 0.0
        %2419 = vmatpush.msra.mxu0 0.0
        %2420 = vmatpush.msra.mxu0 0.0
        %2421 = vmatpush.msra.mxu0 0.0
        %2422 = vmatpush.msra.mxu0 0.0
        %2423 = vmatpush.msra.mxu0 0.0
        %2424 = vmatpush.msra.mxu0 %v2403
        %2425 = vmatpush.msra.mxu0 %v2402
        %2426 = vmatpush.msra.mxu0 %v2401
        %2427 = vmatpush.msra.mxu0 %v2400
        %2428 = vmatmul.f32.gmra.mxu0 %v2410
        %v2429 = vpop.f32.mrf.mxu0
        %v2430 = vadd.f32 %v2407, %v2429
        %2431 = vdwg.mxu0
        %v2432 = vmul.f32 %v2430, %v2430
        %v2433 = vmul.f32 %v2430, %v2432
        %v2434 = vmul.f32 %v2433, 0.044715
        %v2435 = vadd.f32 %v2430, %v2434
        %v2436 = vmul.f32 %v2435, 0.7978846
        %v2437 = vtanh.pop %v2436
        %v2438 = vadd.f32 %v2437, 1.0
        %v2439 = vmul.f32 %v2438, 0.5
        %v2440 = vmul.f32 %v2430, %v2439
        %s2441 = scalar_lea.vmem %s16, 64
        %v2442 = vld [vmem:[%s2441] sm:$0xff]
        %v2443 = vld [vmem:[%s2441 + $0x8] sm:$0xff]
        %v2444 = vld [vmem:[%s2441 + $0x10] sm:$0xff]
        %v2445 = vld [vmem:[%s2441 + $0x18] sm:$0xff]
        %v2446 = vld [vmem:[%s2441 + $0x20] sm:$0xff]
        %v2447 = vld [vmem:[%s2441 + $0x28] sm:$0xff]
        %v2448 = vld [vmem:[%s2441 + $0x30] sm:$0xff]
        %v2449 = vld [vmem:[%s2441 + $0x38] sm:$0xff]
        %s2450 = scalar_lea.vmem %s17, 1
        %v2451 = vld [vmem:[%s2450] sm:$0x1]
        %v2453 = vperm.slane %v2451, 0
        %v2456 = vsel %vm1588, %v2440, 0
        %2458 = vmatpush.msra.mxu0 0.0
        %2459 = vmatpush.msra.mxu0 0.0
        %2460 = vmatpush.msra.mxu0 0.0
        %2461 = vmatpush.msra.mxu0 0.0
        %2462 = vmatpush.msra.mxu0 0.0
        %2463 = vmatpush.msra.mxu0 0.0
        %2464 = vmatpush.msra.mxu0 0.0
        %2465 = vmatpush.msra.mxu0 0.0
        %2466 = vmatpush.msra.mxu0 %v2449
        %2467 = vmatpush.msra.mxu0 %v2448
        %2468 = vmatpush.msra.mxu0 %v2447
        %2469 = vmatpush.msra.mxu0 %v2446
        %2470 = vmatpush.msra.mxu0 %v2445
        %2471 = vmatpush.msra.mxu0 %v2444
        %2472 = vmatpush.msra.mxu0 %v2443
        %2473 = vmatpush.msra.mxu0 %v2442
        %2474 = vmatmul.f32.gmra.mxu0 %v2456
        %v2475 = vpop.f32.mrf.mxu0
        %v2476 = vadd.f32 %v2453, %v2475
        %2477 = vdwg.mxu0
        %v2478 = vadd.f32 %v2398, %v2476
        %s2479 = scalar_lea.vmem %s18, 1
        %v2480 = vld [vmem:[%s2479] sm:$0x1]
        %s2481 = scalar_lea.vmem %s19, 1
        %v2482 = vld [vmem:[%s2481] sm:$0x1]
        %v2483 = vsel %vm749, %v2478, 0.0
        %2484 = vadd.xlane.f32.xlu0 %v2483
        %v2485 = vpop.xlane.xlu0 %2484
        %v2486 = vmul.f32 %v2485, %v759
        %v2487 = vsub.f32 %v2478, %v2486
        %v2488 = vmul.f32 %v2487, %v2487
        %v2489 = vsel %vm749, %v2488, 0.0
        %2490 = vadd.xlane.f32.xlu0 %v2489
        %v2491 = vpop.xlane.xlu0 %2490
        %v2492 = vmul.f32 %v2491, %v759
        %v2493 = vadd.f32 %v2492, 1e-12
        %v2494 = vrsqrt.pop %v2493
        %v2495 = vmul.f32 %v2494, %v2493
        %v2496 = vmul.f32 %v2495, %v2494
        %v2497 = vmul.f32 0.5, %v2496
        %v2498 = vsub.f32 1.5, %v2497
        %v2499 = vmul.f32 %v2494, %v2498
        %vm2500 = vweird.f32 %v2493
        %vm2501 = vweird.f32 %v2494
        %vm2502 = vmor %vm2500, %vm2501
        %v2503 = vsel %vm2502, %v2494, %v2499
        %v2504 = vmul.f32 %v2487, %v2503
        %v2506 = vperm.slane %v2480, 0
        %v2508 = vmul.f32 %v2504, %v2506
        %v2510 = vperm.slane %v2482, 0
        %v2512 = vadd.f32 %v2508, %v2510
        %v2513 = vld [vmem:[%s20] sm:$0xff]
        %v2514 = vld [vmem:[%s20 + $0x8] sm:$0xff]
        %v2515 = vld [vmem:[%s20 + $0x10] sm:$0xff]
        %v2516 = vld [vmem:[%s20 + $0x18] sm:$0xff]
        %v2517 = vld [vmem:[%s21] sm:$0x1]
        %v2519 = vsel %vm749, %v2512, 0
        %2521 = vmatpush.msra.mxu0 0.0
        %2522 = vmatpush.msra.mxu0 0.0
        %2523 = vmatpush.msra.mxu0 0.0
        %2524 = vmatpush.msra.mxu0 0.0
        %2525 = vmatpush.msra.mxu0 0.0
        %2526 = vmatpush.msra.mxu0 0.0
        %2527 = vmatpush.msra.mxu0 0.0
        %2528 = vmatpush.msra.mxu0 0.0
        %2529 = vmatpush.msra.mxu0 0.0
        %2530 = vmatpush.msra.mxu0 0.0
        %2531 = vmatpush.msra.mxu0 0.0
        %2532 = vmatpush.msra.mxu0 0.0
        %2533 = vmatpush.msra.mxu0 %v2516
        %2534 = vmatpush.msra.mxu0 %v2515
        %2535 = vmatpush.msra.mxu0 %v2514
        %2536 = vmatpush.msra.mxu0 %v2513
        %2537 = vmatmul.f32.gmra.mxu0 %v2519
        %v2538 = vpop.f32.mrf.mxu0
        %v2539 = vadd.f32 %v2517, %v2538
        %2540 = vdwg.mxu0
        %v2541 = vmul.f32 %v2539, %v2539
        %vm2542 = vcmask 122880
        %v2543 = vsel %vm2542, %v2541, 0.0
        %2544 = vadd.xlane.f32.xlu0 %v2543
        %v2545 = vpop.xlane.xlu0 %2544
        %v2546 = vrsqrt.pop %v2545
        %v2547 = vmul.f32 %v2546, %v2545
        %v2548 = vmul.f32 %v2547, %v2546
        %v2549 = vmul.f32 0.5, %v2548
        %v2550 = vsub.f32 1.5, %v2549
        %v2551 = vmul.f32 %v2546, %v2550
        %v2552 = vmul.f32 %v2545, %v2551
        %vm2553 = vcmp.eq.f32.partialorder %v2545, inf
        %v2554 = vsel %vm2553, %v2545, %v2552
        %vm2555 = vcmp.eq.f32.partialorder %v2545, 0.0
        %v2556 = vand.u32 %v2545, 2147483648
        %v2557 = vsel %vm2555, %v2556, %v2554
        %v2558 = vmax.f32 %v2557, 1e-12
        %v2559 = vrcp.pop %v2558
        %v2560 = vmul.f32 %v2539, %v2559
        %v2561 = vld [vmem:[%s22] sm:$0xff]
        %v2562 = vld [vmem:[%s22 + $0x8] sm:$0xff]
        %v2563 = vld [vmem:[%s23] sm:$0x1]
        %vm2564 = vcmask 130048
        %v2566 = vsel %vm2564, %v2560, 0
        %2568 = vmatpush.msra.mxu0 0.0
        %2569 = vmatpush.msra.mxu0 0.0
        %2570 = vmatpush.msra.mxu0 0.0
        %2571 = vmatpush.msra.mxu0 0.0
        %2572 = vmatpush.msra.mxu0 0.0
        %2573 = vmatpush.msra.mxu0 0.0
        %2574 = vmatpush.msra.mxu0 0.0
        %2575 = vmatpush.msra.mxu0 0.0
        %2576 = vmatpush.msra.mxu0 0.0
        %2577 = vmatpush.msra.mxu0 0.0
        %2578 = vmatpush.msra.mxu0 0.0
        %2579 = vmatpush.msra.mxu0 0.0
        %2580 = vmatpush.msra.mxu0 0.0
        %2581 = vmatpush.msra.mxu0 0.0
        %2582 = vmatpush.msra.mxu0 %v2562
        %2583 = vmatpush.msra.mxu0 %v2561
        %2584 = vmatmul.f32.gmra.mxu0 %v2566
        %v2585 = vpop.f32.mrf.mxu0
        %v2586 = vadd.f32 %v2563, %v2585
        %2587 = vdwg.mxu0
        %vm2588 = vcmask 24576
        %2589 = vst.msk [vmem:[%s738] sm:$0x1] %vm2588, %v2586
        %s2590 = sand.u32 %s560, 1
        %s2591 = scalar_lea.sflag [#allocation3], %s2590
        %s2592 = sand.u32 %s560, 1
        %s2593 = scalar_lea.vmem [#allocation2], %s2592
        // Predicated region
        $region117: #{bert_classification_forward.1} parent=115 // pred_check
          %p2594 = pneg %p570
        $region118: #{bert_classification_forward.1} parent=115 // pred_check_branch
          %2596 = sbr.rel (%p2594) target = $region120
        $region119: #{bert_classification_forward.1} parent=115 // pred_region
          %2598 = vsyncadd %s2591, 0
          %s2599 = scalar_lea.hbm %s24, %s38
          %s2601 = sshll.u32 %s2593, 4
          %s2602 = int_to_ptr.vmem [resolvable:$true] %s2601
          %s2603 = sshll.u32 %s2599, 4
          %s2604 = int_to_ptr.hbm [resolvable:$true] %s2603
          %2606 = dma.vmem_to_hbm [thread:$0]  %s2602, 16, %s2604, %s2591
        $region120: #{bert_classification_forward.1} parent=115 // pred_fallthru
          _
      $region116: #{bert_classification_forward.1} parent=5 // pred_fallthru
        _
      %p2607 = scmp.le.s32.totalorder 2, %s33
      // Predicated region
      $region121: #{bert_classification_forward.1} parent=5 // pred_check
        %p2608 = pneg %p2607
      $region122: #{bert_classification_forward.1} parent=5 // pred_check_branch
        %2610 = sbr.rel (%p2608) target = $region124
      $region123: #{bert_classification_forward.1} parent=5 // pred_region
        %s2611 = ssub.s32 %s33, 2
        // Predicated region
        $region125: #{bert_classification_forward.1} parent=123 // pred_check
          %p2612 = pneg %p576
        $region126: #{bert_classification_forward.1} parent=123 // pred_check_branch
          %2614 = sbr.rel (%p2612) target = $region128
        $region127: #{bert_classification_forward.1} parent=123 // pred_region
          %s2615 = sand.u32 %s561, 1
          %s2616 = scalar_lea.sflag [#allocation3], %s2615
          %s2617 = sand.u32 %s561, 1
          %s2618 = scalar_lea.vmem [#allocation2], %s2617
          %2620 = dma.done %s2616, 16
        $region128: #{bert_classification_forward.1} parent=123 // pred_fallthru
          _
      $region124: #{bert_classification_forward.1} parent=5 // pred_fallthru
        _
    $region6: #{bert_classification_forward.1} parent=1 // loop_footer
      %s37 = sadd.s32 1, %s33
    $region7: #{bert_classification_forward.1} parent=1 // loop_footer_branch
      %32 = sbr.rel target = $region3
    $region8: #{bert_classification_forward.1} parent=1 // loop_exit
      _
    %2621 = vsyncpa [#allocation3], 1
    %s2622 = scalar_lea.sflag [#allocation3], 1
    %2623 = vsyncpa %s2622, 1

</llo_original>
